<compile_context>
chip_gen: v7x
topology: tpu7x:2x2x1
jax: 0.10.0
libtpu: 0.0.40
codegen_flags: <defaults>
</compile_context>

<pallas_src>
import functools

import jax
import jax.numpy as jnp
from jax import lax
from jax.experimental import pallas as pl
from jax.experimental.pallas import tpu as pltpu


# ----------------------------------------------------------------------------
# Single fused kernel: embedding -> 4x conv1d -> max-pool -> MLP
# ----------------------------------------------------------------------------
def fused_net_kernel(ids_ref, emb_ref, wslab_ref, bmask_ref,
                     w1_ref, b1_ref, w2_ref, b2_ref,
                     out_ref, xpad_ref, feat_ref, *, B, L, kmax):
    BL = B * L
    V, D = emb_ref.shape                      # vocab (padded to 128), embed dim
    FP = wslab_ref.shape[2]                   # padded filter count (384)

    # --- nn.Embedding(padding_idx=0, max_norm=5.0): renorm rows whose L2 norm
    #     exceeds 5.0 (matches ATen embedding_renorm_), then gather.
    tbl = emb_ref[...]
    nrm = jnp.sqrt(jnp.sum(tbl * tbl, axis=1, keepdims=True))
    tbl = tbl * jnp.where(nrm > 5.0, 5.0 / (nrm + 1e-7), 1.0)

    # gather as a one-hot matmul on the MXU (whole batch at once)
    onehot = (ids_ref[...] ==
              lax.broadcasted_iota(jnp.int32, (BL, V), 1)).astype(jnp.float32)
    x = jnp.dot(onehot, tbl, preferred_element_type=jnp.float32)       # (BL, D)

    # --- stage x with (kmax-1) zeroed time-padding rows so every conv tap is a
    #     simple static-window read (pad rows zeroed => no garbage contributes)
    xpad_ref[0:BL, :] = x
    xpad_ref[BL:BL + kmax - 1, :] = jnp.zeros((kmax - 1, D), jnp.float32)

    # --- all four Conv1d's at once: sum over taps of (BL, D) @ (D, FP).
    #     Taps >= k_g have zero weights in group g's columns, so they add 0.
    acc = jnp.dot(x, wslab_ref[0], preferred_element_type=jnp.float32)
    for j in range(1, kmax):
        acc = acc + jnp.dot(xpad_ref[j:j + BL, :], wslab_ref[j],
                            preferred_element_type=jnp.float32)        # (BL, FP)

    # --- conv bias + (-1e30 mask on invalid time positions per filter group),
    #     then global max-pool over time, per sample (== F.max_pool1d(L_out))
    for b in range(B):
        blk = acc[b * L:(b + 1) * L, :] + bmask_ref[...]
        feat_ref[b:b + 1, :] = jnp.max(blk, axis=0, keepdims=True)

    # --- fc_hidden -> ReLU -> fc   (dropout is identity in eval mode)
    feats = feat_ref[...]                                              # (B, FP)
    h = jnp.dot(feats, w1_ref[...], preferred_element_type=jnp.float32) + b1_ref[...]
    h = jnp.maximum(h, 0.0)
    out_ref[...] = (jnp.dot(h, w2_ref[...], preferred_element_type=jnp.float32)
                    + b2_ref[...])


# ----------------------------------------------------------------------------
# One-time parameter packing into lane-dense, VMEM-friendly slabs
# ----------------------------------------------------------------------------
def pack_params(emb_w, conv_ws, conv_bs, w1, b1, w2, b2, filter_sizes, seq_len,
                f_pad=384, h_pad=384, v_pad=128):
    """conv_ws[i]: (k_i, D, nf_i) channels-last weights; conv_bs[i]: (nf_i,)."""
    V, D = emb_w.shape
    kmax = max(filter_sizes)
    nfs = [w.shape[2] for w in conv_ws]
    f_total = sum(nfs)
    assert f_pad >= f_total and h_pad >= w1.shape[1] and v_pad >= V

    emb_p = jnp.zeros((v_pad, D), jnp.float32).at[:V, :].set(emb_w)

    wslab = jnp.zeros((kmax, D, f_pad), jnp.float32)        # (kmax, D, 384)
    bmask = jnp.zeros((seq_len, f_pad), jnp.float32)        # bias + validity
    t_idx = jnp.arange(seq_len)[:, None]
    off = 0
    for k, w, bias, nf in zip(filter_sizes, conv_ws, conv_bs, nfs):
        wslab = wslab.at[:k, :, off:off + nf].set(w)
        l_out = seq_len - k + 1
        bmask = bmask.at[:, off:off + nf].set(
            jnp.where(t_idx < l_out, bias.reshape(1, nf), -1e30))
        off += nf
    # pad lanes [f_total:f_pad): zero weights, zero bias, fully "valid" -> 0.

    w1p = jnp.zeros((f_pad, h_pad), jnp.float32).at[:f_total, :w1.shape[1]].set(w1)
    b1p = jnp.zeros((1, h_pad), jnp.float32).at[:, :b1.shape[0]].set(b1.reshape(1, -1))
    w2p = jnp.zeros((h_pad, w2.shape[1]), jnp.float32).at[:w2.shape[0], :].set(w2)
    b2p = b2.reshape(1, -1).astype(jnp.float32)

    return dict(emb=emb_p, wslab=wslab, bmask=bmask,
                w1p=w1p, b1p=b1p, w2p=w2p, b2p=b2p)


# ----------------------------------------------------------------------------
# Forward pass: one fused pallas_call
# ----------------------------------------------------------------------------
def net_forward(packed, input_ids):
    B, L = input_ids.shape
    kmax, D, FP = packed["wslab"].shape
    C = packed["b2p"].shape[1]
    assert packed["bmask"].shape[0] == L, "params were packed for a different seq len"

    ids_col = input_ids.reshape(B * L, 1).astype(jnp.int32)
    kernel = functools.partial(fused_net_kernel, B=B, L=L, kmax=kmax)
    return pl.pallas_call(
        kernel,
        out_shape=jax.ShapeDtypeStruct((B, C), jnp.float32),
        scratch_shapes=[
            pltpu.VMEM((B * L + kmax - 1, D), jnp.float32),   # time-padded x
            pltpu.VMEM((B, FP), jnp.float32),                 # pooled features
        ],
    )(ids_col, packed["emb"], packed["wslab"], packed["bmask"],
      packed["w1p"], packed["b1p"], packed["w2p"], packed["b2p"])


# ----------------------------------------------------------------------------
# Pure-JAX reference (mirrors the PyTorch module) for a numerical self-check
# ----------------------------------------------------------------------------
def reference_forward(input_ids, emb_w, conv_ws, conv_bs, w1, b1, w2, b2):
    nrm = jnp.sqrt(jnp.sum(emb_w * emb_w, axis=-1, keepdims=True))
    tbl = emb_w * jnp.where(nrm > 5.0, 5.0 / (nrm + 1e-7), 1.0)
    x = jnp.take(tbl, input_ids, axis=0).astype(jnp.float32)          # (B, L, D)
    B, L, _ = x.shape
    pools = []
    for w, bias in zip(conv_ws, conv_bs):                             # w: (k, D, nf)
        k = w.shape[0]
        l_out = L - k + 1
        acc = jnp.zeros((B, l_out, w.shape[2]), jnp.float32)
        for j in range(k):
            acc = acc + jnp.einsum("bld,df->blf", x[:, j:j + l_out, :], w[j])
        pools.append(jnp.max(acc + bias.reshape(1, 1, -1), axis=1))
    feats = jnp.concatenate(pools, axis=1)                            # (B, 300)
    h = jnp.maximum(feats @ w1 + b1.reshape(1, -1), 0.0)
    return h @ w2 + b2.reshape(1, -1)


if __name__ == "__main__":
    key = jax.random.PRNGKey(0)
    keys = jax.random.split(key, 16)

    # module hyper-parameters (defaults of Net.__init__)
    vocab_size, embed_dim = 69, 128
    filter_sizes = [10, 7, 5, 3]
    num_filters = [75, 75, 75, 75]
    num_classes = 2

    # small run shapes
    B, L = 2, 16

    # --- deterministic parameter init -------------------------------------
    emb_w = jax.random.normal(keys[0], (vocab_size, embed_dim), jnp.float32)
    emb_w = emb_w.at[0].set(0.0)                       # padding_idx=0 row

    conv_ws, conv_bs = [], []
    for i, (fs, nf) in enumerate(zip(filter_sizes, num_filters)):
        fan_in = embed_dim * fs
        bound = 1.0 / (fan_in ** 0.5)
        w_nchw = jax.random.uniform(keys[1 + i], (nf, embed_dim, fs),
                                    jnp.float32, -bound, bound)       # (F, D, k)
        bias = jax.random.uniform(keys[5 + i], (nf,), jnp.float32, -bound, bound)
        conv_ws.append(jnp.transpose(w_nchw, (2, 1, 0)))              # (k, D, F)
        conv_bs.append(bias)

    total_f = sum(num_filters)                                        # 300
    bound1 = 1.0 / (total_f ** 0.5)
    w1 = jax.random.uniform(keys[9], (total_f, 300), jnp.float32, -bound1, bound1)
    b1 = jax.random.uniform(keys[10], (300,), jnp.float32, -bound1, bound1)
    bound2 = 1.0 / (300 ** 0.5)
    w2 = jax.random.uniform(keys[11], (300, num_classes), jnp.float32, -bound2, bound2)
    b2 = jax.random.uniform(keys[12], (num_classes,), jnp.float32, -bound2, bound2)

    input_ids = jax.random.randint(keys[13], (B, L), 0, vocab_size, dtype=jnp.int32)

    # --- pack once, run fused kernel once ----------------------------------
    packed = pack_params(emb_w, conv_ws, conv_bs, w1, b1, w2, b2, filter_sizes, L)
    logits = jax.jit(net_forward)(packed, input_ids)
    logits = jax.block_until_ready(logits)

    # --- self-check against a pure-JAX reference of the PyTorch forward ----
    ref = reference_forward(input_ids, emb_w, conv_ws, conv_bs, w1, b1, w2, b2)
    ref = jax.block_until_ready(ref)

    assert logits.shape == (B, num_classes)
    assert logits.dtype == jnp.float32
    assert bool(jnp.allclose(logits, ref, atol=2e-2, rtol=2e-2)), (logits, ref)
    print("KERNEL_OK")
</pallas_src>

<mosaic_0001>
module attributes {stable_mosaic.version = 11 : i64} {
  func.func @fused_net_kernel(%arg0: memref<32x1xi32, #tpu.memory_space<vmem>>, %arg1: memref<128x128xf32, #tpu.memory_space<vmem>>, %arg2: memref<10x128x384xf32, #tpu.memory_space<vmem>>, %arg3: memref<16x384xf32, #tpu.memory_space<vmem>>, %arg4: memref<384x384xf32, #tpu.memory_space<vmem>>, %arg5: memref<1x384xf32, #tpu.memory_space<vmem>>, %arg6: memref<384x2xf32, #tpu.memory_space<vmem>>, %arg7: memref<1x2xf32, #tpu.memory_space<vmem>>, %arg8: memref<2x2xf32, #tpu.memory_space<vmem>>, %arg9: memref<41x128xf32, #tpu.memory_space<vmem>>, %arg10: memref<2x384xf32, #tpu.memory_space<vmem>>) attributes {dimension_semantics = [], scalar_prefetch = 0 : i64, scratch_operands = 2 : i64, tpu.core_type = #tpu.core_type<tc>} {
    %c0 = arith.constant 0 : index
    %c0_0 = arith.constant 0 : index
    %0 = vector.load %arg1[%c0, %c0_0] : memref<128x128xf32, #tpu.memory_space<vmem>>, vector<128x128xf32>
    %1 = arith.mulf %0, %0 : vector<128x128xf32>
    %cst = arith.constant dense<0.000000e+00> : vector<128xf32>
    %2 = vector.multi_reduction <add>, %1, %cst [1] : vector<128x128xf32> to vector<128xf32>
    %3 = vector.shape_cast %2 : vector<128xf32> to vector<128x1xf32>
    %4 = math.sqrt %3 : vector<128x1xf32>
    %cst_1 = arith.constant 5.000000e+00 : f32
    %5 = vector.broadcast %cst_1 : f32 to vector<128x1xf32>
    %6 = arith.cmpf ogt, %4, %5 : vector<128x1xf32>
    %cst_2 = arith.constant 1.000000e-07 : f32
    %7 = vector.broadcast %cst_2 : f32 to vector<128x1xf32>
    %8 = arith.addf %4, %7 : vector<128x1xf32>
    %cst_3 = arith.constant 5.000000e+00 : f32
    %9 = vector.broadcast %cst_3 : f32 to vector<128x1xf32>
    %10 = arith.divf %9, %8 : vector<128x1xf32>
    %cst_4 = arith.constant 1.000000e+00 : f32
    %11 = vector.broadcast %cst_4 : f32 to vector<128x1xf32>
    %12 = arith.select %6, %10, %11 : vector<128x1xi1>, vector<128x1xf32>
    %13 = vector.broadcast %12 : vector<128x1xf32> to vector<128x128xf32>
    %14 = arith.mulf %0, %13 : vector<128x128xf32>
    %c0_5 = arith.constant 0 : index
    %c0_6 = arith.constant 0 : index
    %15 = vector.load %arg0[%c0_5, %c0_6] : memref<32x1xi32, #tpu.memory_space<vmem>>, vector<32x1xi32>
    %16 = tpu.iota {dimensions = array<i32: 1>} : vector<32x128xi32>
    %17 = vector.broadcast %15 : vector<32x1xi32> to vector<32x128xi32>
    %18 = arith.cmpi eq, %17, %16 : vector<32x128xi32>
    %19 = arith.extui %18 : vector<32x128xi1> to vector<32x128xi32>
    %20 = arith.sitofp %19 : vector<32x128xi32> to vector<32x128xf32>
    %cst_7 = arith.constant dense<0.000000e+00> : vector<32x128xf32>
    %21 = tpu.matmul %20, %14, %cst_7 {dimension_numbers = #tpu.dot_dimension_numbers<[1], [0], [0], [1], [0, 0, 1, 1], [], []>} : vector<32x128xf32>, vector<128x128xf32>, vector<32x128xf32> -> vector<32x128xf32>
    %c0_8 = arith.constant 0 : index
    %c0_9 = arith.constant 0 : index
    %22 = vector.load %arg9[%c0_8, %c0_9] : memref<41x128xf32, #tpu.memory_space<vmem>>, vector<32x128xf32>
    tpu.vector_store %arg9[%c0_8, %c0_9], %21 {strides = array<i32>} : memref<41x128xf32, #tpu.memory_space<vmem>>, vector<32x128xf32>,
    %cst_10 = arith.constant 0.000000e+00 : f32
    %23 = vector.broadcast %cst_10 : f32 to vector<9x128xf32>
    %c32 = arith.constant 32 : index
    %c0_11 = arith.constant 0 : index
    %24 = vector.load %arg9[%c32, %c0_11] : memref<41x128xf32, #tpu.memory_space<vmem>>, vector<9x128xf32>
    tpu.vector_store %arg9[%c32, %c0_11], %23 {strides = array<i32>} : memref<41x128xf32, #tpu.memory_space<vmem>>, vector<9x128xf32>,
    %c0_12 = arith.constant 0 : index
    %c0_13 = arith.constant 0 : index
    %c0_14 = arith.constant 0 : index
    %25 = vector.load %arg2[%c0_12, %c0_13, %c0_14] : memref<10x128x384xf32, #tpu.memory_space<vmem>>, vector<1x128x384xf32>
    %26 = vector.shape_cast %25 : vector<1x128x384xf32> to vector<128x384xf32>
    %cst_15 = arith.constant dense<0.000000e+00> : vector<32x384xf32>
    %27 = tpu.matmul %21, %26, %cst_15 {dimension_numbers = #tpu.dot_dimension_numbers<[1], [0], [0], [1], [0, 0, 1, 1], [], []>} : vector<32x128xf32>, vector<128x384xf32>, vector<32x384xf32> -> vector<32x384xf32>
    %c1 = arith.constant 1 : index
    %c0_16 = arith.constant 0 : index
    %28 = vector.load %arg9[%c1, %c0_16] : memref<41x128xf32, #tpu.memory_space<vmem>>, vector<32x128xf32>
    %c1_17 = arith.constant 1 : index
    %c0_18 = arith.constant 0 : index
    %c0_19 = arith.constant 0 : index
    %29 = vector.load %arg2[%c1_17, %c0_18, %c0_19] : memref<10x128x384xf32, #tpu.memory_space<vmem>>, vector<1x128x384xf32>
    %30 = vector.shape_cast %29 : vector<1x128x384xf32> to vector<128x384xf32>
    %cst_20 = arith.constant dense<0.000000e+00> : vector<32x384xf32>
    %31 = tpu.matmul %28, %30, %cst_20 {dimension_numbers = #tpu.dot_dimension_numbers<[1], [0], [0], [1], [0, 0, 1, 1], [], []>} : vector<32x128xf32>, vector<128x384xf32>, vector<32x384xf32> -> vector<32x384xf32>
    %32 = arith.addf %27, %31 : vector<32x384xf32>
    %c2 = arith.constant 2 : index
    %c0_21 = arith.constant 0 : index
    %33 = vector.load %arg9[%c2, %c0_21] : memref<41x128xf32, #tpu.memory_space<vmem>>, vector<32x128xf32>
    %c2_22 = arith.constant 2 : index
    %c0_23 = arith.constant 0 : index
    %c0_24 = arith.constant 0 : index
    %34 = vector.load %arg2[%c2_22, %c0_23, %c0_24] : memref<10x128x384xf32, #tpu.memory_space<vmem>>, vector<1x128x384xf32>
    %35 = vector.shape_cast %34 : vector<1x128x384xf32> to vector<128x384xf32>
    %cst_25 = arith.constant dense<0.000000e+00> : vector<32x384xf32>
    %36 = tpu.matmul %33, %35, %cst_25 {dimension_numbers = #tpu.dot_dimension_numbers<[1], [0], [0], [1], [0, 0, 1, 1], [], []>} : vector<32x128xf32>, vector<128x384xf32>, vector<32x384xf32> -> vector<32x384xf32>
    %37 = arith.addf %32, %36 : vector<32x384xf32>
    %c3 = arith.constant 3 : index
    %c0_26 = arith.constant 0 : index
    %38 = vector.load %arg9[%c3, %c0_26] : memref<41x128xf32, #tpu.memory_space<vmem>>, vector<32x128xf32>
    %c3_27 = arith.constant 3 : index
    %c0_28 = arith.constant 0 : index
    %c0_29 = arith.constant 0 : index
    %39 = vector.load %arg2[%c3_27, %c0_28, %c0_29] : memref<10x128x384xf32, #tpu.memory_space<vmem>>, vector<1x128x384xf32>
    %40 = vector.shape_cast %39 : vector<1x128x384xf32> to vector<128x384xf32>
    %cst_30 = arith.constant dense<0.000000e+00> : vector<32x384xf32>
    %41 = tpu.matmul %38, %40, %cst_30 {dimension_numbers = #tpu.dot_dimension_numbers<[1], [0], [0], [1], [0, 0, 1, 1], [], []>} : vector<32x128xf32>, vector<128x384xf32>, vector<32x384xf32> -> vector<32x384xf32>
    %42 = arith.addf %37, %41 : vector<32x384xf32>
    %c4 = arith.constant 4 : index
    %c0_31 = arith.constant 0 : index
    %43 = vector.load %arg9[%c4, %c0_31] : memref<41x128xf32, #tpu.memory_space<vmem>>, vector<32x128xf32>
    %c4_32 = arith.constant 4 : index
    %c0_33 = arith.constant 0 : index
    %c0_34 = arith.constant 0 : index
    %44 = vector.load %arg2[%c4_32, %c0_33, %c0_34] : memref<10x128x384xf32, #tpu.memory_space<vmem>>, vector<1x128x384xf32>
    %45 = vector.shape_cast %44 : vector<1x128x384xf32> to vector<128x384xf32>
    %cst_35 = arith.constant dense<0.000000e+00> : vector<32x384xf32>
    %46 = tpu.matmul %43, %45, %cst_35 {dimension_numbers = #tpu.dot_dimension_numbers<[1], [0], [0], [1], [0, 0, 1, 1], [], []>} : vector<32x128xf32>, vector<128x384xf32>, vector<32x384xf32> -> vector<32x384xf32>
    %47 = arith.addf %42, %46 : vector<32x384xf32>
    %c5 = arith.constant 5 : index
    %c0_36 = arith.constant 0 : index
    %48 = vector.load %arg9[%c5, %c0_36] : memref<41x128xf32, #tpu.memory_space<vmem>>, vector<32x128xf32>
    %c5_37 = arith.constant 5 : index
    %c0_38 = arith.constant 0 : index
    %c0_39 = arith.constant 0 : index
    %49 = vector.load %arg2[%c5_37, %c0_38, %c0_39] : memref<10x128x384xf32, #tpu.memory_space<vmem>>, vector<1x128x384xf32>
    %50 = vector.shape_cast %49 : vector<1x128x384xf32> to vector<128x384xf32>
    %cst_40 = arith.constant dense<0.000000e+00> : vector<32x384xf32>
    %51 = tpu.matmul %48, %50, %cst_40 {dimension_numbers = #tpu.dot_dimension_numbers<[1], [0], [0], [1], [0, 0, 1, 1], [], []>} : vector<32x128xf32>, vector<128x384xf32>, vector<32x384xf32> -> vector<32x384xf32>
    %52 = arith.addf %47, %51 : vector<32x384xf32>
    %c6 = arith.constant 6 : index
    %c0_41 = arith.constant 0 : index
    %53 = vector.load %arg9[%c6, %c0_41] : memref<41x128xf32, #tpu.memory_space<vmem>>, vector<32x128xf32>
    %c6_42 = arith.constant 6 : index
    %c0_43 = arith.constant 0 : index
    %c0_44 = arith.constant 0 : index
    %54 = vector.load %arg2[%c6_42, %c0_43, %c0_44] : memref<10x128x384xf32, #tpu.memory_space<vmem>>, vector<1x128x384xf32>
    %55 = vector.shape_cast %54 : vector<1x128x384xf32> to vector<128x384xf32>
    %cst_45 = arith.constant dense<0.000000e+00> : vector<32x384xf32>
    %56 = tpu.matmul %53, %55, %cst_45 {dimension_numbers = #tpu.dot_dimension_numbers<[1], [0], [0], [1], [0, 0, 1, 1], [], []>} : vector<32x128xf32>, vector<128x384xf32>, vector<32x384xf32> -> vector<32x384xf32>
    %57 = arith.addf %52, %56 : vector<32x384xf32>
    %c7 = arith.constant 7 : index
    %c0_46 = arith.constant 0 : index
    %58 = vector.load %arg9[%c7, %c0_46] : memref<41x128xf32, #tpu.memory_space<vmem>>, vector<32x128xf32>
    %c7_47 = arith.constant 7 : index
    %c0_48 = arith.constant 0 : index
    %c0_49 = arith.constant 0 : index
    %59 = vector.load %arg2[%c7_47, %c0_48, %c0_49] : memref<10x128x384xf32, #tpu.memory_space<vmem>>, vector<1x128x384xf32>
    %60 = vector.shape_cast %59 : vector<1x128x384xf32> to vector<128x384xf32>
    %cst_50 = arith.constant dense<0.000000e+00> : vector<32x384xf32>
    %61 = tpu.matmul %58, %60, %cst_50 {dimension_numbers = #tpu.dot_dimension_numbers<[1], [0], [0], [1], [0, 0, 1, 1], [], []>} : vector<32x128xf32>, vector<128x384xf32>, vector<32x384xf32> -> vector<32x384xf32>
    %62 = arith.addf %57, %61 : vector<32x384xf32>
    %c8 = arith.constant 8 : index
    %c0_51 = arith.constant 0 : index
    %63 = vector.load %arg9[%c8, %c0_51] : memref<41x128xf32, #tpu.memory_space<vmem>>, vector<32x128xf32>
    %c8_52 = arith.constant 8 : index
    %c0_53 = arith.constant 0 : index
    %c0_54 = arith.constant 0 : index
    %64 = vector.load %arg2[%c8_52, %c0_53, %c0_54] : memref<10x128x384xf32, #tpu.memory_space<vmem>>, vector<1x128x384xf32>
    %65 = vector.shape_cast %64 : vector<1x128x384xf32> to vector<128x384xf32>
    %cst_55 = arith.constant dense<0.000000e+00> : vector<32x384xf32>
    %66 = tpu.matmul %63, %65, %cst_55 {dimension_numbers = #tpu.dot_dimension_numbers<[1], [0], [0], [1], [0, 0, 1, 1], [], []>} : vector<32x128xf32>, vector<128x384xf32>, vector<32x384xf32> -> vector<32x384xf32>
    %67 = arith.addf %62, %66 : vector<32x384xf32>
    %c9 = arith.constant 9 : index
    %c0_56 = arith.constant 0 : index
    %68 = vector.load %arg9[%c9, %c0_56] : memref<41x128xf32, #tpu.memory_space<vmem>>, vector<32x128xf32>
    %c9_57 = arith.constant 9 : index
    %c0_58 = arith.constant 0 : index
    %c0_59 = arith.constant 0 : index
    %69 = vector.load %arg2[%c9_57, %c0_58, %c0_59] : memref<10x128x384xf32, #tpu.memory_space<vmem>>, vector<1x128x384xf32>
    %70 = vector.shape_cast %69 : vector<1x128x384xf32> to vector<128x384xf32>
    %cst_60 = arith.constant dense<0.000000e+00> : vector<32x384xf32>
    %71 = tpu.matmul %68, %70, %cst_60 {dimension_numbers = #tpu.dot_dimension_numbers<[1], [0], [0], [1], [0, 0, 1, 1], [], []>} : vector<32x128xf32>, vector<128x384xf32>, vector<32x384xf32> -> vector<32x384xf32>
    %72 = arith.addf %67, %71 : vector<32x384xf32>
    %73 = vector.extract_strided_slice %72 {offsets = [0, 0], sizes = [16, 384], strides = [1, 1]} : vector<32x384xf32> to vector<16x384xf32>
    %c0_61 = arith.constant 0 : index
    %c0_62 = arith.constant 0 : index
    %74 = vector.load %arg3[%c0_61, %c0_62] : memref<16x384xf32, #tpu.memory_space<vmem>>, vector<16x384xf32>
    %75 = arith.addf %73, %74 : vector<16x384xf32>
    %cst_63 = arith.constant dense<0xFF800000> : vector<384xf32>
    %76 = vector.multi_reduction <maximumf>, %75, %cst_63 [0] : vector<16x384xf32> to vector<384xf32>
    %77 = vector.shape_cast %76 : vector<384xf32> to vector<1x384xf32>
    %c0_64 = arith.constant 0 : index
    %c0_65 = arith.constant 0 : index
    %78 = vector.load %arg10[%c0_64, %c0_65] : memref<2x384xf32, #tpu.memory_space<vmem>>, vector<1x384xf32>
    tpu.vector_store %arg10[%c0_64, %c0_65], %77 {strides = array<i32>} : memref<2x384xf32, #tpu.memory_space<vmem>>, vector<1x384xf32>,
    %79 = vector.extract_strided_slice %72 {offsets = [16, 0], sizes = [16, 384], strides = [1, 1]} : vector<32x384xf32> to vector<16x384xf32>
    %c0_66 = arith.constant 0 : index
    %c0_67 = arith.constant 0 : index
    %80 = vector.load %arg3[%c0_66, %c0_67] : memref<16x384xf32, #tpu.memory_space<vmem>>, vector<16x384xf32>
    %81 = arith.addf %79, %80 : vector<16x384xf32>
    %cst_68 = arith.constant dense<0xFF800000> : vector<384xf32>
    %82 = vector.multi_reduction <maximumf>, %81, %cst_68 [0] : vector<16x384xf32> to vector<384xf32>
    %83 = vector.shape_cast %82 : vector<384xf32> to vector<1x384xf32>
    %c1_69 = arith.constant 1 : index
    %c0_70 = arith.constant 0 : index
    %84 = vector.load %arg10[%c1_69, %c0_70] : memref<2x384xf32, #tpu.memory_space<vmem>>, vector<1x384xf32>
    tpu.vector_store %arg10[%c1_69, %c0_70], %83 {strides = array<i32>} : memref<2x384xf32, #tpu.memory_space<vmem>>, vector<1x384xf32>,
    %c0_71 = arith.constant 0 : index
    %c0_72 = arith.constant 0 : index
    %85 = vector.load %arg10[%c0_71, %c0_72] : memref<2x384xf32, #tpu.memory_space<vmem>>, vector<2x384xf32>
    %c0_73 = arith.constant 0 : index
    %c0_74 = arith.constant 0 : index
    %86 = vector.load %arg4[%c0_73, %c0_74] : memref<384x384xf32, #tpu.memory_space<vmem>>, vector<384x384xf32>
    %cst_75 = arith.constant dense<0.000000e+00> : vector<2x384xf32>
    %87 = tpu.matmul %85, %86, %cst_75 {dimension_numbers = #tpu.dot_dimension_numbers<[1], [0], [0], [1], [0, 0, 1, 1], [], []>} : vector<2x384xf32>, vector<384x384xf32>, vector<2x384xf32> -> vector<2x384xf32>
    %c0_76 = arith.constant 0 : index
    %c0_77 = arith.constant 0 : index
    %88 = vector.load %arg5[%c0_76, %c0_77] : memref<1x384xf32, #tpu.memory_space<vmem>>, vector<1x384xf32>
    %89 = vector.broadcast %88 : vector<1x384xf32> to vector<2x384xf32>
    %90 = arith.addf %87, %89 : vector<2x384xf32>
    %cst_78 = arith.constant 0.000000e+00 : f32
    %91 = vector.broadcast %cst_78 : f32 to vector<2x384xf32>
    %92 = arith.maximumf %90, %91 : vector<2x384xf32>
    %c0_79 = arith.constant 0 : index
    %c0_80 = arith.constant 0 : index
    %93 = vector.load %arg6[%c0_79, %c0_80] : memref<384x2xf32, #tpu.memory_space<vmem>>, vector<384x2xf32>
    %cst_81 = arith.constant dense<0.000000e+00> : vector<2x2xf32>
    %94 = tpu.matmul %92, %93, %cst_81 {dimension_numbers = #tpu.dot_dimension_numbers<[1], [0], [0], [1], [0, 0, 1, 1], [], []>} : vector<2x384xf32>, vector<384x2xf32>, vector<2x2xf32> -> vector<2x2xf32>
    %c0_82 = arith.constant 0 : index
    %c0_83 = arith.constant 0 : index
    %95 = vector.load %arg7[%c0_82, %c0_83] : memref<1x2xf32, #tpu.memory_space<vmem>>, vector<1x2xf32>
    %96 = vector.broadcast %95 : vector<1x2xf32> to vector<2x2xf32>
    %97 = arith.addf %94, %96 : vector<2x2xf32>
    %c0_84 = arith.constant 0 : index
    %c0_85 = arith.constant 0 : index
    %98 = vector.load %arg8[%c0_84, %c0_85] : memref<2x2xf32, #tpu.memory_space<vmem>>, vector<2x2xf32>
    tpu.vector_store %arg8[%c0_84, %c0_85], %97 {strides = array<i32>} : memref<2x2xf32, #tpu.memory_space<vmem>>, vector<2x2xf32>,
    return
  }
}

</mosaic_0001>

<llo_original>
// kernel: net_forward.1
$region0: #{net_forward.1}
  #allocation0 [shape = 'u32[]', space=smem, size = 0x4, offset = 0x4, fixed_abs, tag = 'smem constant byte address 0x4 - core index']
  #allocation1 [shape = 'u32[144,128]{1,0:T(1,128)}', space=vmem, size = 0x12000, scoped, tag = 'internal scratch']
  #allocation2 [shape = 'f32[41,128]{1,0:T(8,128)}', space=vmem, size = 0x6000, scoped, tag = 'scratch operand']
  #allocation3 [shape = 'f32[2,384]{1,0:T(2,128)}', space=vmem, size = 0xc00, scoped, tag = 'scratch operand']
  %s0 = inlined_call_operand.vmem [shape: s32[32,1], index: 0, kind: input, shape index: {}]
  %s1 = inlined_call_operand.hbm [shape: f32[128,128], index: 1, kind: input, shape index: {}]
  %s2 = inlined_call_operand.hbm [shape: f32[10,128,384], index: 2, kind: input, shape index: {}]
  %s3 = inlined_call_operand.hbm [shape: f32[16,384], index: 3, kind: input, shape index: {}]
  %s4 = inlined_call_operand.hbm [shape: f32[384,384], index: 4, kind: input, shape index: {}]
  %s5 = inlined_call_operand.hbm [shape: f32[1,384], index: 5, kind: input, shape index: {}]
  %s6 = inlined_call_operand.vmem [shape: f32[384,2], index: 6, kind: input, shape index: {}]
  %s7 = inlined_call_operand.hbm [shape: f32[1,2], index: 7, kind: input, shape index: {}]
  %s8 = inlined_call_operand.hbm [shape: f32[2,2], index: 8, kind: output, shape index: {}]
  %s9 = sld [smem:[#allocation0]]
  $region66: #{net_forward.1} parent=0
    _
  %s11 = ssub.s32 1, %s9
  %s12 = scalar_select 0, %s11, %s9
  $region1: #{net_forward.1} parent=0
    #allocation4 [shape = 'u8[65536]{0}', space=vmem, size = 0x10000, scoped, tag = 'input window, operand 1, single buffered']
    #allocation5 [shape = 's32[1]{0}', space=sflag, size = 0x4, scoped, tag = 'scoped memory for net_forward.1']
    #allocation6 [shape = 's32[1]{0}', space=sflag, size = 0x4, scoped, tag = 'scoped memory for net_forward.1']
    #allocation7 [shape = 'u8[1966080]{0}', space=vmem, size = 0x1e0000, scoped, tag = 'input window, operand 2, single buffered']
    #allocation8 [shape = 's32[1]{0}', space=sflag, size = 0x4, scoped, tag = 'scoped memory for net_forward.1']
    #allocation9 [shape = 'u8[24576]{0}', space=vmem, size = 0x6000, scoped, tag = 'input window, operand 3, single buffered']
    #allocation10 [shape = 'u8[589824]{0}', space=vmem, size = 0x90000, scoped, tag = 'input window, operand 4, single buffered']
    #allocation11 [shape = 's32[1]{0}', space=sflag, size = 0x4, scoped, tag = 'scoped memory for net_forward.1']
    #allocation12 [shape = 'u8[1536]{0}', space=vmem, size = 0x800, scoped, tag = 'input window, operand 5, single buffered']
    #allocation13 [shape = 'u8[512]{0}', space=vmem, size = 0x400, scoped, tag = 'input window, operand 7, single buffered']
    #allocation14 [shape = 's32[1]{0}', space=sflag, size = 0x4, scoped, tag = 'scoped memory for net_forward.1']
    #allocation15 [shape = 'u8[1024]{0}', space=vmem, size = 0x400, scoped, tag = 'output window, operand 0, single buffered']
    %13 = vsyncpa [#allocation5], 0
    %14 = vsyncpa [#allocation8], 0
    %15 = vsyncpa [#allocation11], 0
    %16 = vsyncpa [#allocation14], 0
    %17 = vsyncpa [#allocation6], 0
    // Predicated region
    $region2: #{net_forward.1} parent=1 // pred_check
      _
    $region3: #{net_forward.1} parent=1 // pred_check_branch
      %19 = sbr.rel (0) target = $region5
    $region4: #{net_forward.1} parent=1 // pred_region
      _
    $region5: #{net_forward.1} parent=1 // pred_fallthru
      _
    // Predicated region
    $region6: #{net_forward.1} parent=1 // pred_check
      _
    $region7: #{net_forward.1} parent=1 // pred_check_branch
      %21 = sbr.rel (0) target = $region9
    $region8: #{net_forward.1} parent=1 // pred_region
      %s23 = ssub.s32 2048, 2048
      %24 = vsyncadd [#allocation5], %s23
      %s25 = sshll.u32 [#allocation4], 4
      %s26 = int_to_ptr.vmem [resolvable:$true] %s25
      %31 = dma.hbm_to_vmem [thread:$0]  %s1, 2048, %s26, [#allocation5], 128, 128, 8
    $region9: #{net_forward.1} parent=1 // pred_fallthru
      _
    // Predicated region
    $region10: #{net_forward.1} parent=1 // pred_check
      _
    $region11: #{net_forward.1} parent=1 // pred_check_branch
      %33 = sbr.rel (0) target = $region13
    $region12: #{net_forward.1} parent=1 // pred_region
      %s35 = ssub.s32 61440, 61440
      %36 = vsyncadd [#allocation8], %s35
      %s37 = sshll.u32 [#allocation7], 4
      %s38 = int_to_ptr.vmem [resolvable:$true] %s37
      %43 = dma.hbm_to_vmem [thread:$0]  %s2, 61440, %s38, [#allocation8], 384, 384, 24
    $region13: #{net_forward.1} parent=1 // pred_fallthru
      _
    // Predicated region
    $region14: #{net_forward.1} parent=1 // pred_check
      _
    $region15: #{net_forward.1} parent=1 // pred_check_branch
      %45 = sbr.rel (0) target = $region17
    $region16: #{net_forward.1} parent=1 // pred_region
      %s47 = ssub.s32 768, 768
      %48 = vsyncadd [#allocation8], %s47
      %s49 = sshll.u32 [#allocation9], 4
      %s50 = int_to_ptr.vmem [resolvable:$true] %s49
      %55 = dma.hbm_to_vmem [thread:$0]  %s3, 768, %s50, [#allocation8], 384, 384, 24
    $region17: #{net_forward.1} parent=1 // pred_fallthru
      _
    // Predicated region
    $region18: #{net_forward.1} parent=1 // pred_check
      _
    $region19: #{net_forward.1} parent=1 // pred_check_branch
      %57 = sbr.rel (0) target = $region21
    $region20: #{net_forward.1} parent=1 // pred_region
      %s59 = ssub.s32 18432, 18432
      %60 = vsyncadd [#allocation11], %s59
      %s61 = sshll.u32 [#allocation10], 4
      %s62 = int_to_ptr.vmem [resolvable:$true] %s61
      %67 = dma.hbm_to_vmem [thread:$0]  %s4, 18432, %s62, [#allocation11], 384, 384, 24
    $region21: #{net_forward.1} parent=1 // pred_fallthru
      _
    // Predicated region
    $region22: #{net_forward.1} parent=1 // pred_check
      _
    $region23: #{net_forward.1} parent=1 // pred_check_branch
      %69 = sbr.rel (0) target = $region25
    $region24: #{net_forward.1} parent=1 // pred_region
      %s71 = ssub.s32 48, 48
      %72 = vsyncadd [#allocation11], %s71
      %s74 = sshll.u32 [#allocation12], 4
      %s75 = int_to_ptr.vmem [resolvable:$true] %s74
      %77 = dma.hbm_to_vmem [thread:$0]  %s5, 48, %s75, [#allocation11]
    $region25: #{net_forward.1} parent=1 // pred_fallthru
      _
    // Predicated region
    $region26: #{net_forward.1} parent=1 // pred_check
      _
    $region27: #{net_forward.1} parent=1 // pred_check_branch
      %79 = sbr.rel (0) target = $region29
    $region28: #{net_forward.1} parent=1 // pred_region
      _
    $region29: #{net_forward.1} parent=1 // pred_fallthru
      _
    // Predicated region
    $region30: #{net_forward.1} parent=1 // pred_check
      _
    $region31: #{net_forward.1} parent=1 // pred_check_branch
      %81 = sbr.rel (0) target = $region33
    $region32: #{net_forward.1} parent=1 // pred_region
      %s83 = ssub.s32 16, 16
      %84 = vsyncadd [#allocation14], %s83
      %s86 = sshll.u32 [#allocation13], 4
      %s87 = int_to_ptr.vmem [resolvable:$true] %s86
      %89 = dma.hbm_to_vmem [thread:$0]  %s7, 16, %s87, [#allocation14]
    $region33: #{net_forward.1} parent=1 // pred_fallthru
      _
    // Predicated region
    $region34: #{net_forward.1} parent=1 // pred_check
      _
    $region35: #{net_forward.1} parent=1 // pred_check_branch
      %91 = sbr.rel (0) target = $region37
    $region36: #{net_forward.1} parent=1 // pred_region
      %92 = dma.done [#allocation5], 2048
    $region37: #{net_forward.1} parent=1 // pred_fallthru
      _
    // Predicated region
    $region38: #{net_forward.1} parent=1 // pred_check
      _
    $region39: #{net_forward.1} parent=1 // pred_check_branch
      %94 = sbr.rel (0) target = $region41
    $region40: #{net_forward.1} parent=1 // pred_region
      %95 = dma.done [#allocation8], 61440
    $region41: #{net_forward.1} parent=1 // pred_fallthru
      _
    // Predicated region
    $region42: #{net_forward.1} parent=1 // pred_check
      _
    $region43: #{net_forward.1} parent=1 // pred_check_branch
      %97 = sbr.rel (0) target = $region45
    $region44: #{net_forward.1} parent=1 // pred_region
      %98 = dma.done [#allocation8], 768
    $region45: #{net_forward.1} parent=1 // pred_fallthru
      _
    // Predicated region
    $region46: #{net_forward.1} parent=1 // pred_check
      _
    $region47: #{net_forward.1} parent=1 // pred_check_branch
      %100 = sbr.rel (0) target = $region49
    $region48: #{net_forward.1} parent=1 // pred_region
      %101 = dma.done [#allocation11], 18432
    $region49: #{net_forward.1} parent=1 // pred_fallthru
      _
    // Predicated region
    $region50: #{net_forward.1} parent=1 // pred_check
      _
    $region51: #{net_forward.1} parent=1 // pred_check_branch
      %103 = sbr.rel (0) target = $region53
    $region52: #{net_forward.1} parent=1 // pred_region
      %104 = dma.done [#allocation11], 48
    $region53: #{net_forward.1} parent=1 // pred_fallthru
      _
    // Predicated region
    $region54: #{net_forward.1} parent=1 // pred_check
      _
    $region55: #{net_forward.1} parent=1 // pred_check_branch
      %106 = sbr.rel (0) target = $region57
    $region56: #{net_forward.1} parent=1 // pred_region
      %107 = dma.done [#allocation14], 16
    $region57: #{net_forward.1} parent=1 // pred_fallthru
      _
    %v108 = vld [vmem:[#allocation4] sm:$0xff]
    %v109 = vld [vmem:[#allocation4 + $0x8] sm:$0xff]
    %v110 = vld [vmem:[#allocation4 + $0x10] sm:$0xff]
    %v111 = vld [vmem:[#allocation4 + $0x18] sm:$0xff]
    %v112 = vld [vmem:[#allocation4 + $0x20] sm:$0xff]
    %v113 = vld [vmem:[#allocation4 + $0x28] sm:$0xff]
    %v114 = vld [vmem:[#allocation4 + $0x30] sm:$0xff]
    %v115 = vld [vmem:[#allocation4 + $0x38] sm:$0xff]
    %v116 = vld [vmem:[#allocation4 + $0x40] sm:$0xff]
    %v117 = vld [vmem:[#allocation4 + $0x48] sm:$0xff]
    %v118 = vld [vmem:[#allocation4 + $0x50] sm:$0xff]
    %v119 = vld [vmem:[#allocation4 + $0x58] sm:$0xff]
    %v120 = vld [vmem:[#allocation4 + $0x60] sm:$0xff]
    %v121 = vld [vmem:[#allocation4 + $0x68] sm:$0xff]
    %v122 = vld [vmem:[#allocation4 + $0x70] sm:$0xff]
    %v123 = vld [vmem:[#allocation4 + $0x78] sm:$0xff]
    %v124 = vmul.f32 %v108, %v108
    %v125 = vmul.f32 %v109, %v109
    %v126 = vmul.f32 %v110, %v110
    %v127 = vmul.f32 %v111, %v111
    %v128 = vmul.f32 %v112, %v112
    %v129 = vmul.f32 %v113, %v113
    %v130 = vmul.f32 %v114, %v114
    %v131 = vmul.f32 %v115, %v115
    %v132 = vmul.f32 %v116, %v116
    %v133 = vmul.f32 %v117, %v117
    %v134 = vmul.f32 %v118, %v118
    %v135 = vmul.f32 %v119, %v119
    %v136 = vmul.f32 %v120, %v120
    %v137 = vmul.f32 %v121, %v121
    %v138 = vmul.f32 %v122, %v122
    %v139 = vmul.f32 %v123, %v123
    %140 = vadd.xlane.f32.xlu0 %v124
    %v141 = vpop.xlane.xlu0 %140
    %142 = vadd.xlane.f32.xlu0 %v125
    %v143 = vpop.xlane.xlu0 %142
    %144 = vadd.xlane.f32.xlu0 %v126
    %v145 = vpop.xlane.xlu0 %144
    %146 = vadd.xlane.f32.xlu0 %v127
    %v147 = vpop.xlane.xlu0 %146
    %148 = vadd.xlane.f32.xlu0 %v128
    %v149 = vpop.xlane.xlu0 %148
    %150 = vadd.xlane.f32.xlu0 %v129
    %v151 = vpop.xlane.xlu0 %150
    %152 = vadd.xlane.f32.xlu0 %v130
    %v153 = vpop.xlane.xlu0 %152
    %154 = vadd.xlane.f32.xlu0 %v131
    %v155 = vpop.xlane.xlu0 %154
    %156 = vadd.xlane.f32.xlu0 %v132
    %v157 = vpop.xlane.xlu0 %156
    %158 = vadd.xlane.f32.xlu0 %v133
    %v159 = vpop.xlane.xlu0 %158
    %160 = vadd.xlane.f32.xlu0 %v134
    %v161 = vpop.xlane.xlu0 %160
    %162 = vadd.xlane.f32.xlu0 %v135
    %v163 = vpop.xlane.xlu0 %162
    %164 = vadd.xlane.f32.xlu0 %v136
    %v165 = vpop.xlane.xlu0 %164
    %166 = vadd.xlane.f32.xlu0 %v137
    %v167 = vpop.xlane.xlu0 %166
    %168 = vadd.xlane.f32.xlu0 %v138
    %v169 = vpop.xlane.xlu0 %168
    %170 = vadd.xlane.f32.xlu0 %v139
    %v171 = vpop.xlane.xlu0 %170
    %v172 = vrsqrt.pop %v141
    %v173 = vmul.f32 %v141, %v172
    %vm174 = vcmp.eq.f32.partialorder %v141, inf
    %v175 = vsel %vm174, %v141, %v173
    %vm176 = vcmp.eq.f32.partialorder %v141, 0.0
    %v177 = vand.u32 %v141, 2147483648
    %v178 = vsel %vm176, %v177, %v175
    %v179 = vrsqrt.pop %v143
    %v180 = vmul.f32 %v143, %v179
    %vm181 = vcmp.eq.f32.partialorder %v143, inf
    %v182 = vsel %vm181, %v143, %v180
    %vm183 = vcmp.eq.f32.partialorder %v143, 0.0
    %v184 = vand.u32 %v143, 2147483648
    %v185 = vsel %vm183, %v184, %v182
    %v186 = vrsqrt.pop %v145
    %v187 = vmul.f32 %v145, %v186
    %vm188 = vcmp.eq.f32.partialorder %v145, inf
    %v189 = vsel %vm188, %v145, %v187
    %vm190 = vcmp.eq.f32.partialorder %v145, 0.0
    %v191 = vand.u32 %v145, 2147483648
    %v192 = vsel %vm190, %v191, %v189
    %v193 = vrsqrt.pop %v147
    %v194 = vmul.f32 %v147, %v193
    %vm195 = vcmp.eq.f32.partialorder %v147, inf
    %v196 = vsel %vm195, %v147, %v194
    %vm197 = vcmp.eq.f32.partialorder %v147, 0.0
    %v198 = vand.u32 %v147, 2147483648
    %v199 = vsel %vm197, %v198, %v196
    %v200 = vrsqrt.pop %v149
    %v201 = vmul.f32 %v149, %v200
    %vm202 = vcmp.eq.f32.partialorder %v149, inf
    %v203 = vsel %vm202, %v149, %v201
    %vm204 = vcmp.eq.f32.partialorder %v149, 0.0
    %v205 = vand.u32 %v149, 2147483648
    %v206 = vsel %vm204, %v205, %v203
    %v207 = vrsqrt.pop %v151
    %v208 = vmul.f32 %v151, %v207
    %vm209 = vcmp.eq.f32.partialorder %v151, inf
    %v210 = vsel %vm209, %v151, %v208
    %vm211 = vcmp.eq.f32.partialorder %v151, 0.0
    %v212 = vand.u32 %v151, 2147483648
    %v213 = vsel %vm211, %v212, %v210
    %v214 = vrsqrt.pop %v153
    %v215 = vmul.f32 %v153, %v214
    %vm216 = vcmp.eq.f32.partialorder %v153, inf
    %v217 = vsel %vm216, %v153, %v215
    %vm218 = vcmp.eq.f32.partialorder %v153, 0.0
    %v219 = vand.u32 %v153, 2147483648
    %v220 = vsel %vm218, %v219, %v217
    %v221 = vrsqrt.pop %v155
    %v222 = vmul.f32 %v155, %v221
    %vm223 = vcmp.eq.f32.partialorder %v155, inf
    %v224 = vsel %vm223, %v155, %v222
    %vm225 = vcmp.eq.f32.partialorder %v155, 0.0
    %v226 = vand.u32 %v155, 2147483648
    %v227 = vsel %vm225, %v226, %v224
    %v228 = vrsqrt.pop %v157
    %v229 = vmul.f32 %v157, %v228
    %vm230 = vcmp.eq.f32.partialorder %v157, inf
    %v231 = vsel %vm230, %v157, %v229
    %vm232 = vcmp.eq.f32.partialorder %v157, 0.0
    %v233 = vand.u32 %v157, 2147483648
    %v234 = vsel %vm232, %v233, %v231
    %v235 = vrsqrt.pop %v159
    %v236 = vmul.f32 %v159, %v235
    %vm237 = vcmp.eq.f32.partialorder %v159, inf
    %v238 = vsel %vm237, %v159, %v236
    %vm239 = vcmp.eq.f32.partialorder %v159, 0.0
    %v240 = vand.u32 %v159, 2147483648
    %v241 = vsel %vm239, %v240, %v238
    %v242 = vrsqrt.pop %v161
    %v243 = vmul.f32 %v161, %v242
    %vm244 = vcmp.eq.f32.partialorder %v161, inf
    %v245 = vsel %vm244, %v161, %v243
    %vm246 = vcmp.eq.f32.partialorder %v161, 0.0
    %v247 = vand.u32 %v161, 2147483648
    %v248 = vsel %vm246, %v247, %v245
    %v249 = vrsqrt.pop %v163
    %v250 = vmul.f32 %v163, %v249
    %vm251 = vcmp.eq.f32.partialorder %v163, inf
    %v252 = vsel %vm251, %v163, %v250
    %vm253 = vcmp.eq.f32.partialorder %v163, 0.0
    %v254 = vand.u32 %v163, 2147483648
    %v255 = vsel %vm253, %v254, %v252
    %v256 = vrsqrt.pop %v165
    %v257 = vmul.f32 %v165, %v256
    %vm258 = vcmp.eq.f32.partialorder %v165, inf
    %v259 = vsel %vm258, %v165, %v257
    %vm260 = vcmp.eq.f32.partialorder %v165, 0.0
    %v261 = vand.u32 %v165, 2147483648
    %v262 = vsel %vm260, %v261, %v259
    %v263 = vrsqrt.pop %v167
    %v264 = vmul.f32 %v167, %v263
    %vm265 = vcmp.eq.f32.partialorder %v167, inf
    %v266 = vsel %vm265, %v167, %v264
    %vm267 = vcmp.eq.f32.partialorder %v167, 0.0
    %v268 = vand.u32 %v167, 2147483648
    %v269 = vsel %vm267, %v268, %v266
    %v270 = vrsqrt.pop %v169
    %v271 = vmul.f32 %v169, %v270
    %vm272 = vcmp.eq.f32.partialorder %v169, inf
    %v273 = vsel %vm272, %v169, %v271
    %vm274 = vcmp.eq.f32.partialorder %v169, 0.0
    %v275 = vand.u32 %v169, 2147483648
    %v276 = vsel %vm274, %v275, %v273
    %v277 = vrsqrt.pop %v171
    %v278 = vmul.f32 %v171, %v277
    %vm279 = vcmp.eq.f32.partialorder %v171, inf
    %v280 = vsel %vm279, %v171, %v278
    %vm281 = vcmp.eq.f32.partialorder %v171, 0.0
    %v282 = vand.u32 %v171, 2147483648
    %v283 = vsel %vm281, %v282, %v280
    %vm284 = vcmp.gt.f32.partialorder %v178, 5.0
    %vm285 = vcmp.gt.f32.partialorder %v185, 5.0
    %vm286 = vcmp.gt.f32.partialorder %v192, 5.0
    %vm287 = vcmp.gt.f32.partialorder %v199, 5.0
    %vm288 = vcmp.gt.f32.partialorder %v206, 5.0
    %vm289 = vcmp.gt.f32.partialorder %v213, 5.0
    %vm290 = vcmp.gt.f32.partialorder %v220, 5.0
    %vm291 = vcmp.gt.f32.partialorder %v227, 5.0
    %vm292 = vcmp.gt.f32.partialorder %v234, 5.0
    %vm293 = vcmp.gt.f32.partialorder %v241, 5.0
    %vm294 = vcmp.gt.f32.partialorder %v248, 5.0
    %vm295 = vcmp.gt.f32.partialorder %v255, 5.0
    %vm296 = vcmp.gt.f32.partialorder %v262, 5.0
    %vm297 = vcmp.gt.f32.partialorder %v269, 5.0
    %vm298 = vcmp.gt.f32.partialorder %v276, 5.0
    %vm299 = vcmp.gt.f32.partialorder %v283, 5.0
    %v300 = vadd.f32 %v178, 1e-07
    %v301 = vadd.f32 %v185, 1e-07
    %v302 = vadd.f32 %v192, 1e-07
    %v303 = vadd.f32 %v199, 1e-07
    %v304 = vadd.f32 %v206, 1e-07
    %v305 = vadd.f32 %v213, 1e-07
    %v306 = vadd.f32 %v220, 1e-07
    %v307 = vadd.f32 %v227, 1e-07
    %v308 = vadd.f32 %v234, 1e-07
    %v309 = vadd.f32 %v241, 1e-07
    %v310 = vadd.f32 %v248, 1e-07
    %v311 = vadd.f32 %v255, 1e-07
    %v312 = vadd.f32 %v262, 1e-07
    %v313 = vadd.f32 %v269, 1e-07
    %v314 = vadd.f32 %v276, 1e-07
    %v315 = vadd.f32 %v283, 1e-07
    %v316 = vrcp.pop %v300
    %v317 = vmul.f32 5.0, %v316
    %v318 = vrcp.pop %v301
    %v319 = vmul.f32 5.0, %v318
    %v320 = vrcp.pop %v302
    %v321 = vmul.f32 5.0, %v320
    %v322 = vrcp.pop %v303
    %v323 = vmul.f32 5.0, %v322
    %v324 = vrcp.pop %v304
    %v325 = vmul.f32 5.0, %v324
    %v326 = vrcp.pop %v305
    %v327 = vmul.f32 5.0, %v326
    %v328 = vrcp.pop %v306
    %v329 = vmul.f32 5.0, %v328
    %v330 = vrcp.pop %v307
    %v331 = vmul.f32 5.0, %v330
    %v332 = vrcp.pop %v308
    %v333 = vmul.f32 5.0, %v332
    %v334 = vrcp.pop %v309
    %v335 = vmul.f32 5.0, %v334
    %v336 = vrcp.pop %v310
    %v337 = vmul.f32 5.0, %v336
    %v338 = vrcp.pop %v311
    %v339 = vmul.f32 5.0, %v338
    %v340 = vrcp.pop %v312
    %v341 = vmul.f32 5.0, %v340
    %v342 = vrcp.pop %v313
    %v343 = vmul.f32 5.0, %v342
    %v344 = vrcp.pop %v314
    %v345 = vmul.f32 5.0, %v344
    %v346 = vrcp.pop %v315
    %v347 = vmul.f32 5.0, %v346
    %v348 = vsel %vm284, %v317, 1.0
    %v349 = vsel %vm285, %v319, 1.0
    %v350 = vsel %vm286, %v321, 1.0
    %v351 = vsel %vm287, %v323, 1.0
    %v352 = vsel %vm288, %v325, 1.0
    %v353 = vsel %vm289, %v327, 1.0
    %v354 = vsel %vm290, %v329, 1.0
    %v355 = vsel %vm291, %v331, 1.0
    %v356 = vsel %vm292, %v333, 1.0
    %v357 = vsel %vm293, %v335, 1.0
    %v358 = vsel %vm294, %v337, 1.0
    %v359 = vsel %vm295, %v339, 1.0
    %v360 = vsel %vm296, %v341, 1.0
    %v361 = vsel %vm297, %v343, 1.0
    %v362 = vsel %vm298, %v345, 1.0
    %v363 = vsel %vm299, %v347, 1.0
    %v364 = vmul.f32 %v108, %v348
    %v365 = vmul.f32 %v109, %v349
    %v366 = vmul.f32 %v110, %v350
    %v367 = vmul.f32 %v111, %v351
    %v368 = vmul.f32 %v112, %v352
    %v369 = vmul.f32 %v113, %v353
    %v370 = vmul.f32 %v114, %v354
    %v371 = vmul.f32 %v115, %v355
    %v372 = vmul.f32 %v116, %v356
    %v373 = vmul.f32 %v117, %v357
    %v374 = vmul.f32 %v118, %v358
    %v375 = vmul.f32 %v119, %v359
    %v376 = vmul.f32 %v120, %v360
    %v377 = vmul.f32 %v121, %v361
    %v378 = vmul.f32 %v122, %v362
    %v379 = vmul.f32 %v123, %v363
    %v380 = vld [vmem:[%s0] sm:$0xff]
    %v381 = vld [vmem:[%s0 + $0x8] sm:$0xff]
    %v382 = vld [vmem:[%s0 + $0x10] sm:$0xff]
    %v383 = vld [vmem:[%s0 + $0x18] sm:$0xff]
    %v384 = vlaneseq
    %v385 = vand.u32 %v384, 127
    %386 = vset.pattern.permute.xlu0 0
    %387 = vperm.xlu0 %386, %v380
    %v388 = vpop.permute.xlu0 %387
    %389 = vset.pattern.permute.xlu0 0
    %390 = vperm.xlu0 %389, %v381
    %v391 = vpop.permute.xlu0 %390
    %392 = vset.pattern.permute.xlu0 0
    %393 = vperm.xlu0 %392, %v382
    %v394 = vpop.permute.xlu0 %393
    %395 = vset.pattern.permute.xlu0 0
    %396 = vperm.xlu0 %395, %v383
    %v397 = vpop.permute.xlu0 %396
    %vm398 = vcmp.eq.s32.totalorder %v388, %v385
    %vm399 = vcmp.eq.s32.totalorder %v391, %v385
    %vm400 = vcmp.eq.s32.totalorder %v394, %v385
    %vm401 = vcmp.eq.s32.totalorder %v397, %v385
    %v402 = vsel %vm398, 1, 0
    %v403 = vsel %vm399, 1, 0
    %v404 = vsel %vm400, 1, 0
    %v405 = vsel %vm401, 1, 0
    %v406 = vcvt.s32.f32 %v402
    %v407 = vcvt.s32.f32 %v403
    %v408 = vcvt.s32.f32 %v404
    %v409 = vcvt.s32.f32 %v405
    %410 = vmatprep.subr.mxu0 0.0
    %411 = vmatpush1.msra.mxu0 %v364
    %412 = vmatprep.subr.mxu0 0.0
    %413 = vmatpush1.msra.mxu0 %v365
    %414 = vmatprep.subr.mxu0 0.0
    %415 = vmatpush1.msra.mxu0 %v366
    %416 = vmatprep.subr.mxu0 0.0
    %417 = vmatpush1.msra.mxu0 %v367
    %418 = vmatprep.subr.mxu0 0.0
    %419 = vmatpush1.msra.mxu0 %v368
    %420 = vmatprep.subr.mxu0 0.0
    %421 = vmatpush1.msra.mxu0 %v369
    %422 = vmatprep.subr.mxu0 0.0
    %423 = vmatpush1.msra.mxu0 %v370
    %424 = vmatprep.subr.mxu0 0.0
    %425 = vmatpush1.msra.mxu0 %v371
    %426 = vmatprep.subr.mxu0 0.0
    %427 = vmatpush1.msra.mxu0 %v372
    %428 = vmatprep.subr.mxu0 0.0
    %429 = vmatpush1.msra.mxu0 %v373
    %430 = vmatprep.subr.mxu0 0.0
    %431 = vmatpush1.msra.mxu0 %v374
    %432 = vmatprep.subr.mxu0 0.0
    %433 = vmatpush1.msra.mxu0 %v375
    %434 = vmatprep.subr.mxu0 0.0
    %435 = vmatpush1.msra.mxu0 %v376
    %436 = vmatprep.subr.mxu0 0.0
    %437 = vmatpush1.msra.mxu0 %v377
    %438 = vmatprep.subr.mxu0 0.0
    %439 = vmatpush1.msra.mxu0 %v378
    %440 = vmatprep.subr.mxu0 0.0
    %441 = vmatpush1.msra.mxu0 %v379
    %442 = vmatprep.subr.mxu0 0.0
    %443 = vmatpush1.msra.mxu0 0.0
    %444 = vmatprep.subr.mxu0 0.0
    %445 = vmatpush1.msra.mxu0 0.0
    %446 = vmatprep.subr.mxu0 0.0
    %447 = vmatpush1.msra.mxu0 0.0
    %448 = vmatprep.subr.mxu0 0.0
    %449 = vmatpush1.msra.mxu0 0.0
    %450 = vmatprep.subr.mxu0 0.0
    %451 = vmatpush1.msra.mxu0 0.0
    %452 = vmatprep.subr.mxu0 0.0
    %453 = vmatpush1.msra.mxu0 0.0
    %454 = vmatprep.subr.mxu0 0.0
    %455 = vmatpush1.msra.mxu0 0.0
    %456 = vmatprep.subr.mxu0 0.0
    %457 = vmatpush1.msra.mxu0 0.0
    %458 = vmatprep.subr.mxu0 0.0
    %459 = vmatpush1.msra.mxu0 0.0
    %460 = vmatprep.subr.mxu0 0.0
    %461 = vmatpush1.msra.mxu0 0.0
    %462 = vmatprep.subr.mxu0 0.0
    %463 = vmatpush1.msra.mxu0 0.0
    %464 = vmatprep.subr.mxu0 0.0
    %465 = vmatpush1.msra.mxu0 0.0
    %466 = vmatprep.subr.mxu0 0.0
    %467 = vmatpush1.msra.mxu0 0.0
    %468 = vmatprep.subr.mxu0 0.0
    %469 = vmatpush1.msra.mxu0 0.0
    %470 = vmatprep.subr.mxu0 0.0
    %471 = vmatpush1.msra.mxu0 0.0
    %472 = vmatprep.subr.mxu0 0.0
    %473 = vmatpush1.msra.mxu0 0.0
    %474 = vmatprep.mubr.f32.mxu0 0.0
    %475 = vmatmul.mubr.f32.gmra.mrb[0].mxu0 %v406
    %v476 = vpop.f32.mrb[0].mxu0
    %v477 = vadd.f32 0.0, %v476
    %v478 = vpop.f32.mrb[0].mxu0
    %479 = vmatprep.mubr.f32.mxu0 0.0
    %480 = vmatmul.mubr.f32.gmra.mrb[0].mxu0 %v407
    %v481 = vpop.f32.mrb[0].mxu0
    %v482 = vadd.f32 0.0, %v481
    %v483 = vpop.f32.mrb[0].mxu0
    %484 = vmatprep.mubr.f32.mxu0 0.0
    %485 = vmatmul.mubr.f32.gmra.mrb[0].mxu0 %v408
    %v486 = vpop.f32.mrb[0].mxu0
    %v487 = vadd.f32 0.0, %v486
    %v488 = vpop.f32.mrb[0].mxu0
    %489 = vmatprep.mubr.f32.mxu0 0.0
    %490 = vmatmul.mubr.f32.gmra.mrb[0].mxu0 %v409
    %v491 = vpop.f32.mrb[0].mxu0
    %v492 = vadd.f32 0.0, %v491
    %v493 = vpop.f32.mrb[0].mxu0
    %494 = vdwg.mxu0
    %495 = vst [vmem:[#allocation2] sm:$0xff] %v477
    %496 = vst [vmem:[#allocation2 + $0x8] sm:$0xff] %v482
    %497 = vst [vmem:[#allocation2 + $0x10] sm:$0xff] %v487
    %498 = vst [vmem:[#allocation2 + $0x18] sm:$0xff] %v492
    %499 = vst [vmem:[#allocation2 + $0x20] sm:$0xff] 0.0
    %500 = vst [vmem:[#allocation2 + $0x28] sm:$0x1] 0.0
    %v501 = vld [vmem:[#allocation7] sm:$0xff]
    %v502 = vld [vmem:[#allocation7 + $0x8] sm:$0xff]
    %v503 = vld [vmem:[#allocation7 + $0x10] sm:$0xff]
    %v504 = vld [vmem:[#allocation7 + $0x18] sm:$0xff]
    %v505 = vld [vmem:[#allocation7 + $0x20] sm:$0xff]
    %v506 = vld [vmem:[#allocation7 + $0x28] sm:$0xff]
    %v507 = vld [vmem:[#allocation7 + $0x30] sm:$0xff]
    %v508 = vld [vmem:[#allocation7 + $0x38] sm:$0xff]
    %v509 = vld [vmem:[#allocation7 + $0x40] sm:$0xff]
    %v510 = vld [vmem:[#allocation7 + $0x48] sm:$0xff]
    %v511 = vld [vmem:[#allocation7 + $0x50] sm:$0xff]
    %v512 = vld [vmem:[#allocation7 + $0x58] sm:$0xff]
    %v513 = vld [vmem:[#allocation7 + $0x60] sm:$0xff]
    %v514 = vld [vmem:[#allocation7 + $0x68] sm:$0xff]
    %v515 = vld [vmem:[#allocation7 + $0x70] sm:$0xff]
    %v516 = vld [vmem:[#allocation7 + $0x78] sm:$0xff]
    %v517 = vld [vmem:[#allocation7 + $0x80] sm:$0xff]
    %v518 = vld [vmem:[#allocation7 + $0x88] sm:$0xff]
    %v519 = vld [vmem:[#allocation7 + $0x90] sm:$0xff]
    %v520 = vld [vmem:[#allocation7 + $0x98] sm:$0xff]
    %v521 = vld [vmem:[#allocation7 + $0xa0] sm:$0xff]
    %v522 = vld [vmem:[#allocation7 + $0xa8] sm:$0xff]
    %v523 = vld [vmem:[#allocation7 + $0xb0] sm:$0xff]
    %v524 = vld [vmem:[#allocation7 + $0xb8] sm:$0xff]
    %v525 = vld [vmem:[#allocation7 + $0xc0] sm:$0xff]
    %v526 = vld [vmem:[#allocation7 + $0xc8] sm:$0xff]
    %v527 = vld [vmem:[#allocation7 + $0xd0] sm:$0xff]
    %v528 = vld [vmem:[#allocation7 + $0xd8] sm:$0xff]
    %v529 = vld [vmem:[#allocation7 + $0xe0] sm:$0xff]
    %v530 = vld [vmem:[#allocation7 + $0xe8] sm:$0xff]
    %v531 = vld [vmem:[#allocation7 + $0xf0] sm:$0xff]
    %v532 = vld [vmem:[#allocation7 + $0xf8] sm:$0xff]
    %v533 = vld [vmem:[#allocation7 + $0x100] sm:$0xff]
    %v534 = vld [vmem:[#allocation7 + $0x108] sm:$0xff]
    %v535 = vld [vmem:[#allocation7 + $0x110] sm:$0xff]
    %v536 = vld [vmem:[#allocation7 + $0x118] sm:$0xff]
    %v537 = vld [vmem:[#allocation7 + $0x120] sm:$0xff]
    %v538 = vld [vmem:[#allocation7 + $0x128] sm:$0xff]
    %v539 = vld [vmem:[#allocation7 + $0x130] sm:$0xff]
    %v540 = vld [vmem:[#allocation7 + $0x138] sm:$0xff]
    %v541 = vld [vmem:[#allocation7 + $0x140] sm:$0xff]
    %v542 = vld [vmem:[#allocation7 + $0x148] sm:$0xff]
    %v543 = vld [vmem:[#allocation7 + $0x150] sm:$0xff]
    %v544 = vld [vmem:[#allocation7 + $0x158] sm:$0xff]
    %v545 = vld [vmem:[#allocation7 + $0x160] sm:$0xff]
    %v546 = vld [vmem:[#allocation7 + $0x168] sm:$0xff]
    %v547 = vld [vmem:[#allocation7 + $0x170] sm:$0xff]
    %v548 = vld [vmem:[#allocation7 + $0x178] sm:$0xff]
    %v549 = vld [vmem:[#allocation2 + $0x1] sm:$0xff]
    %v550 = vld [vmem:[#allocation2 + $0x9] sm:$0xff]
    %v551 = vld [vmem:[#allocation2 + $0x11] sm:$0xff]
    %v552 = vld [vmem:[#allocation2 + $0x19] sm:$0xff]
    %s553 = scalar_lea.vmem [#allocation7], 384
    %v554 = vld [vmem:[%s553] sm:$0xff]
    %v555 = vld [vmem:[%s553 + $0x8] sm:$0xff]
    %v556 = vld [vmem:[%s553 + $0x10] sm:$0xff]
    %v557 = vld [vmem:[%s553 + $0x18] sm:$0xff]
    %v558 = vld [vmem:[%s553 + $0x20] sm:$0xff]
    %v559 = vld [vmem:[%s553 + $0x28] sm:$0xff]
    %v560 = vld [vmem:[%s553 + $0x30] sm:$0xff]
    %v561 = vld [vmem:[%s553 + $0x38] sm:$0xff]
    %v562 = vld [vmem:[%s553 + $0x40] sm:$0xff]
    %v563 = vld [vmem:[%s553 + $0x48] sm:$0xff]
    %v564 = vld [vmem:[%s553 + $0x50] sm:$0xff]
    %v565 = vld [vmem:[%s553 + $0x58] sm:$0xff]
    %v566 = vld [vmem:[%s553 + $0x60] sm:$0xff]
    %v567 = vld [vmem:[%s553 + $0x68] sm:$0xff]
    %v568 = vld [vmem:[%s553 + $0x70] sm:$0xff]
    %v569 = vld [vmem:[%s553 + $0x78] sm:$0xff]
    %v570 = vld [vmem:[%s553 + $0x80] sm:$0xff]
    %v571 = vld [vmem:[%s553 + $0x88] sm:$0xff]
    %v572 = vld [vmem:[%s553 + $0x90] sm:$0xff]
    %v573 = vld [vmem:[%s553 + $0x98] sm:$0xff]
    %v574 = vld [vmem:[%s553 + $0xa0] sm:$0xff]
    %v575 = vld [vmem:[%s553 + $0xa8] sm:$0xff]
    %v576 = vld [vmem:[%s553 + $0xb0] sm:$0xff]
    %v577 = vld [vmem:[%s553 + $0xb8] sm:$0xff]
    %v578 = vld [vmem:[%s553 + $0xc0] sm:$0xff]
    %v579 = vld [vmem:[%s553 + $0xc8] sm:$0xff]
    %v580 = vld [vmem:[%s553 + $0xd0] sm:$0xff]
    %v581 = vld [vmem:[%s553 + $0xd8] sm:$0xff]
    %v582 = vld [vmem:[%s553 + $0xe0] sm:$0xff]
    %v583 = vld [vmem:[%s553 + $0xe8] sm:$0xff]
    %v584 = vld [vmem:[%s553 + $0xf0] sm:$0xff]
    %v585 = vld [vmem:[%s553 + $0xf8] sm:$0xff]
    %v586 = vld [vmem:[%s553 + $0x100] sm:$0xff]
    %v587 = vld [vmem:[%s553 + $0x108] sm:$0xff]
    %v588 = vld [vmem:[%s553 + $0x110] sm:$0xff]
    %v589 = vld [vmem:[%s553 + $0x118] sm:$0xff]
    %v590 = vld [vmem:[%s553 + $0x120] sm:$0xff]
    %v591 = vld [vmem:[%s553 + $0x128] sm:$0xff]
    %v592 = vld [vmem:[%s553 + $0x130] sm:$0xff]
    %v593 = vld [vmem:[%s553 + $0x138] sm:$0xff]
    %v594 = vld [vmem:[%s553 + $0x140] sm:$0xff]
    %v595 = vld [vmem:[%s553 + $0x148] sm:$0xff]
    %v596 = vld [vmem:[%s553 + $0x150] sm:$0xff]
    %v597 = vld [vmem:[%s553 + $0x158] sm:$0xff]
    %v598 = vld [vmem:[%s553 + $0x160] sm:$0xff]
    %v599 = vld [vmem:[%s553 + $0x168] sm:$0xff]
    %v600 = vld [vmem:[%s553 + $0x170] sm:$0xff]
    %v601 = vld [vmem:[%s553 + $0x178] sm:$0xff]
    %602 = vmatprep.subr.mxu0 %v555
    %603 = vmatpush1.msra.mxu0 %v554
    %604 = vmatprep.subr.mxu0 %v558
    %605 = vmatpush1.msra.mxu0 %v557
    %606 = vmatprep.subr.mxu0 %v561
    %607 = vmatpush1.msra.mxu0 %v560
    %608 = vmatprep.subr.mxu0 %v564
    %609 = vmatpush1.msra.mxu0 %v563
    %610 = vmatprep.subr.mxu0 %v567
    %611 = vmatpush1.msra.mxu0 %v566
    %612 = vmatprep.subr.mxu0 %v570
    %613 = vmatpush1.msra.mxu0 %v569
    %614 = vmatprep.subr.mxu0 %v573
    %615 = vmatpush1.msra.mxu0 %v572
    %616 = vmatprep.subr.mxu0 %v576
    %617 = vmatpush1.msra.mxu0 %v575
    %618 = vmatprep.subr.mxu0 %v579
    %619 = vmatpush1.msra.mxu0 %v578
    %620 = vmatprep.subr.mxu0 %v582
    %621 = vmatpush1.msra.mxu0 %v581
    %622 = vmatprep.subr.mxu0 %v585
    %623 = vmatpush1.msra.mxu0 %v584
    %624 = vmatprep.subr.mxu0 %v588
    %625 = vmatpush1.msra.mxu0 %v587
    %626 = vmatprep.subr.mxu0 %v591
    %627 = vmatpush1.msra.mxu0 %v590
    %628 = vmatprep.subr.mxu0 %v594
    %629 = vmatpush1.msra.mxu0 %v593
    %630 = vmatprep.subr.mxu0 %v597
    %631 = vmatpush1.msra.mxu0 %v596
    %632 = vmatprep.subr.mxu0 %v600
    %633 = vmatpush1.msra.mxu0 %v599
    %634 = vmatprep.subr.mxu0 0.0
    %635 = vmatpush1.msra.mxu0 0.0
    %636 = vmatprep.subr.mxu0 0.0
    %637 = vmatpush1.msra.mxu0 0.0
    %638 = vmatprep.subr.mxu0 0.0
    %639 = vmatpush1.msra.mxu0 0.0
    %640 = vmatprep.subr.mxu0 0.0
    %641 = vmatpush1.msra.mxu0 0.0
    %642 = vmatprep.subr.mxu0 0.0
    %643 = vmatpush1.msra.mxu0 0.0
    %644 = vmatprep.subr.mxu0 0.0
    %645 = vmatpush1.msra.mxu0 0.0
    %646 = vmatprep.subr.mxu0 0.0
    %647 = vmatpush1.msra.mxu0 0.0
    %648 = vmatprep.subr.mxu0 0.0
    %649 = vmatpush1.msra.mxu0 0.0
    %650 = vmatprep.subr.mxu0 0.0
    %651 = vmatpush1.msra.mxu0 0.0
    %652 = vmatprep.subr.mxu0 0.0
    %653 = vmatpush1.msra.mxu0 0.0
    %654 = vmatprep.subr.mxu0 0.0
    %655 = vmatpush1.msra.mxu0 0.0
    %656 = vmatprep.subr.mxu0 0.0
    %657 = vmatpush1.msra.mxu0 0.0
    %658 = vmatprep.subr.mxu0 0.0
    %659 = vmatpush1.msra.mxu0 0.0
    %660 = vmatprep.subr.mxu0 0.0
    %661 = vmatpush1.msra.mxu0 0.0
    %662 = vmatprep.subr.mxu0 0.0
    %663 = vmatpush1.msra.mxu0 0.0
    %664 = vmatprep.subr.mxu0 0.0
    %665 = vmatpush1.msra.mxu0 0.0
    %666 = vmatprep.mubr.f32.mxu0 0.0
    %667 = vmatmul.mubr.f32.gmra.mrb[0].mxu0 %v549
    %v668 = vpop.f32.mrb[0].mxu0
    %v669 = vadd.f32 0.0, %v668
    %v670 = vpop.f32.mrb[0].mxu0
    %v671 = vadd.f32 0.0, %v670
    %672 = vmatprep.mubr.f32.mxu0 0.0
    %673 = vmatmul.mubr.f32.gmra.mrb[0].mxu0 %v550
    %v674 = vpop.f32.mrb[0].mxu0
    %v675 = vadd.f32 0.0, %v674
    %v676 = vpop.f32.mrb[0].mxu0
    %v677 = vadd.f32 0.0, %v676
    %678 = vmatprep.mubr.f32.mxu0 0.0
    %679 = vmatmul.mubr.f32.gmra.mrb[0].mxu0 %v551
    %v680 = vpop.f32.mrb[0].mxu0
    %v681 = vadd.f32 0.0, %v680
    %v682 = vpop.f32.mrb[0].mxu0
    %v683 = vadd.f32 0.0, %v682
    %684 = vmatprep.mubr.f32.mxu0 0.0
    %685 = vmatmul.mubr.f32.gmra.mrb[0].mxu0 %v552
    %v686 = vpop.f32.mrb[0].mxu0
    %v687 = vadd.f32 0.0, %v686
    %v688 = vpop.f32.mrb[0].mxu0
    %v689 = vadd.f32 0.0, %v688
    %690 = vdwg.mxu0
    %691 = vmatprep.subr.mxu0 0.0
    %692 = vmatpush1.msra.mxu0 %v556
    %693 = vmatprep.subr.mxu0 0.0
    %694 = vmatpush1.msra.mxu0 %v559
    %695 = vmatprep.subr.mxu0 0.0
    %696 = vmatpush1.msra.mxu0 %v562
    %697 = vmatprep.subr.mxu0 0.0
    %698 = vmatpush1.msra.mxu0 %v565
    %699 = vmatprep.subr.mxu0 0.0
    %700 = vmatpush1.msra.mxu0 %v568
    %701 = vmatprep.subr.mxu0 0.0
    %702 = vmatpush1.msra.mxu0 %v571
    %703 = vmatprep.subr.mxu0 0.0
    %704 = vmatpush1.msra.mxu0 %v574
    %705 = vmatprep.subr.mxu0 0.0
    %706 = vmatpush1.msra.mxu0 %v577
    %707 = vmatprep.subr.mxu0 0.0
    %708 = vmatpush1.msra.mxu0 %v580
    %709 = vmatprep.subr.mxu0 0.0
    %710 = vmatpush1.msra.mxu0 %v583
    %711 = vmatprep.subr.mxu0 0.0
    %712 = vmatpush1.msra.mxu0 %v586
    %713 = vmatprep.subr.mxu0 0.0
    %714 = vmatpush1.msra.mxu0 %v589
    %715 = vmatprep.subr.mxu0 0.0
    %716 = vmatpush1.msra.mxu0 %v592
    %717 = vmatprep.subr.mxu0 0.0
    %718 = vmatpush1.msra.mxu0 %v595
    %719 = vmatprep.subr.mxu0 0.0
    %720 = vmatpush1.msra.mxu0 %v598
    %721 = vmatprep.subr.mxu0 0.0
    %722 = vmatpush1.msra.mxu0 %v601
    %723 = vmatprep.subr.mxu0 0.0
    %724 = vmatpush1.msra.mxu0 0.0
    %725 = vmatprep.subr.mxu0 0.0
    %726 = vmatpush1.msra.mxu0 0.0
    %727 = vmatprep.subr.mxu0 0.0
    %728 = vmatpush1.msra.mxu0 0.0
    %729 = vmatprep.subr.mxu0 0.0
    %730 = vmatpush1.msra.mxu0 0.0
    %731 = vmatprep.subr.mxu0 0.0
    %732 = vmatpush1.msra.mxu0 0.0
    %733 = vmatprep.subr.mxu0 0.0
    %734 = vmatpush1.msra.mxu0 0.0
    %735 = vmatprep.subr.mxu0 0.0
    %736 = vmatpush1.msra.mxu0 0.0
    %737 = vmatprep.subr.mxu0 0.0
    %738 = vmatpush1.msra.mxu0 0.0
    %739 = vmatprep.subr.mxu0 0.0
    %740 = vmatpush1.msra.mxu0 0.0
    %741 = vmatprep.subr.mxu0 0.0
    %742 = vmatpush1.msra.mxu0 0.0
    %743 = vmatprep.subr.mxu0 0.0
    %744 = vmatpush1.msra.mxu0 0.0
    %745 = vmatprep.subr.mxu0 0.0
    %746 = vmatpush1.msra.mxu0 0.0
    %747 = vmatprep.subr.mxu0 0.0
    %748 = vmatpush1.msra.mxu0 0.0
    %749 = vmatprep.subr.mxu0 0.0
    %750 = vmatpush1.msra.mxu0 0.0
    %751 = vmatprep.subr.mxu0 0.0
    %752 = vmatpush1.msra.mxu0 0.0
    %753 = vmatprep.subr.mxu0 0.0
    %754 = vmatpush1.msra.mxu0 0.0
    %755 = vmatprep.mubr.f32.mxu0 0.0
    %756 = vmatmul.mubr.f32.gmra.mrb[0].mxu0 %v549
    %v757 = vpop.f32.mrb[0].mxu0
    %v758 = vadd.f32 0.0, %v757
    %v759 = vpop.f32.mrb[0].mxu0
    %760 = vmatprep.mubr.f32.mxu0 0.0
    %761 = vmatmul.mubr.f32.gmra.mrb[0].mxu0 %v550
    %v762 = vpop.f32.mrb[0].mxu0
    %v763 = vadd.f32 0.0, %v762
    %v764 = vpop.f32.mrb[0].mxu0
    %765 = vmatprep.mubr.f32.mxu0 0.0
    %766 = vmatmul.mubr.f32.gmra.mrb[0].mxu0 %v551
    %v767 = vpop.f32.mrb[0].mxu0
    %v768 = vadd.f32 0.0, %v767
    %v769 = vpop.f32.mrb[0].mxu0
    %770 = vmatprep.mubr.f32.mxu0 0.0
    %771 = vmatmul.mubr.f32.gmra.mrb[0].mxu0 %v552
    %v772 = vpop.f32.mrb[0].mxu0
    %v773 = vadd.f32 0.0, %v772
    %v774 = vpop.f32.mrb[0].mxu0
    %775 = vdwg.mxu0
    %776 = vmatprep.subr.mxu0 %v502
    %777 = vmatpush1.msra.mxu0 %v501
    %778 = vmatprep.subr.mxu0 %v505
    %779 = vmatpush1.msra.mxu0 %v504
    %780 = vmatprep.subr.mxu0 %v508
    %781 = vmatpush1.msra.mxu0 %v507
    %782 = vmatprep.subr.mxu0 %v511
    %783 = vmatpush1.msra.mxu0 %v510
    %784 = vmatprep.subr.mxu0 %v514
    %785 = vmatpush1.msra.mxu0 %v513
    %786 = vmatprep.subr.mxu0 %v517
    %787 = vmatpush1.msra.mxu0 %v516
    %788 = vmatprep.subr.mxu0 %v520
    %789 = vmatpush1.msra.mxu0 %v519
    %790 = vmatprep.subr.mxu0 %v523
    %791 = vmatpush1.msra.mxu0 %v522
    %792 = vmatprep.subr.mxu0 %v526
    %793 = vmatpush1.msra.mxu0 %v525
    %794 = vmatprep.subr.mxu0 %v529
    %795 = vmatpush1.msra.mxu0 %v528
    %796 = vmatprep.subr.mxu0 %v532
    %797 = vmatpush1.msra.mxu0 %v531
    %798 = vmatprep.subr.mxu0 %v535
    %799 = vmatpush1.msra.mxu0 %v534
    %800 = vmatprep.subr.mxu0 %v538
    %801 = vmatpush1.msra.mxu0 %v537
    %802 = vmatprep.subr.mxu0 %v541
    %803 = vmatpush1.msra.mxu0 %v540
    %804 = vmatprep.subr.mxu0 %v544
    %805 = vmatpush1.msra.mxu0 %v543
    %806 = vmatprep.subr.mxu0 %v547
    %807 = vmatpush1.msra.mxu0 %v546
    %808 = vmatprep.subr.mxu0 0.0
    %809 = vmatpush1.msra.mxu0 0.0
    %810 = vmatprep.subr.mxu0 0.0
    %811 = vmatpush1.msra.mxu0 0.0
    %812 = vmatprep.subr.mxu0 0.0
    %813 = vmatpush1.msra.mxu0 0.0
    %814 = vmatprep.subr.mxu0 0.0
    %815 = vmatpush1.msra.mxu0 0.0
    %816 = vmatprep.subr.mxu0 0.0
    %817 = vmatpush1.msra.mxu0 0.0
    %818 = vmatprep.subr.mxu0 0.0
    %819 = vmatpush1.msra.mxu0 0.0
    %820 = vmatprep.subr.mxu0 0.0
    %821 = vmatpush1.msra.mxu0 0.0
    %822 = vmatprep.subr.mxu0 0.0
    %823 = vmatpush1.msra.mxu0 0.0
    %824 = vmatprep.subr.mxu0 0.0
    %825 = vmatpush1.msra.mxu0 0.0
    %826 = vmatprep.subr.mxu0 0.0
    %827 = vmatpush1.msra.mxu0 0.0
    %828 = vmatprep.subr.mxu0 0.0
    %829 = vmatpush1.msra.mxu0 0.0
    %830 = vmatprep.subr.mxu0 0.0
    %831 = vmatpush1.msra.mxu0 0.0
    %832 = vmatprep.subr.mxu0 0.0
    %833 = vmatpush1.msra.mxu0 0.0
    %834 = vmatprep.subr.mxu0 0.0
    %835 = vmatpush1.msra.mxu0 0.0
    %836 = vmatprep.subr.mxu0 0.0
    %837 = vmatpush1.msra.mxu0 0.0
    %838 = vmatprep.subr.mxu0 0.0
    %839 = vmatpush1.msra.mxu0 0.0
    %840 = vmatprep.mubr.f32.mxu0 0.0
    %841 = vmatmul.mubr.f32.gmra.mrb[0].mxu0 %v477
    %v842 = vpop.f32.mrb[0].mxu0
    %v843 = vadd.f32 %v669, %v842
    %v844 = vpop.f32.mrb[0].mxu0
    %v845 = vadd.f32 %v671, %v844
    %846 = vmatprep.mubr.f32.mxu0 0.0
    %847 = vmatmul.mubr.f32.gmra.mrb[0].mxu0 %v482
    %v848 = vpop.f32.mrb[0].mxu0
    %v849 = vadd.f32 %v675, %v848
    %v850 = vpop.f32.mrb[0].mxu0
    %v851 = vadd.f32 %v677, %v850
    %852 = vmatprep.mubr.f32.mxu0 0.0
    %853 = vmatmul.mubr.f32.gmra.mrb[0].mxu0 %v487
    %v854 = vpop.f32.mrb[0].mxu0
    %v855 = vadd.f32 %v681, %v854
    %v856 = vpop.f32.mrb[0].mxu0
    %v857 = vadd.f32 %v683, %v856
    %858 = vmatprep.mubr.f32.mxu0 0.0
    %859 = vmatmul.mubr.f32.gmra.mrb[0].mxu0 %v492
    %v860 = vpop.f32.mrb[0].mxu0
    %v861 = vadd.f32 %v687, %v860
    %v862 = vpop.f32.mrb[0].mxu0
    %v863 = vadd.f32 %v689, %v862
    %864 = vdwg.mxu0
    %865 = vmatprep.subr.mxu0 0.0
    %866 = vmatpush1.msra.mxu0 %v503
    %867 = vmatprep.subr.mxu0 0.0
    %868 = vmatpush1.msra.mxu0 %v506
    %869 = vmatprep.subr.mxu0 0.0
    %870 = vmatpush1.msra.mxu0 %v509
    %871 = vmatprep.subr.mxu0 0.0
    %872 = vmatpush1.msra.mxu0 %v512
    %873 = vmatprep.subr.mxu0 0.0
    %874 = vmatpush1.msra.mxu0 %v515
    %875 = vmatprep.subr.mxu0 0.0
    %876 = vmatpush1.msra.mxu0 %v518
    %877 = vmatprep.subr.mxu0 0.0
    %878 = vmatpush1.msra.mxu0 %v521
    %879 = vmatprep.subr.mxu0 0.0
    %880 = vmatpush1.msra.mxu0 %v524
    %881 = vmatprep.subr.mxu0 0.0
    %882 = vmatpush1.msra.mxu0 %v527
    %883 = vmatprep.subr.mxu0 0.0
    %884 = vmatpush1.msra.mxu0 %v530
    %885 = vmatprep.subr.mxu0 0.0
    %886 = vmatpush1.msra.mxu0 %v533
    %887 = vmatprep.subr.mxu0 0.0
    %888 = vmatpush1.msra.mxu0 %v536
    %889 = vmatprep.subr.mxu0 0.0
    %890 = vmatpush1.msra.mxu0 %v539
    %891 = vmatprep.subr.mxu0 0.0
    %892 = vmatpush1.msra.mxu0 %v542
    %893 = vmatprep.subr.mxu0 0.0
    %894 = vmatpush1.msra.mxu0 %v545
    %895 = vmatprep.subr.mxu0 0.0
    %896 = vmatpush1.msra.mxu0 %v548
    %897 = vmatprep.subr.mxu0 0.0
    %898 = vmatpush1.msra.mxu0 0.0
    %899 = vmatprep.subr.mxu0 0.0
    %900 = vmatpush1.msra.mxu0 0.0
    %901 = vmatprep.subr.mxu0 0.0
    %902 = vmatpush1.msra.mxu0 0.0
    %903 = vmatprep.subr.mxu0 0.0
    %904 = vmatpush1.msra.mxu0 0.0
    %905 = vmatprep.subr.mxu0 0.0
    %906 = vmatpush1.msra.mxu0 0.0
    %907 = vmatprep.subr.mxu0 0.0
    %908 = vmatpush1.msra.mxu0 0.0
    %909 = vmatprep.subr.mxu0 0.0
    %910 = vmatpush1.msra.mxu0 0.0
    %911 = vmatprep.subr.mxu0 0.0
    %912 = vmatpush1.msra.mxu0 0.0
    %913 = vmatprep.subr.mxu0 0.0
    %914 = vmatpush1.msra.mxu0 0.0
    %915 = vmatprep.subr.mxu0 0.0
    %916 = vmatpush1.msra.mxu0 0.0
    %917 = vmatprep.subr.mxu0 0.0
    %918 = vmatpush1.msra.mxu0 0.0
    %919 = vmatprep.subr.mxu0 0.0
    %920 = vmatpush1.msra.mxu0 0.0
    %921 = vmatprep.subr.mxu0 0.0
    %922 = vmatpush1.msra.mxu0 0.0
    %923 = vmatprep.subr.mxu0 0.0
    %924 = vmatpush1.msra.mxu0 0.0
    %925 = vmatprep.subr.mxu0 0.0
    %926 = vmatpush1.msra.mxu0 0.0
    %927 = vmatprep.subr.mxu0 0.0
    %928 = vmatpush1.msra.mxu0 0.0
    %929 = vmatprep.mubr.f32.mxu0 0.0
    %930 = vmatmul.mubr.f32.gmra.mrb[0].mxu0 %v477
    %v931 = vpop.f32.mrb[0].mxu0
    %v932 = vadd.f32 %v758, %v931
    %v933 = vpop.f32.mrb[0].mxu0
    %934 = vmatprep.mubr.f32.mxu0 0.0
    %935 = vmatmul.mubr.f32.gmra.mrb[0].mxu0 %v482
    %v936 = vpop.f32.mrb[0].mxu0
    %v937 = vadd.f32 %v763, %v936
    %v938 = vpop.f32.mrb[0].mxu0
    %939 = vmatprep.mubr.f32.mxu0 0.0
    %940 = vmatmul.mubr.f32.gmra.mrb[0].mxu0 %v487
    %v941 = vpop.f32.mrb[0].mxu0
    %v942 = vadd.f32 %v768, %v941
    %v943 = vpop.f32.mrb[0].mxu0
    %944 = vmatprep.mubr.f32.mxu0 0.0
    %945 = vmatmul.mubr.f32.gmra.mrb[0].mxu0 %v492
    %v946 = vpop.f32.mrb[0].mxu0
    %v947 = vadd.f32 %v773, %v946
    %v948 = vpop.f32.mrb[0].mxu0
    %949 = vdwg.mxu0
    %v950 = vld [vmem:[#allocation2 + $0x2] sm:$0xff]
    %v951 = vld [vmem:[#allocation2 + $0xa] sm:$0xff]
    %v952 = vld [vmem:[#allocation2 + $0x12] sm:$0xff]
    %v953 = vld [vmem:[#allocation2 + $0x1a] sm:$0xff]
    %s954 = scalar_lea.vmem [#allocation7], 768
    %v955 = vld [vmem:[%s954] sm:$0xff]
    %v956 = vld [vmem:[%s954 + $0x8] sm:$0xff]
    %v957 = vld [vmem:[%s954 + $0x10] sm:$0xff]
    %v958 = vld [vmem:[%s954 + $0x18] sm:$0xff]
    %v959 = vld [vmem:[%s954 + $0x20] sm:$0xff]
    %v960 = vld [vmem:[%s954 + $0x28] sm:$0xff]
    %v961 = vld [vmem:[%s954 + $0x30] sm:$0xff]
    %v962 = vld [vmem:[%s954 + $0x38] sm:$0xff]
    %v963 = vld [vmem:[%s954 + $0x40] sm:$0xff]
    %v964 = vld [vmem:[%s954 + $0x48] sm:$0xff]
    %v965 = vld [vmem:[%s954 + $0x50] sm:$0xff]
    %v966 = vld [vmem:[%s954 + $0x58] sm:$0xff]
    %v967 = vld [vmem:[%s954 + $0x60] sm:$0xff]
    %v968 = vld [vmem:[%s954 + $0x68] sm:$0xff]
    %v969 = vld [vmem:[%s954 + $0x70] sm:$0xff]
    %v970 = vld [vmem:[%s954 + $0x78] sm:$0xff]
    %v971 = vld [vmem:[%s954 + $0x80] sm:$0xff]
    %v972 = vld [vmem:[%s954 + $0x88] sm:$0xff]
    %v973 = vld [vmem:[%s954 + $0x90] sm:$0xff]
    %v974 = vld [vmem:[%s954 + $0x98] sm:$0xff]
    %v975 = vld [vmem:[%s954 + $0xa0] sm:$0xff]
    %v976 = vld [vmem:[%s954 + $0xa8] sm:$0xff]
    %v977 = vld [vmem:[%s954 + $0xb0] sm:$0xff]
    %v978 = vld [vmem:[%s954 + $0xb8] sm:$0xff]
    %v979 = vld [vmem:[%s954 + $0xc0] sm:$0xff]
    %v980 = vld [vmem:[%s954 + $0xc8] sm:$0xff]
    %v981 = vld [vmem:[%s954 + $0xd0] sm:$0xff]
    %v982 = vld [vmem:[%s954 + $0xd8] sm:$0xff]
    %v983 = vld [vmem:[%s954 + $0xe0] sm:$0xff]
    %v984 = vld [vmem:[%s954 + $0xe8] sm:$0xff]
    %v985 = vld [vmem:[%s954 + $0xf0] sm:$0xff]
    %v986 = vld [vmem:[%s954 + $0xf8] sm:$0xff]
    %v987 = vld [vmem:[%s954 + $0x100] sm:$0xff]
    %v988 = vld [vmem:[%s954 + $0x108] sm:$0xff]
    %v989 = vld [vmem:[%s954 + $0x110] sm:$0xff]
    %v990 = vld [vmem:[%s954 + $0x118] sm:$0xff]
    %v991 = vld [vmem:[%s954 + $0x120] sm:$0xff]
    %v992 = vld [vmem:[%s954 + $0x128] sm:$0xff]
    %v993 = vld [vmem:[%s954 + $0x130] sm:$0xff]
    %v994 = vld [vmem:[%s954 + $0x138] sm:$0xff]
    %v995 = vld [vmem:[%s954 + $0x140] sm:$0xff]
    %v996 = vld [vmem:[%s954 + $0x148] sm:$0xff]
    %v997 = vld [vmem:[%s954 + $0x150] sm:$0xff]
    %v998 = vld [vmem:[%s954 + $0x158] sm:$0xff]
    %v999 = vld [vmem:[%s954 + $0x160] sm:$0xff]
    %v1000 = vld [vmem:[%s954 + $0x168] sm:$0xff]
    %v1001 = vld [vmem:[%s954 + $0x170] sm:$0xff]
    %v1002 = vld [vmem:[%s954 + $0x178] sm:$0xff]
    %1003 = vmatprep.subr.mxu0 %v956
    %1004 = vmatpush1.msra.mxu0 %v955
    %1005 = vmatprep.subr.mxu0 %v959
    %1006 = vmatpush1.msra.mxu0 %v958
    %1007 = vmatprep.subr.mxu0 %v962
    %1008 = vmatpush1.msra.mxu0 %v961
    %1009 = vmatprep.subr.mxu0 %v965
    %1010 = vmatpush1.msra.mxu0 %v964
    %1011 = vmatprep.subr.mxu0 %v968
    %1012 = vmatpush1.msra.mxu0 %v967
    %1013 = vmatprep.subr.mxu0 %v971
    %1014 = vmatpush1.msra.mxu0 %v970
    %1015 = vmatprep.subr.mxu0 %v974
    %1016 = vmatpush1.msra.mxu0 %v973
    %1017 = vmatprep.subr.mxu0 %v977
    %1018 = vmatpush1.msra.mxu0 %v976
    %1019 = vmatprep.subr.mxu0 %v980
    %1020 = vmatpush1.msra.mxu0 %v979
    %1021 = vmatprep.subr.mxu0 %v983
    %1022 = vmatpush1.msra.mxu0 %v982
    %1023 = vmatprep.subr.mxu0 %v986
    %1024 = vmatpush1.msra.mxu0 %v985
    %1025 = vmatprep.subr.mxu0 %v989
    %1026 = vmatpush1.msra.mxu0 %v988
    %1027 = vmatprep.subr.mxu0 %v992
    %1028 = vmatpush1.msra.mxu0 %v991
    %1029 = vmatprep.subr.mxu0 %v995
    %1030 = vmatpush1.msra.mxu0 %v994
    %1031 = vmatprep.subr.mxu0 %v998
    %1032 = vmatpush1.msra.mxu0 %v997
    %1033 = vmatprep.subr.mxu0 %v1001
    %1034 = vmatpush1.msra.mxu0 %v1000
    %1035 = vmatprep.subr.mxu0 0.0
    %1036 = vmatpush1.msra.mxu0 0.0
    %1037 = vmatprep.subr.mxu0 0.0
    %1038 = vmatpush1.msra.mxu0 0.0
    %1039 = vmatprep.subr.mxu0 0.0
    %1040 = vmatpush1.msra.mxu0 0.0
    %1041 = vmatprep.subr.mxu0 0.0
    %1042 = vmatpush1.msra.mxu0 0.0
    %1043 = vmatprep.subr.mxu0 0.0
    %1044 = vmatpush1.msra.mxu0 0.0
    %1045 = vmatprep.subr.mxu0 0.0
    %1046 = vmatpush1.msra.mxu0 0.0
    %1047 = vmatprep.subr.mxu0 0.0
    %1048 = vmatpush1.msra.mxu0 0.0
    %1049 = vmatprep.subr.mxu0 0.0
    %1050 = vmatpush1.msra.mxu0 0.0
    %1051 = vmatprep.subr.mxu0 0.0
    %1052 = vmatpush1.msra.mxu0 0.0
    %1053 = vmatprep.subr.mxu0 0.0
    %1054 = vmatpush1.msra.mxu0 0.0
    %1055 = vmatprep.subr.mxu0 0.0
    %1056 = vmatpush1.msra.mxu0 0.0
    %1057 = vmatprep.subr.mxu0 0.0
    %1058 = vmatpush1.msra.mxu0 0.0
    %1059 = vmatprep.subr.mxu0 0.0
    %1060 = vmatpush1.msra.mxu0 0.0
    %1061 = vmatprep.subr.mxu0 0.0
    %1062 = vmatpush1.msra.mxu0 0.0
    %1063 = vmatprep.subr.mxu0 0.0
    %1064 = vmatpush1.msra.mxu0 0.0
    %1065 = vmatprep.subr.mxu0 0.0
    %1066 = vmatpush1.msra.mxu0 0.0
    %1067 = vmatprep.mubr.f32.mxu0 0.0
    %1068 = vmatmul.mubr.f32.gmra.mrb[0].mxu0 %v950
    %v1069 = vpop.f32.mrb[0].mxu0
    %v1070 = vadd.f32 0.0, %v1069
    %v1071 = vpop.f32.mrb[0].mxu0
    %v1072 = vadd.f32 0.0, %v1071
    %1073 = vmatprep.mubr.f32.mxu0 0.0
    %1074 = vmatmul.mubr.f32.gmra.mrb[0].mxu0 %v951
    %v1075 = vpop.f32.mrb[0].mxu0
    %v1076 = vadd.f32 0.0, %v1075
    %v1077 = vpop.f32.mrb[0].mxu0
    %v1078 = vadd.f32 0.0, %v1077
    %1079 = vmatprep.mubr.f32.mxu0 0.0
    %1080 = vmatmul.mubr.f32.gmra.mrb[0].mxu0 %v952
    %v1081 = vpop.f32.mrb[0].mxu0
    %v1082 = vadd.f32 0.0, %v1081
    %v1083 = vpop.f32.mrb[0].mxu0
    %v1084 = vadd.f32 0.0, %v1083
    %1085 = vmatprep.mubr.f32.mxu0 0.0
    %1086 = vmatmul.mubr.f32.gmra.mrb[0].mxu0 %v953
    %v1087 = vpop.f32.mrb[0].mxu0
    %v1088 = vadd.f32 0.0, %v1087
    %v1089 = vpop.f32.mrb[0].mxu0
    %v1090 = vadd.f32 0.0, %v1089
    %1091 = vdwg.mxu0
    %1092 = vmatprep.subr.mxu0 0.0
    %1093 = vmatpush1.msra.mxu0 %v957
    %1094 = vmatprep.subr.mxu0 0.0
    %1095 = vmatpush1.msra.mxu0 %v960
    %1096 = vmatprep.subr.mxu0 0.0
    %1097 = vmatpush1.msra.mxu0 %v963
    %1098 = vmatprep.subr.mxu0 0.0
    %1099 = vmatpush1.msra.mxu0 %v966
    %1100 = vmatprep.subr.mxu0 0.0
    %1101 = vmatpush1.msra.mxu0 %v969
    %1102 = vmatprep.subr.mxu0 0.0
    %1103 = vmatpush1.msra.mxu0 %v972
    %1104 = vmatprep.subr.mxu0 0.0
    %1105 = vmatpush1.msra.mxu0 %v975
    %1106 = vmatprep.subr.mxu0 0.0
    %1107 = vmatpush1.msra.mxu0 %v978
    %1108 = vmatprep.subr.mxu0 0.0
    %1109 = vmatpush1.msra.mxu0 %v981
    %1110 = vmatprep.subr.mxu0 0.0
    %1111 = vmatpush1.msra.mxu0 %v984
    %1112 = vmatprep.subr.mxu0 0.0
    %1113 = vmatpush1.msra.mxu0 %v987
    %1114 = vmatprep.subr.mxu0 0.0
    %1115 = vmatpush1.msra.mxu0 %v990
    %1116 = vmatprep.subr.mxu0 0.0
    %1117 = vmatpush1.msra.mxu0 %v993
    %1118 = vmatprep.subr.mxu0 0.0
    %1119 = vmatpush1.msra.mxu0 %v996
    %1120 = vmatprep.subr.mxu0 0.0
    %1121 = vmatpush1.msra.mxu0 %v999
    %1122 = vmatprep.subr.mxu0 0.0
    %1123 = vmatpush1.msra.mxu0 %v1002
    %1124 = vmatprep.subr.mxu0 0.0
    %1125 = vmatpush1.msra.mxu0 0.0
    %1126 = vmatprep.subr.mxu0 0.0
    %1127 = vmatpush1.msra.mxu0 0.0
    %1128 = vmatprep.subr.mxu0 0.0
    %1129 = vmatpush1.msra.mxu0 0.0
    %1130 = vmatprep.subr.mxu0 0.0
    %1131 = vmatpush1.msra.mxu0 0.0
    %1132 = vmatprep.subr.mxu0 0.0
    %1133 = vmatpush1.msra.mxu0 0.0
    %1134 = vmatprep.subr.mxu0 0.0
    %1135 = vmatpush1.msra.mxu0 0.0
    %1136 = vmatprep.subr.mxu0 0.0
    %1137 = vmatpush1.msra.mxu0 0.0
    %1138 = vmatprep.subr.mxu0 0.0
    %1139 = vmatpush1.msra.mxu0 0.0
    %1140 = vmatprep.subr.mxu0 0.0
    %1141 = vmatpush1.msra.mxu0 0.0
    %1142 = vmatprep.subr.mxu0 0.0
    %1143 = vmatpush1.msra.mxu0 0.0
    %1144 = vmatprep.subr.mxu0 0.0
    %1145 = vmatpush1.msra.mxu0 0.0
    %1146 = vmatprep.subr.mxu0 0.0
    %1147 = vmatpush1.msra.mxu0 0.0
    %1148 = vmatprep.subr.mxu0 0.0
    %1149 = vmatpush1.msra.mxu0 0.0
    %1150 = vmatprep.subr.mxu0 0.0
    %1151 = vmatpush1.msra.mxu0 0.0
    %1152 = vmatprep.subr.mxu0 0.0
    %1153 = vmatpush1.msra.mxu0 0.0
    %1154 = vmatprep.subr.mxu0 0.0
    %1155 = vmatpush1.msra.mxu0 0.0
    %1156 = vmatprep.mubr.f32.mxu0 0.0
    %1157 = vmatmul.mubr.f32.gmra.mrb[0].mxu0 %v950
    %v1158 = vpop.f32.mrb[0].mxu0
    %v1159 = vadd.f32 0.0, %v1158
    %v1160 = vpop.f32.mrb[0].mxu0
    %1161 = vmatprep.mubr.f32.mxu0 0.0
    %1162 = vmatmul.mubr.f32.gmra.mrb[0].mxu0 %v951
    %v1163 = vpop.f32.mrb[0].mxu0
    %v1164 = vadd.f32 0.0, %v1163
    %v1165 = vpop.f32.mrb[0].mxu0
    %1166 = vmatprep.mubr.f32.mxu0 0.0
    %1167 = vmatmul.mubr.f32.gmra.mrb[0].mxu0 %v952
    %v1168 = vpop.f32.mrb[0].mxu0
    %v1169 = vadd.f32 0.0, %v1168
    %v1170 = vpop.f32.mrb[0].mxu0
    %1171 = vmatprep.mubr.f32.mxu0 0.0
    %1172 = vmatmul.mubr.f32.gmra.mrb[0].mxu0 %v953
    %v1173 = vpop.f32.mrb[0].mxu0
    %v1174 = vadd.f32 0.0, %v1173
    %v1175 = vpop.f32.mrb[0].mxu0
    %1176 = vdwg.mxu0
    %v1177 = vadd.f32 %v843, %v1070
    %v1178 = vadd.f32 %v845, %v1072
    %v1179 = vadd.f32 %v932, %v1159
    %v1180 = vadd.f32 %v849, %v1076
    %v1181 = vadd.f32 %v851, %v1078
    %v1182 = vadd.f32 %v937, %v1164
    %v1183 = vadd.f32 %v855, %v1082
    %v1184 = vadd.f32 %v857, %v1084
    %v1185 = vadd.f32 %v942, %v1169
    %v1186 = vadd.f32 %v861, %v1088
    %v1187 = vadd.f32 %v863, %v1090
    %v1188 = vadd.f32 %v947, %v1174
    %v1189 = vld [vmem:[#allocation2 + $0x3] sm:$0xff]
    %v1190 = vld [vmem:[#allocation2 + $0xb] sm:$0xff]
    %v1191 = vld [vmem:[#allocation2 + $0x13] sm:$0xff]
    %v1192 = vld [vmem:[#allocation2 + $0x1b] sm:$0xff]
    %s1193 = scalar_lea.vmem [#allocation7], 1152
    %v1194 = vld [vmem:[%s1193] sm:$0xff]
    %v1195 = vld [vmem:[%s1193 + $0x8] sm:$0xff]
    %v1196 = vld [vmem:[%s1193 + $0x10] sm:$0xff]
    %v1197 = vld [vmem:[%s1193 + $0x18] sm:$0xff]
    %v1198 = vld [vmem:[%s1193 + $0x20] sm:$0xff]
    %v1199 = vld [vmem:[%s1193 + $0x28] sm:$0xff]
    %v1200 = vld [vmem:[%s1193 + $0x30] sm:$0xff]
    %v1201 = vld [vmem:[%s1193 + $0x38] sm:$0xff]
    %v1202 = vld [vmem:[%s1193 + $0x40] sm:$0xff]
    %v1203 = vld [vmem:[%s1193 + $0x48] sm:$0xff]
    %v1204 = vld [vmem:[%s1193 + $0x50] sm:$0xff]
    %v1205 = vld [vmem:[%s1193 + $0x58] sm:$0xff]
    %v1206 = vld [vmem:[%s1193 + $0x60] sm:$0xff]
    %v1207 = vld [vmem:[%s1193 + $0x68] sm:$0xff]
    %v1208 = vld [vmem:[%s1193 + $0x70] sm:$0xff]
    %v1209 = vld [vmem:[%s1193 + $0x78] sm:$0xff]
    %v1210 = vld [vmem:[%s1193 + $0x80] sm:$0xff]
    %v1211 = vld [vmem:[%s1193 + $0x88] sm:$0xff]
    %v1212 = vld [vmem:[%s1193 + $0x90] sm:$0xff]
    %v1213 = vld [vmem:[%s1193 + $0x98] sm:$0xff]
    %v1214 = vld [vmem:[%s1193 + $0xa0] sm:$0xff]
    %v1215 = vld [vmem:[%s1193 + $0xa8] sm:$0xff]
    %v1216 = vld [vmem:[%s1193 + $0xb0] sm:$0xff]
    %v1217 = vld [vmem:[%s1193 + $0xb8] sm:$0xff]
    %v1218 = vld [vmem:[%s1193 + $0xc0] sm:$0xff]
    %v1219 = vld [vmem:[%s1193 + $0xc8] sm:$0xff]
    %v1220 = vld [vmem:[%s1193 + $0xd0] sm:$0xff]
    %v1221 = vld [vmem:[%s1193 + $0xd8] sm:$0xff]
    %v1222 = vld [vmem:[%s1193 + $0xe0] sm:$0xff]
    %v1223 = vld [vmem:[%s1193 + $0xe8] sm:$0xff]
    %v1224 = vld [vmem:[%s1193 + $0xf0] sm:$0xff]
    %v1225 = vld [vmem:[%s1193 + $0xf8] sm:$0xff]
    %v1226 = vld [vmem:[%s1193 + $0x100] sm:$0xff]
    %v1227 = vld [vmem:[%s1193 + $0x108] sm:$0xff]
    %v1228 = vld [vmem:[%s1193 + $0x110] sm:$0xff]
    %v1229 = vld [vmem:[%s1193 + $0x118] sm:$0xff]
    %v1230 = vld [vmem:[%s1193 + $0x120] sm:$0xff]
    %v1231 = vld [vmem:[%s1193 + $0x128] sm:$0xff]
    %v1232 = vld [vmem:[%s1193 + $0x130] sm:$0xff]
    %v1233 = vld [vmem:[%s1193 + $0x138] sm:$0xff]
    %v1234 = vld [vmem:[%s1193 + $0x140] sm:$0xff]
    %v1235 = vld [vmem:[%s1193 + $0x148] sm:$0xff]
    %v1236 = vld [vmem:[%s1193 + $0x150] sm:$0xff]
    %v1237 = vld [vmem:[%s1193 + $0x158] sm:$0xff]
    %v1238 = vld [vmem:[%s1193 + $0x160] sm:$0xff]
    %v1239 = vld [vmem:[%s1193 + $0x168] sm:$0xff]
    %v1240 = vld [vmem:[%s1193 + $0x170] sm:$0xff]
    %v1241 = vld [vmem:[%s1193 + $0x178] sm:$0xff]
    %1242 = vmatprep.subr.mxu0 %v1195
    %1243 = vmatpush1.msra.mxu0 %v1194
    %1244 = vmatprep.subr.mxu0 %v1198
    %1245 = vmatpush1.msra.mxu0 %v1197
    %1246 = vmatprep.subr.mxu0 %v1201
    %1247 = vmatpush1.msra.mxu0 %v1200
    %1248 = vmatprep.subr.mxu0 %v1204
    %1249 = vmatpush1.msra.mxu0 %v1203
    %1250 = vmatprep.subr.mxu0 %v1207
    %1251 = vmatpush1.msra.mxu0 %v1206
    %1252 = vmatprep.subr.mxu0 %v1210
    %1253 = vmatpush1.msra.mxu0 %v1209
    %1254 = vmatprep.subr.mxu0 %v1213
    %1255 = vmatpush1.msra.mxu0 %v1212
    %1256 = vmatprep.subr.mxu0 %v1216
    %1257 = vmatpush1.msra.mxu0 %v1215
    %1258 = vmatprep.subr.mxu0 %v1219
    %1259 = vmatpush1.msra.mxu0 %v1218
    %1260 = vmatprep.subr.mxu0 %v1222
    %1261 = vmatpush1.msra.mxu0 %v1221
    %1262 = vmatprep.subr.mxu0 %v1225
    %1263 = vmatpush1.msra.mxu0 %v1224
    %1264 = vmatprep.subr.mxu0 %v1228
    %1265 = vmatpush1.msra.mxu0 %v1227
    %1266 = vmatprep.subr.mxu0 %v1231
    %1267 = vmatpush1.msra.mxu0 %v1230
    %1268 = vmatprep.subr.mxu0 %v1234
    %1269 = vmatpush1.msra.mxu0 %v1233
    %1270 = vmatprep.subr.mxu0 %v1237
    %1271 = vmatpush1.msra.mxu0 %v1236
    %1272 = vmatprep.subr.mxu0 %v1240
    %1273 = vmatpush1.msra.mxu0 %v1239
    %1274 = vmatprep.subr.mxu0 0.0
    %1275 = vmatpush1.msra.mxu0 0.0
    %1276 = vmatprep.subr.mxu0 0.0
    %1277 = vmatpush1.msra.mxu0 0.0
    %1278 = vmatprep.subr.mxu0 0.0
    %1279 = vmatpush1.msra.mxu0 0.0
    %1280 = vmatprep.subr.mxu0 0.0
    %1281 = vmatpush1.msra.mxu0 0.0
    %1282 = vmatprep.subr.mxu0 0.0
    %1283 = vmatpush1.msra.mxu0 0.0
    %1284 = vmatprep.subr.mxu0 0.0
    %1285 = vmatpush1.msra.mxu0 0.0
    %1286 = vmatprep.subr.mxu0 0.0
    %1287 = vmatpush1.msra.mxu0 0.0
    %1288 = vmatprep.subr.mxu0 0.0
    %1289 = vmatpush1.msra.mxu0 0.0
    %1290 = vmatprep.subr.mxu0 0.0
    %1291 = vmatpush1.msra.mxu0 0.0
    %1292 = vmatprep.subr.mxu0 0.0
    %1293 = vmatpush1.msra.mxu0 0.0
    %1294 = vmatprep.subr.mxu0 0.0
    %1295 = vmatpush1.msra.mxu0 0.0
    %1296 = vmatprep.subr.mxu0 0.0
    %1297 = vmatpush1.msra.mxu0 0.0
    %1298 = vmatprep.subr.mxu0 0.0
    %1299 = vmatpush1.msra.mxu0 0.0
    %1300 = vmatprep.subr.mxu0 0.0
    %1301 = vmatpush1.msra.mxu0 0.0
    %1302 = vmatprep.subr.mxu0 0.0
    %1303 = vmatpush1.msra.mxu0 0.0
    %1304 = vmatprep.subr.mxu0 0.0
    %1305 = vmatpush1.msra.mxu0 0.0
    %1306 = vmatprep.mubr.f32.mxu0 0.0
    %1307 = vmatmul.mubr.f32.gmra.mrb[0].mxu0 %v1189
    %v1308 = vpop.f32.mrb[0].mxu0
    %v1309 = vadd.f32 0.0, %v1308
    %v1310 = vpop.f32.mrb[0].mxu0
    %v1311 = vadd.f32 0.0, %v1310
    %1312 = vmatprep.mubr.f32.mxu0 0.0
    %1313 = vmatmul.mubr.f32.gmra.mrb[0].mxu0 %v1190
    %v1314 = vpop.f32.mrb[0].mxu0
    %v1315 = vadd.f32 0.0, %v1314
    %v1316 = vpop.f32.mrb[0].mxu0
    %v1317 = vadd.f32 0.0, %v1316
    %1318 = vmatprep.mubr.f32.mxu0 0.0
    %1319 = vmatmul.mubr.f32.gmra.mrb[0].mxu0 %v1191
    %v1320 = vpop.f32.mrb[0].mxu0
    %v1321 = vadd.f32 0.0, %v1320
    %v1322 = vpop.f32.mrb[0].mxu0
    %v1323 = vadd.f32 0.0, %v1322
    %1324 = vmatprep.mubr.f32.mxu0 0.0
    %1325 = vmatmul.mubr.f32.gmra.mrb[0].mxu0 %v1192
    %v1326 = vpop.f32.mrb[0].mxu0
    %v1327 = vadd.f32 0.0, %v1326
    %v1328 = vpop.f32.mrb[0].mxu0
    %v1329 = vadd.f32 0.0, %v1328
    %1330 = vdwg.mxu0
    %1331 = vmatprep.subr.mxu0 0.0
    %1332 = vmatpush1.msra.mxu0 %v1196
    %1333 = vmatprep.subr.mxu0 0.0
    %1334 = vmatpush1.msra.mxu0 %v1199
    %1335 = vmatprep.subr.mxu0 0.0
    %1336 = vmatpush1.msra.mxu0 %v1202
    %1337 = vmatprep.subr.mxu0 0.0
    %1338 = vmatpush1.msra.mxu0 %v1205
    %1339 = vmatprep.subr.mxu0 0.0
    %1340 = vmatpush1.msra.mxu0 %v1208
    %1341 = vmatprep.subr.mxu0 0.0
    %1342 = vmatpush1.msra.mxu0 %v1211
    %1343 = vmatprep.subr.mxu0 0.0
    %1344 = vmatpush1.msra.mxu0 %v1214
    %1345 = vmatprep.subr.mxu0 0.0
    %1346 = vmatpush1.msra.mxu0 %v1217
    %1347 = vmatprep.subr.mxu0 0.0
    %1348 = vmatpush1.msra.mxu0 %v1220
    %1349 = vmatprep.subr.mxu0 0.0
    %1350 = vmatpush1.msra.mxu0 %v1223
    %1351 = vmatprep.subr.mxu0 0.0
    %1352 = vmatpush1.msra.mxu0 %v1226
    %1353 = vmatprep.subr.mxu0 0.0
    %1354 = vmatpush1.msra.mxu0 %v1229
    %1355 = vmatprep.subr.mxu0 0.0
    %1356 = vmatpush1.msra.mxu0 %v1232
    %1357 = vmatprep.subr.mxu0 0.0
    %1358 = vmatpush1.msra.mxu0 %v1235
    %1359 = vmatprep.subr.mxu0 0.0
    %1360 = vmatpush1.msra.mxu0 %v1238
    %1361 = vmatprep.subr.mxu0 0.0
    %1362 = vmatpush1.msra.mxu0 %v1241
    %1363 = vmatprep.subr.mxu0 0.0
    %1364 = vmatpush1.msra.mxu0 0.0
    %1365 = vmatprep.subr.mxu0 0.0
    %1366 = vmatpush1.msra.mxu0 0.0
    %1367 = vmatprep.subr.mxu0 0.0
    %1368 = vmatpush1.msra.mxu0 0.0
    %1369 = vmatprep.subr.mxu0 0.0
    %1370 = vmatpush1.msra.mxu0 0.0
    %1371 = vmatprep.subr.mxu0 0.0
    %1372 = vmatpush1.msra.mxu0 0.0
    %1373 = vmatprep.subr.mxu0 0.0
    %1374 = vmatpush1.msra.mxu0 0.0
    %1375 = vmatprep.subr.mxu0 0.0
    %1376 = vmatpush1.msra.mxu0 0.0
    %1377 = vmatprep.subr.mxu0 0.0
    %1378 = vmatpush1.msra.mxu0 0.0
    %1379 = vmatprep.subr.mxu0 0.0
    %1380 = vmatpush1.msra.mxu0 0.0
    %1381 = vmatprep.subr.mxu0 0.0
    %1382 = vmatpush1.msra.mxu0 0.0
    %1383 = vmatprep.subr.mxu0 0.0
    %1384 = vmatpush1.msra.mxu0 0.0
    %1385 = vmatprep.subr.mxu0 0.0
    %1386 = vmatpush1.msra.mxu0 0.0
    %1387 = vmatprep.subr.mxu0 0.0
    %1388 = vmatpush1.msra.mxu0 0.0
    %1389 = vmatprep.subr.mxu0 0.0
    %1390 = vmatpush1.msra.mxu0 0.0
    %1391 = vmatprep.subr.mxu0 0.0
    %1392 = vmatpush1.msra.mxu0 0.0
    %1393 = vmatprep.subr.mxu0 0.0
    %1394 = vmatpush1.msra.mxu0 0.0
    %1395 = vmatprep.mubr.f32.mxu0 0.0
    %1396 = vmatmul.mubr.f32.gmra.mrb[0].mxu0 %v1189
    %v1397 = vpop.f32.mrb[0].mxu0
    %v1398 = vadd.f32 0.0, %v1397
    %v1399 = vpop.f32.mrb[0].mxu0
    %1400 = vmatprep.mubr.f32.mxu0 0.0
    %1401 = vmatmul.mubr.f32.gmra.mrb[0].mxu0 %v1190
    %v1402 = vpop.f32.mrb[0].mxu0
    %v1403 = vadd.f32 0.0, %v1402
    %v1404 = vpop.f32.mrb[0].mxu0
    %1405 = vmatprep.mubr.f32.mxu0 0.0
    %1406 = vmatmul.mubr.f32.gmra.mrb[0].mxu0 %v1191
    %v1407 = vpop.f32.mrb[0].mxu0
    %v1408 = vadd.f32 0.0, %v1407
    %v1409 = vpop.f32.mrb[0].mxu0
    %1410 = vmatprep.mubr.f32.mxu0 0.0
    %1411 = vmatmul.mubr.f32.gmra.mrb[0].mxu0 %v1192
    %v1412 = vpop.f32.mrb[0].mxu0
    %v1413 = vadd.f32 0.0, %v1412
    %v1414 = vpop.f32.mrb[0].mxu0
    %1415 = vdwg.mxu0
    %v1416 = vadd.f32 %v1177, %v1309
    %v1417 = vadd.f32 %v1178, %v1311
    %v1418 = vadd.f32 %v1179, %v1398
    %v1419 = vadd.f32 %v1180, %v1315
    %v1420 = vadd.f32 %v1181, %v1317
    %v1421 = vadd.f32 %v1182, %v1403
    %v1422 = vadd.f32 %v1183, %v1321
    %v1423 = vadd.f32 %v1184, %v1323
    %v1424 = vadd.f32 %v1185, %v1408
    %v1425 = vadd.f32 %v1186, %v1327
    %v1426 = vadd.f32 %v1187, %v1329
    %v1427 = vadd.f32 %v1188, %v1413
    %v1428 = vld [vmem:[#allocation2 + $0x4] sm:$0xff]
    %v1429 = vld [vmem:[#allocation2 + $0xc] sm:$0xff]
    %v1430 = vld [vmem:[#allocation2 + $0x14] sm:$0xff]
    %v1431 = vld [vmem:[#allocation2 + $0x1c] sm:$0xff]
    %s1432 = scalar_lea.vmem [#allocation7], 1536
    %v1433 = vld [vmem:[%s1432] sm:$0xff]
    %v1434 = vld [vmem:[%s1432 + $0x8] sm:$0xff]
    %v1435 = vld [vmem:[%s1432 + $0x10] sm:$0xff]
    %v1436 = vld [vmem:[%s1432 + $0x18] sm:$0xff]
    %v1437 = vld [vmem:[%s1432 + $0x20] sm:$0xff]
    %v1438 = vld [vmem:[%s1432 + $0x28] sm:$0xff]
    %v1439 = vld [vmem:[%s1432 + $0x30] sm:$0xff]
    %v1440 = vld [vmem:[%s1432 + $0x38] sm:$0xff]
    %v1441 = vld [vmem:[%s1432 + $0x40] sm:$0xff]
    %v1442 = vld [vmem:[%s1432 + $0x48] sm:$0xff]
    %v1443 = vld [vmem:[%s1432 + $0x50] sm:$0xff]
    %v1444 = vld [vmem:[%s1432 + $0x58] sm:$0xff]
    %v1445 = vld [vmem:[%s1432 + $0x60] sm:$0xff]
    %v1446 = vld [vmem:[%s1432 + $0x68] sm:$0xff]
    %v1447 = vld [vmem:[%s1432 + $0x70] sm:$0xff]
    %v1448 = vld [vmem:[%s1432 + $0x78] sm:$0xff]
    %v1449 = vld [vmem:[%s1432 + $0x80] sm:$0xff]
    %v1450 = vld [vmem:[%s1432 + $0x88] sm:$0xff]
    %v1451 = vld [vmem:[%s1432 + $0x90] sm:$0xff]
    %v1452 = vld [vmem:[%s1432 + $0x98] sm:$0xff]
    %v1453 = vld [vmem:[%s1432 + $0xa0] sm:$0xff]
    %v1454 = vld [vmem:[%s1432 + $0xa8] sm:$0xff]
    %v1455 = vld [vmem:[%s1432 + $0xb0] sm:$0xff]
    %v1456 = vld [vmem:[%s1432 + $0xb8] sm:$0xff]
    %v1457 = vld [vmem:[%s1432 + $0xc0] sm:$0xff]
    %v1458 = vld [vmem:[%s1432 + $0xc8] sm:$0xff]
    %v1459 = vld [vmem:[%s1432 + $0xd0] sm:$0xff]
    %v1460 = vld [vmem:[%s1432 + $0xd8] sm:$0xff]
    %v1461 = vld [vmem:[%s1432 + $0xe0] sm:$0xff]
    %v1462 = vld [vmem:[%s1432 + $0xe8] sm:$0xff]
    %v1463 = vld [vmem:[%s1432 + $0xf0] sm:$0xff]
    %v1464 = vld [vmem:[%s1432 + $0xf8] sm:$0xff]
    %v1465 = vld [vmem:[%s1432 + $0x100] sm:$0xff]
    %v1466 = vld [vmem:[%s1432 + $0x108] sm:$0xff]
    %v1467 = vld [vmem:[%s1432 + $0x110] sm:$0xff]
    %v1468 = vld [vmem:[%s1432 + $0x118] sm:$0xff]
    %v1469 = vld [vmem:[%s1432 + $0x120] sm:$0xff]
    %v1470 = vld [vmem:[%s1432 + $0x128] sm:$0xff]
    %v1471 = vld [vmem:[%s1432 + $0x130] sm:$0xff]
    %v1472 = vld [vmem:[%s1432 + $0x138] sm:$0xff]
    %v1473 = vld [vmem:[%s1432 + $0x140] sm:$0xff]
    %v1474 = vld [vmem:[%s1432 + $0x148] sm:$0xff]
    %v1475 = vld [vmem:[%s1432 + $0x150] sm:$0xff]
    %v1476 = vld [vmem:[%s1432 + $0x158] sm:$0xff]
    %v1477 = vld [vmem:[%s1432 + $0x160] sm:$0xff]
    %v1478 = vld [vmem:[%s1432 + $0x168] sm:$0xff]
    %v1479 = vld [vmem:[%s1432 + $0x170] sm:$0xff]
    %v1480 = vld [vmem:[%s1432 + $0x178] sm:$0xff]
    %1481 = vmatprep.subr.mxu0 %v1434
    %1482 = vmatpush1.msra.mxu0 %v1433
    %1483 = vmatprep.subr.mxu0 %v1437
    %1484 = vmatpush1.msra.mxu0 %v1436
    %1485 = vmatprep.subr.mxu0 %v1440
    %1486 = vmatpush1.msra.mxu0 %v1439
    %1487 = vmatprep.subr.mxu0 %v1443
    %1488 = vmatpush1.msra.mxu0 %v1442
    %1489 = vmatprep.subr.mxu0 %v1446
    %1490 = vmatpush1.msra.mxu0 %v1445
    %1491 = vmatprep.subr.mxu0 %v1449
    %1492 = vmatpush1.msra.mxu0 %v1448
    %1493 = vmatprep.subr.mxu0 %v1452
    %1494 = vmatpush1.msra.mxu0 %v1451
    %1495 = vmatprep.subr.mxu0 %v1455
    %1496 = vmatpush1.msra.mxu0 %v1454
    %1497 = vmatprep.subr.mxu0 %v1458
    %1498 = vmatpush1.msra.mxu0 %v1457
    %1499 = vmatprep.subr.mxu0 %v1461
    %1500 = vmatpush1.msra.mxu0 %v1460
    %1501 = vmatprep.subr.mxu0 %v1464
    %1502 = vmatpush1.msra.mxu0 %v1463
    %1503 = vmatprep.subr.mxu0 %v1467
    %1504 = vmatpush1.msra.mxu0 %v1466
    %1505 = vmatprep.subr.mxu0 %v1470
    %1506 = vmatpush1.msra.mxu0 %v1469
    %1507 = vmatprep.subr.mxu0 %v1473
    %1508 = vmatpush1.msra.mxu0 %v1472
    %1509 = vmatprep.subr.mxu0 %v1476
    %1510 = vmatpush1.msra.mxu0 %v1475
    %1511 = vmatprep.subr.mxu0 %v1479
    %1512 = vmatpush1.msra.mxu0 %v1478
    %1513 = vmatprep.subr.mxu0 0.0
    %1514 = vmatpush1.msra.mxu0 0.0
    %1515 = vmatprep.subr.mxu0 0.0
    %1516 = vmatpush1.msra.mxu0 0.0
    %1517 = vmatprep.subr.mxu0 0.0
    %1518 = vmatpush1.msra.mxu0 0.0
    %1519 = vmatprep.subr.mxu0 0.0
    %1520 = vmatpush1.msra.mxu0 0.0
    %1521 = vmatprep.subr.mxu0 0.0
    %1522 = vmatpush1.msra.mxu0 0.0
    %1523 = vmatprep.subr.mxu0 0.0
    %1524 = vmatpush1.msra.mxu0 0.0
    %1525 = vmatprep.subr.mxu0 0.0
    %1526 = vmatpush1.msra.mxu0 0.0
    %1527 = vmatprep.subr.mxu0 0.0
    %1528 = vmatpush1.msra.mxu0 0.0
    %1529 = vmatprep.subr.mxu0 0.0
    %1530 = vmatpush1.msra.mxu0 0.0
    %1531 = vmatprep.subr.mxu0 0.0
    %1532 = vmatpush1.msra.mxu0 0.0
    %1533 = vmatprep.subr.mxu0 0.0
    %1534 = vmatpush1.msra.mxu0 0.0
    %1535 = vmatprep.subr.mxu0 0.0
    %1536 = vmatpush1.msra.mxu0 0.0
    %1537 = vmatprep.subr.mxu0 0.0
    %1538 = vmatpush1.msra.mxu0 0.0
    %1539 = vmatprep.subr.mxu0 0.0
    %1540 = vmatpush1.msra.mxu0 0.0
    %1541 = vmatprep.subr.mxu0 0.0
    %1542 = vmatpush1.msra.mxu0 0.0
    %1543 = vmatprep.subr.mxu0 0.0
    %1544 = vmatpush1.msra.mxu0 0.0
    %1545 = vmatprep.mubr.f32.mxu0 0.0
    %1546 = vmatmul.mubr.f32.gmra.mrb[0].mxu0 %v1428
    %v1547 = vpop.f32.mrb[0].mxu0
    %v1548 = vadd.f32 0.0, %v1547
    %v1549 = vpop.f32.mrb[0].mxu0
    %v1550 = vadd.f32 0.0, %v1549
    %1551 = vmatprep.mubr.f32.mxu0 0.0
    %1552 = vmatmul.mubr.f32.gmra.mrb[0].mxu0 %v1429
    %v1553 = vpop.f32.mrb[0].mxu0
    %v1554 = vadd.f32 0.0, %v1553
    %v1555 = vpop.f32.mrb[0].mxu0
    %v1556 = vadd.f32 0.0, %v1555
    %1557 = vmatprep.mubr.f32.mxu0 0.0
    %1558 = vmatmul.mubr.f32.gmra.mrb[0].mxu0 %v1430
    %v1559 = vpop.f32.mrb[0].mxu0
    %v1560 = vadd.f32 0.0, %v1559
    %v1561 = vpop.f32.mrb[0].mxu0
    %v1562 = vadd.f32 0.0, %v1561
    %1563 = vmatprep.mubr.f32.mxu0 0.0
    %1564 = vmatmul.mubr.f32.gmra.mrb[0].mxu0 %v1431
    %v1565 = vpop.f32.mrb[0].mxu0
    %v1566 = vadd.f32 0.0, %v1565
    %v1567 = vpop.f32.mrb[0].mxu0
    %v1568 = vadd.f32 0.0, %v1567
    %1569 = vdwg.mxu0
    %1570 = vmatprep.subr.mxu0 0.0
    %1571 = vmatpush1.msra.mxu0 %v1435
    %1572 = vmatprep.subr.mxu0 0.0
    %1573 = vmatpush1.msra.mxu0 %v1438
    %1574 = vmatprep.subr.mxu0 0.0
    %1575 = vmatpush1.msra.mxu0 %v1441
    %1576 = vmatprep.subr.mxu0 0.0
    %1577 = vmatpush1.msra.mxu0 %v1444
    %1578 = vmatprep.subr.mxu0 0.0
    %1579 = vmatpush1.msra.mxu0 %v1447
    %1580 = vmatprep.subr.mxu0 0.0
    %1581 = vmatpush1.msra.mxu0 %v1450
    %1582 = vmatprep.subr.mxu0 0.0
    %1583 = vmatpush1.msra.mxu0 %v1453
    %1584 = vmatprep.subr.mxu0 0.0
    %1585 = vmatpush1.msra.mxu0 %v1456
    %1586 = vmatprep.subr.mxu0 0.0
    %1587 = vmatpush1.msra.mxu0 %v1459
    %1588 = vmatprep.subr.mxu0 0.0
    %1589 = vmatpush1.msra.mxu0 %v1462
    %1590 = vmatprep.subr.mxu0 0.0
    %1591 = vmatpush1.msra.mxu0 %v1465
    %1592 = vmatprep.subr.mxu0 0.0
    %1593 = vmatpush1.msra.mxu0 %v1468
    %1594 = vmatprep.subr.mxu0 0.0
    %1595 = vmatpush1.msra.mxu0 %v1471
    %1596 = vmatprep.subr.mxu0 0.0
    %1597 = vmatpush1.msra.mxu0 %v1474
    %1598 = vmatprep.subr.mxu0 0.0
    %1599 = vmatpush1.msra.mxu0 %v1477
    %1600 = vmatprep.subr.mxu0 0.0
    %1601 = vmatpush1.msra.mxu0 %v1480
    %1602 = vmatprep.subr.mxu0 0.0
    %1603 = vmatpush1.msra.mxu0 0.0
    %1604 = vmatprep.subr.mxu0 0.0
    %1605 = vmatpush1.msra.mxu0 0.0
    %1606 = vmatprep.subr.mxu0 0.0
    %1607 = vmatpush1.msra.mxu0 0.0
    %1608 = vmatprep.subr.mxu0 0.0
    %1609 = vmatpush1.msra.mxu0 0.0
    %1610 = vmatprep.subr.mxu0 0.0
    %1611 = vmatpush1.msra.mxu0 0.0
    %1612 = vmatprep.subr.mxu0 0.0
    %1613 = vmatpush1.msra.mxu0 0.0
    %1614 = vmatprep.subr.mxu0 0.0
    %1615 = vmatpush1.msra.mxu0 0.0
    %1616 = vmatprep.subr.mxu0 0.0
    %1617 = vmatpush1.msra.mxu0 0.0
    %1618 = vmatprep.subr.mxu0 0.0
    %1619 = vmatpush1.msra.mxu0 0.0
    %1620 = vmatprep.subr.mxu0 0.0
    %1621 = vmatpush1.msra.mxu0 0.0
    %1622 = vmatprep.subr.mxu0 0.0
    %1623 = vmatpush1.msra.mxu0 0.0
    %1624 = vmatprep.subr.mxu0 0.0
    %1625 = vmatpush1.msra.mxu0 0.0
    %1626 = vmatprep.subr.mxu0 0.0
    %1627 = vmatpush1.msra.mxu0 0.0
    %1628 = vmatprep.subr.mxu0 0.0
    %1629 = vmatpush1.msra.mxu0 0.0
    %1630 = vmatprep.subr.mxu0 0.0
    %1631 = vmatpush1.msra.mxu0 0.0
    %1632 = vmatprep.subr.mxu0 0.0
    %1633 = vmatpush1.msra.mxu0 0.0
    %1634 = vmatprep.mubr.f32.mxu0 0.0
    %1635 = vmatmul.mubr.f32.gmra.mrb[0].mxu0 %v1428
    %v1636 = vpop.f32.mrb[0].mxu0
    %v1637 = vadd.f32 0.0, %v1636
    %v1638 = vpop.f32.mrb[0].mxu0
    %1639 = vmatprep.mubr.f32.mxu0 0.0
    %1640 = vmatmul.mubr.f32.gmra.mrb[0].mxu0 %v1429
    %v1641 = vpop.f32.mrb[0].mxu0
    %v1642 = vadd.f32 0.0, %v1641
    %v1643 = vpop.f32.mrb[0].mxu0
    %1644 = vmatprep.mubr.f32.mxu0 0.0
    %1645 = vmatmul.mubr.f32.gmra.mrb[0].mxu0 %v1430
    %v1646 = vpop.f32.mrb[0].mxu0
    %v1647 = vadd.f32 0.0, %v1646
    %v1648 = vpop.f32.mrb[0].mxu0
    %1649 = vmatprep.mubr.f32.mxu0 0.0
    %1650 = vmatmul.mubr.f32.gmra.mrb[0].mxu0 %v1431
    %v1651 = vpop.f32.mrb[0].mxu0
    %v1652 = vadd.f32 0.0, %v1651
    %v1653 = vpop.f32.mrb[0].mxu0
    %1654 = vdwg.mxu0
    %v1655 = vadd.f32 %v1416, %v1548
    %v1656 = vadd.f32 %v1417, %v1550
    %v1657 = vadd.f32 %v1418, %v1637
    %v1658 = vadd.f32 %v1419, %v1554
    %v1659 = vadd.f32 %v1420, %v1556
    %v1660 = vadd.f32 %v1421, %v1642
    %v1661 = vadd.f32 %v1422, %v1560
    %v1662 = vadd.f32 %v1423, %v1562
    %v1663 = vadd.f32 %v1424, %v1647
    %v1664 = vadd.f32 %v1425, %v1566
    %v1665 = vadd.f32 %v1426, %v1568
    %v1666 = vadd.f32 %v1427, %v1652
    %v1667 = vld [vmem:[#allocation2 + $0x5] sm:$0xff]
    %v1668 = vld [vmem:[#allocation2 + $0xd] sm:$0xff]
    %v1669 = vld [vmem:[#allocation2 + $0x15] sm:$0xff]
    %v1670 = vld [vmem:[#allocation2 + $0x1d] sm:$0xff]
    %s1671 = scalar_lea.vmem [#allocation7], 1920
    %v1672 = vld [vmem:[%s1671] sm:$0xff]
    %v1673 = vld [vmem:[%s1671 + $0x8] sm:$0xff]
    %v1674 = vld [vmem:[%s1671 + $0x10] sm:$0xff]
    %v1675 = vld [vmem:[%s1671 + $0x18] sm:$0xff]
    %v1676 = vld [vmem:[%s1671 + $0x20] sm:$0xff]
    %v1677 = vld [vmem:[%s1671 + $0x28] sm:$0xff]
    %v1678 = vld [vmem:[%s1671 + $0x30] sm:$0xff]
    %v1679 = vld [vmem:[%s1671 + $0x38] sm:$0xff]
    %v1680 = vld [vmem:[%s1671 + $0x40] sm:$0xff]
    %v1681 = vld [vmem:[%s1671 + $0x48] sm:$0xff]
    %v1682 = vld [vmem:[%s1671 + $0x50] sm:$0xff]
    %v1683 = vld [vmem:[%s1671 + $0x58] sm:$0xff]
    %v1684 = vld [vmem:[%s1671 + $0x60] sm:$0xff]
    %v1685 = vld [vmem:[%s1671 + $0x68] sm:$0xff]
    %v1686 = vld [vmem:[%s1671 + $0x70] sm:$0xff]
    %v1687 = vld [vmem:[%s1671 + $0x78] sm:$0xff]
    %v1688 = vld [vmem:[%s1671 + $0x80] sm:$0xff]
    %v1689 = vld [vmem:[%s1671 + $0x88] sm:$0xff]
    %v1690 = vld [vmem:[%s1671 + $0x90] sm:$0xff]
    %v1691 = vld [vmem:[%s1671 + $0x98] sm:$0xff]
    %v1692 = vld [vmem:[%s1671 + $0xa0] sm:$0xff]
    %v1693 = vld [vmem:[%s1671 + $0xa8] sm:$0xff]
    %v1694 = vld [vmem:[%s1671 + $0xb0] sm:$0xff]
    %v1695 = vld [vmem:[%s1671 + $0xb8] sm:$0xff]
    %v1696 = vld [vmem:[%s1671 + $0xc0] sm:$0xff]
    %v1697 = vld [vmem:[%s1671 + $0xc8] sm:$0xff]
    %v1698 = vld [vmem:[%s1671 + $0xd0] sm:$0xff]
    %v1699 = vld [vmem:[%s1671 + $0xd8] sm:$0xff]
    %v1700 = vld [vmem:[%s1671 + $0xe0] sm:$0xff]
    %v1701 = vld [vmem:[%s1671 + $0xe8] sm:$0xff]
    %v1702 = vld [vmem:[%s1671 + $0xf0] sm:$0xff]
    %v1703 = vld [vmem:[%s1671 + $0xf8] sm:$0xff]
    %v1704 = vld [vmem:[%s1671 + $0x100] sm:$0xff]
    %v1705 = vld [vmem:[%s1671 + $0x108] sm:$0xff]
    %v1706 = vld [vmem:[%s1671 + $0x110] sm:$0xff]
    %v1707 = vld [vmem:[%s1671 + $0x118] sm:$0xff]
    %v1708 = vld [vmem:[%s1671 + $0x120] sm:$0xff]
    %v1709 = vld [vmem:[%s1671 + $0x128] sm:$0xff]
    %v1710 = vld [vmem:[%s1671 + $0x130] sm:$0xff]
    %v1711 = vld [vmem:[%s1671 + $0x138] sm:$0xff]
    %v1712 = vld [vmem:[%s1671 + $0x140] sm:$0xff]
    %v1713 = vld [vmem:[%s1671 + $0x148] sm:$0xff]
    %v1714 = vld [vmem:[%s1671 + $0x150] sm:$0xff]
    %v1715 = vld [vmem:[%s1671 + $0x158] sm:$0xff]
    %v1716 = vld [vmem:[%s1671 + $0x160] sm:$0xff]
    %v1717 = vld [vmem:[%s1671 + $0x168] sm:$0xff]
    %v1718 = vld [vmem:[%s1671 + $0x170] sm:$0xff]
    %v1719 = vld [vmem:[%s1671 + $0x178] sm:$0xff]
    %1720 = vmatprep.subr.mxu0 %v1673
    %1721 = vmatpush1.msra.mxu0 %v1672
    %1722 = vmatprep.subr.mxu0 %v1676
    %1723 = vmatpush1.msra.mxu0 %v1675
    %1724 = vmatprep.subr.mxu0 %v1679
    %1725 = vmatpush1.msra.mxu0 %v1678
    %1726 = vmatprep.subr.mxu0 %v1682
    %1727 = vmatpush1.msra.mxu0 %v1681
    %1728 = vmatprep.subr.mxu0 %v1685
    %1729 = vmatpush1.msra.mxu0 %v1684
    %1730 = vmatprep.subr.mxu0 %v1688
    %1731 = vmatpush1.msra.mxu0 %v1687
    %1732 = vmatprep.subr.mxu0 %v1691
    %1733 = vmatpush1.msra.mxu0 %v1690
    %1734 = vmatprep.subr.mxu0 %v1694
    %1735 = vmatpush1.msra.mxu0 %v1693
    %1736 = vmatprep.subr.mxu0 %v1697
    %1737 = vmatpush1.msra.mxu0 %v1696
    %1738 = vmatprep.subr.mxu0 %v1700
    %1739 = vmatpush1.msra.mxu0 %v1699
    %1740 = vmatprep.subr.mxu0 %v1703
    %1741 = vmatpush1.msra.mxu0 %v1702
    %1742 = vmatprep.subr.mxu0 %v1706
    %1743 = vmatpush1.msra.mxu0 %v1705
    %1744 = vmatprep.subr.mxu0 %v1709
    %1745 = vmatpush1.msra.mxu0 %v1708
    %1746 = vmatprep.subr.mxu0 %v1712
    %1747 = vmatpush1.msra.mxu0 %v1711
    %1748 = vmatprep.subr.mxu0 %v1715
    %1749 = vmatpush1.msra.mxu0 %v1714
    %1750 = vmatprep.subr.mxu0 %v1718
    %1751 = vmatpush1.msra.mxu0 %v1717
    %1752 = vmatprep.subr.mxu0 0.0
    %1753 = vmatpush1.msra.mxu0 0.0
    %1754 = vmatprep.subr.mxu0 0.0
    %1755 = vmatpush1.msra.mxu0 0.0
    %1756 = vmatprep.subr.mxu0 0.0
    %1757 = vmatpush1.msra.mxu0 0.0
    %1758 = vmatprep.subr.mxu0 0.0
    %1759 = vmatpush1.msra.mxu0 0.0
    %1760 = vmatprep.subr.mxu0 0.0
    %1761 = vmatpush1.msra.mxu0 0.0
    %1762 = vmatprep.subr.mxu0 0.0
    %1763 = vmatpush1.msra.mxu0 0.0
    %1764 = vmatprep.subr.mxu0 0.0
    %1765 = vmatpush1.msra.mxu0 0.0
    %1766 = vmatprep.subr.mxu0 0.0
    %1767 = vmatpush1.msra.mxu0 0.0
    %1768 = vmatprep.subr.mxu0 0.0
    %1769 = vmatpush1.msra.mxu0 0.0
    %1770 = vmatprep.subr.mxu0 0.0
    %1771 = vmatpush1.msra.mxu0 0.0
    %1772 = vmatprep.subr.mxu0 0.0
    %1773 = vmatpush1.msra.mxu0 0.0
    %1774 = vmatprep.subr.mxu0 0.0
    %1775 = vmatpush1.msra.mxu0 0.0
    %1776 = vmatprep.subr.mxu0 0.0
    %1777 = vmatpush1.msra.mxu0 0.0
    %1778 = vmatprep.subr.mxu0 0.0
    %1779 = vmatpush1.msra.mxu0 0.0
    %1780 = vmatprep.subr.mxu0 0.0
    %1781 = vmatpush1.msra.mxu0 0.0
    %1782 = vmatprep.subr.mxu0 0.0
    %1783 = vmatpush1.msra.mxu0 0.0
    %1784 = vmatprep.mubr.f32.mxu0 0.0
    %1785 = vmatmul.mubr.f32.gmra.mrb[0].mxu0 %v1667
    %v1786 = vpop.f32.mrb[0].mxu0
    %v1787 = vadd.f32 0.0, %v1786
    %v1788 = vpop.f32.mrb[0].mxu0
    %v1789 = vadd.f32 0.0, %v1788
    %1790 = vmatprep.mubr.f32.mxu0 0.0
    %1791 = vmatmul.mubr.f32.gmra.mrb[0].mxu0 %v1668
    %v1792 = vpop.f32.mrb[0].mxu0
    %v1793 = vadd.f32 0.0, %v1792
    %v1794 = vpop.f32.mrb[0].mxu0
    %v1795 = vadd.f32 0.0, %v1794
    %1796 = vmatprep.mubr.f32.mxu0 0.0
    %1797 = vmatmul.mubr.f32.gmra.mrb[0].mxu0 %v1669
    %v1798 = vpop.f32.mrb[0].mxu0
    %v1799 = vadd.f32 0.0, %v1798
    %v1800 = vpop.f32.mrb[0].mxu0
    %v1801 = vadd.f32 0.0, %v1800
    %1802 = vmatprep.mubr.f32.mxu0 0.0
    %1803 = vmatmul.mubr.f32.gmra.mrb[0].mxu0 %v1670
    %v1804 = vpop.f32.mrb[0].mxu0
    %v1805 = vadd.f32 0.0, %v1804
    %v1806 = vpop.f32.mrb[0].mxu0
    %v1807 = vadd.f32 0.0, %v1806
    %1808 = vdwg.mxu0
    %1809 = vmatprep.subr.mxu0 0.0
    %1810 = vmatpush1.msra.mxu0 %v1674
    %1811 = vmatprep.subr.mxu0 0.0
    %1812 = vmatpush1.msra.mxu0 %v1677
    %1813 = vmatprep.subr.mxu0 0.0
    %1814 = vmatpush1.msra.mxu0 %v1680
    %1815 = vmatprep.subr.mxu0 0.0
    %1816 = vmatpush1.msra.mxu0 %v1683
    %1817 = vmatprep.subr.mxu0 0.0
    %1818 = vmatpush1.msra.mxu0 %v1686
    %1819 = vmatprep.subr.mxu0 0.0
    %1820 = vmatpush1.msra.mxu0 %v1689
    %1821 = vmatprep.subr.mxu0 0.0
    %1822 = vmatpush1.msra.mxu0 %v1692
    %1823 = vmatprep.subr.mxu0 0.0
    %1824 = vmatpush1.msra.mxu0 %v1695
    %1825 = vmatprep.subr.mxu0 0.0
    %1826 = vmatpush1.msra.mxu0 %v1698
    %1827 = vmatprep.subr.mxu0 0.0
    %1828 = vmatpush1.msra.mxu0 %v1701
    %1829 = vmatprep.subr.mxu0 0.0
    %1830 = vmatpush1.msra.mxu0 %v1704
    %1831 = vmatprep.subr.mxu0 0.0
    %1832 = vmatpush1.msra.mxu0 %v1707
    %1833 = vmatprep.subr.mxu0 0.0
    %1834 = vmatpush1.msra.mxu0 %v1710
    %1835 = vmatprep.subr.mxu0 0.0
    %1836 = vmatpush1.msra.mxu0 %v1713
    %1837 = vmatprep.subr.mxu0 0.0
    %1838 = vmatpush1.msra.mxu0 %v1716
    %1839 = vmatprep.subr.mxu0 0.0
    %1840 = vmatpush1.msra.mxu0 %v1719
    %1841 = vmatprep.subr.mxu0 0.0
    %1842 = vmatpush1.msra.mxu0 0.0
    %1843 = vmatprep.subr.mxu0 0.0
    %1844 = vmatpush1.msra.mxu0 0.0
    %1845 = vmatprep.subr.mxu0 0.0
    %1846 = vmatpush1.msra.mxu0 0.0
    %1847 = vmatprep.subr.mxu0 0.0
    %1848 = vmatpush1.msra.mxu0 0.0
    %1849 = vmatprep.subr.mxu0 0.0
    %1850 = vmatpush1.msra.mxu0 0.0
    %1851 = vmatprep.subr.mxu0 0.0
    %1852 = vmatpush1.msra.mxu0 0.0
    %1853 = vmatprep.subr.mxu0 0.0
    %1854 = vmatpush1.msra.mxu0 0.0
    %1855 = vmatprep.subr.mxu0 0.0
    %1856 = vmatpush1.msra.mxu0 0.0
    %1857 = vmatprep.subr.mxu0 0.0
    %1858 = vmatpush1.msra.mxu0 0.0
    %1859 = vmatprep.subr.mxu0 0.0
    %1860 = vmatpush1.msra.mxu0 0.0
    %1861 = vmatprep.subr.mxu0 0.0
    %1862 = vmatpush1.msra.mxu0 0.0
    %1863 = vmatprep.subr.mxu0 0.0
    %1864 = vmatpush1.msra.mxu0 0.0
    %1865 = vmatprep.subr.mxu0 0.0
    %1866 = vmatpush1.msra.mxu0 0.0
    %1867 = vmatprep.subr.mxu0 0.0
    %1868 = vmatpush1.msra.mxu0 0.0
    %1869 = vmatprep.subr.mxu0 0.0
    %1870 = vmatpush1.msra.mxu0 0.0
    %1871 = vmatprep.subr.mxu0 0.0
    %1872 = vmatpush1.msra.mxu0 0.0
    %1873 = vmatprep.mubr.f32.mxu0 0.0
    %1874 = vmatmul.mubr.f32.gmra.mrb[0].mxu0 %v1667
    %v1875 = vpop.f32.mrb[0].mxu0
    %v1876 = vadd.f32 0.0, %v1875
    %v1877 = vpop.f32.mrb[0].mxu0
    %1878 = vmatprep.mubr.f32.mxu0 0.0
    %1879 = vmatmul.mubr.f32.gmra.mrb[0].mxu0 %v1668
    %v1880 = vpop.f32.mrb[0].mxu0
    %v1881 = vadd.f32 0.0, %v1880
    %v1882 = vpop.f32.mrb[0].mxu0
    %1883 = vmatprep.mubr.f32.mxu0 0.0
    %1884 = vmatmul.mubr.f32.gmra.mrb[0].mxu0 %v1669
    %v1885 = vpop.f32.mrb[0].mxu0
    %v1886 = vadd.f32 0.0, %v1885
    %v1887 = vpop.f32.mrb[0].mxu0
    %1888 = vmatprep.mubr.f32.mxu0 0.0
    %1889 = vmatmul.mubr.f32.gmra.mrb[0].mxu0 %v1670
    %v1890 = vpop.f32.mrb[0].mxu0
    %v1891 = vadd.f32 0.0, %v1890
    %v1892 = vpop.f32.mrb[0].mxu0
    %1893 = vdwg.mxu0
    %v1894 = vadd.f32 %v1655, %v1787
    %v1895 = vadd.f32 %v1656, %v1789
    %v1896 = vadd.f32 %v1657, %v1876
    %v1897 = vadd.f32 %v1658, %v1793
    %v1898 = vadd.f32 %v1659, %v1795
    %v1899 = vadd.f32 %v1660, %v1881
    %v1900 = vadd.f32 %v1661, %v1799
    %v1901 = vadd.f32 %v1662, %v1801
    %v1902 = vadd.f32 %v1663, %v1886
    %v1903 = vadd.f32 %v1664, %v1805
    %v1904 = vadd.f32 %v1665, %v1807
    %v1905 = vadd.f32 %v1666, %v1891
    %v1906 = vld [vmem:[#allocation2 + $0x6] sm:$0xff]
    %v1907 = vld [vmem:[#allocation2 + $0xe] sm:$0xff]
    %v1908 = vld [vmem:[#allocation2 + $0x16] sm:$0xff]
    %v1909 = vld [vmem:[#allocation2 + $0x1e] sm:$0xff]
    %s1910 = scalar_lea.vmem [#allocation7], 2304
    %v1911 = vld [vmem:[%s1910] sm:$0xff]
    %v1912 = vld [vmem:[%s1910 + $0x8] sm:$0xff]
    %v1913 = vld [vmem:[%s1910 + $0x10] sm:$0xff]
    %v1914 = vld [vmem:[%s1910 + $0x18] sm:$0xff]
    %v1915 = vld [vmem:[%s1910 + $0x20] sm:$0xff]
    %v1916 = vld [vmem:[%s1910 + $0x28] sm:$0xff]
    %v1917 = vld [vmem:[%s1910 + $0x30] sm:$0xff]
    %v1918 = vld [vmem:[%s1910 + $0x38] sm:$0xff]
    %v1919 = vld [vmem:[%s1910 + $0x40] sm:$0xff]
    %v1920 = vld [vmem:[%s1910 + $0x48] sm:$0xff]
    %v1921 = vld [vmem:[%s1910 + $0x50] sm:$0xff]
    %v1922 = vld [vmem:[%s1910 + $0x58] sm:$0xff]
    %v1923 = vld [vmem:[%s1910 + $0x60] sm:$0xff]
    %v1924 = vld [vmem:[%s1910 + $0x68] sm:$0xff]
    %v1925 = vld [vmem:[%s1910 + $0x70] sm:$0xff]
    %v1926 = vld [vmem:[%s1910 + $0x78] sm:$0xff]
    %v1927 = vld [vmem:[%s1910 + $0x80] sm:$0xff]
    %v1928 = vld [vmem:[%s1910 + $0x88] sm:$0xff]
    %v1929 = vld [vmem:[%s1910 + $0x90] sm:$0xff]
    %v1930 = vld [vmem:[%s1910 + $0x98] sm:$0xff]
    %v1931 = vld [vmem:[%s1910 + $0xa0] sm:$0xff]
    %v1932 = vld [vmem:[%s1910 + $0xa8] sm:$0xff]
    %v1933 = vld [vmem:[%s1910 + $0xb0] sm:$0xff]
    %v1934 = vld [vmem:[%s1910 + $0xb8] sm:$0xff]
    %v1935 = vld [vmem:[%s1910 + $0xc0] sm:$0xff]
    %v1936 = vld [vmem:[%s1910 + $0xc8] sm:$0xff]
    %v1937 = vld [vmem:[%s1910 + $0xd0] sm:$0xff]
    %v1938 = vld [vmem:[%s1910 + $0xd8] sm:$0xff]
    %v1939 = vld [vmem:[%s1910 + $0xe0] sm:$0xff]
    %v1940 = vld [vmem:[%s1910 + $0xe8] sm:$0xff]
    %v1941 = vld [vmem:[%s1910 + $0xf0] sm:$0xff]
    %v1942 = vld [vmem:[%s1910 + $0xf8] sm:$0xff]
    %v1943 = vld [vmem:[%s1910 + $0x100] sm:$0xff]
    %v1944 = vld [vmem:[%s1910 + $0x108] sm:$0xff]
    %v1945 = vld [vmem:[%s1910 + $0x110] sm:$0xff]
    %v1946 = vld [vmem:[%s1910 + $0x118] sm:$0xff]
    %v1947 = vld [vmem:[%s1910 + $0x120] sm:$0xff]
    %v1948 = vld [vmem:[%s1910 + $0x128] sm:$0xff]
    %v1949 = vld [vmem:[%s1910 + $0x130] sm:$0xff]
    %v1950 = vld [vmem:[%s1910 + $0x138] sm:$0xff]
    %v1951 = vld [vmem:[%s1910 + $0x140] sm:$0xff]
    %v1952 = vld [vmem:[%s1910 + $0x148] sm:$0xff]
    %v1953 = vld [vmem:[%s1910 + $0x150] sm:$0xff]
    %v1954 = vld [vmem:[%s1910 + $0x158] sm:$0xff]
    %v1955 = vld [vmem:[%s1910 + $0x160] sm:$0xff]
    %v1956 = vld [vmem:[%s1910 + $0x168] sm:$0xff]
    %v1957 = vld [vmem:[%s1910 + $0x170] sm:$0xff]
    %v1958 = vld [vmem:[%s1910 + $0x178] sm:$0xff]
    %1959 = vmatprep.subr.mxu0 %v1912
    %1960 = vmatpush1.msra.mxu0 %v1911
    %1961 = vmatprep.subr.mxu0 %v1915
    %1962 = vmatpush1.msra.mxu0 %v1914
    %1963 = vmatprep.subr.mxu0 %v1918
    %1964 = vmatpush1.msra.mxu0 %v1917
    %1965 = vmatprep.subr.mxu0 %v1921
    %1966 = vmatpush1.msra.mxu0 %v1920
    %1967 = vmatprep.subr.mxu0 %v1924
    %1968 = vmatpush1.msra.mxu0 %v1923
    %1969 = vmatprep.subr.mxu0 %v1927
    %1970 = vmatpush1.msra.mxu0 %v1926
    %1971 = vmatprep.subr.mxu0 %v1930
    %1972 = vmatpush1.msra.mxu0 %v1929
    %1973 = vmatprep.subr.mxu0 %v1933
    %1974 = vmatpush1.msra.mxu0 %v1932
    %1975 = vmatprep.subr.mxu0 %v1936
    %1976 = vmatpush1.msra.mxu0 %v1935
    %1977 = vmatprep.subr.mxu0 %v1939
    %1978 = vmatpush1.msra.mxu0 %v1938
    %1979 = vmatprep.subr.mxu0 %v1942
    %1980 = vmatpush1.msra.mxu0 %v1941
    %1981 = vmatprep.subr.mxu0 %v1945
    %1982 = vmatpush1.msra.mxu0 %v1944
    %1983 = vmatprep.subr.mxu0 %v1948
    %1984 = vmatpush1.msra.mxu0 %v1947
    %1985 = vmatprep.subr.mxu0 %v1951
    %1986 = vmatpush1.msra.mxu0 %v1950
    %1987 = vmatprep.subr.mxu0 %v1954
    %1988 = vmatpush1.msra.mxu0 %v1953
    %1989 = vmatprep.subr.mxu0 %v1957
    %1990 = vmatpush1.msra.mxu0 %v1956
    %1991 = vmatprep.subr.mxu0 0.0
    %1992 = vmatpush1.msra.mxu0 0.0
    %1993 = vmatprep.subr.mxu0 0.0
    %1994 = vmatpush1.msra.mxu0 0.0
    %1995 = vmatprep.subr.mxu0 0.0
    %1996 = vmatpush1.msra.mxu0 0.0
    %1997 = vmatprep.subr.mxu0 0.0
    %1998 = vmatpush1.msra.mxu0 0.0
    %1999 = vmatprep.subr.mxu0 0.0
    %2000 = vmatpush1.msra.mxu0 0.0
    %2001 = vmatprep.subr.mxu0 0.0
    %2002 = vmatpush1.msra.mxu0 0.0
    %2003 = vmatprep.subr.mxu0 0.0
    %2004 = vmatpush1.msra.mxu0 0.0
    %2005 = vmatprep.subr.mxu0 0.0
    %2006 = vmatpush1.msra.mxu0 0.0
    %2007 = vmatprep.subr.mxu0 0.0
    %2008 = vmatpush1.msra.mxu0 0.0
    %2009 = vmatprep.subr.mxu0 0.0
    %2010 = vmatpush1.msra.mxu0 0.0
    %2011 = vmatprep.subr.mxu0 0.0
    %2012 = vmatpush1.msra.mxu0 0.0
    %2013 = vmatprep.subr.mxu0 0.0
    %2014 = vmatpush1.msra.mxu0 0.0
    %2015 = vmatprep.subr.mxu0 0.0
    %2016 = vmatpush1.msra.mxu0 0.0
    %2017 = vmatprep.subr.mxu0 0.0
    %2018 = vmatpush1.msra.mxu0 0.0
    %2019 = vmatprep.subr.mxu0 0.0
    %2020 = vmatpush1.msra.mxu0 0.0
    %2021 = vmatprep.subr.mxu0 0.0
    %2022 = vmatpush1.msra.mxu0 0.0
    %2023 = vmatprep.mubr.f32.mxu0 0.0
    %2024 = vmatmul.mubr.f32.gmra.mrb[0].mxu0 %v1906
    %v2025 = vpop.f32.mrb[0].mxu0
    %v2026 = vadd.f32 0.0, %v2025
    %v2027 = vpop.f32.mrb[0].mxu0
    %v2028 = vadd.f32 0.0, %v2027
    %2029 = vmatprep.mubr.f32.mxu0 0.0
    %2030 = vmatmul.mubr.f32.gmra.mrb[0].mxu0 %v1907
    %v2031 = vpop.f32.mrb[0].mxu0
    %v2032 = vadd.f32 0.0, %v2031
    %v2033 = vpop.f32.mrb[0].mxu0
    %v2034 = vadd.f32 0.0, %v2033
    %2035 = vmatprep.mubr.f32.mxu0 0.0
    %2036 = vmatmul.mubr.f32.gmra.mrb[0].mxu0 %v1908
    %v2037 = vpop.f32.mrb[0].mxu0
    %v2038 = vadd.f32 0.0, %v2037
    %v2039 = vpop.f32.mrb[0].mxu0
    %v2040 = vadd.f32 0.0, %v2039
    %2041 = vmatprep.mubr.f32.mxu0 0.0
    %2042 = vmatmul.mubr.f32.gmra.mrb[0].mxu0 %v1909
    %v2043 = vpop.f32.mrb[0].mxu0
    %v2044 = vadd.f32 0.0, %v2043
    %v2045 = vpop.f32.mrb[0].mxu0
    %v2046 = vadd.f32 0.0, %v2045
    %2047 = vdwg.mxu0
    %2048 = vmatprep.subr.mxu0 0.0
    %2049 = vmatpush1.msra.mxu0 %v1913
    %2050 = vmatprep.subr.mxu0 0.0
    %2051 = vmatpush1.msra.mxu0 %v1916
    %2052 = vmatprep.subr.mxu0 0.0
    %2053 = vmatpush1.msra.mxu0 %v1919
    %2054 = vmatprep.subr.mxu0 0.0
    %2055 = vmatpush1.msra.mxu0 %v1922
    %2056 = vmatprep.subr.mxu0 0.0
    %2057 = vmatpush1.msra.mxu0 %v1925
    %2058 = vmatprep.subr.mxu0 0.0
    %2059 = vmatpush1.msra.mxu0 %v1928
    %2060 = vmatprep.subr.mxu0 0.0
    %2061 = vmatpush1.msra.mxu0 %v1931
    %2062 = vmatprep.subr.mxu0 0.0
    %2063 = vmatpush1.msra.mxu0 %v1934
    %2064 = vmatprep.subr.mxu0 0.0
    %2065 = vmatpush1.msra.mxu0 %v1937
    %2066 = vmatprep.subr.mxu0 0.0
    %2067 = vmatpush1.msra.mxu0 %v1940
    %2068 = vmatprep.subr.mxu0 0.0
    %2069 = vmatpush1.msra.mxu0 %v1943
    %2070 = vmatprep.subr.mxu0 0.0
    %2071 = vmatpush1.msra.mxu0 %v1946
    %2072 = vmatprep.subr.mxu0 0.0
    %2073 = vmatpush1.msra.mxu0 %v1949
    %2074 = vmatprep.subr.mxu0 0.0
    %2075 = vmatpush1.msra.mxu0 %v1952
    %2076 = vmatprep.subr.mxu0 0.0
    %2077 = vmatpush1.msra.mxu0 %v1955
    %2078 = vmatprep.subr.mxu0 0.0
    %2079 = vmatpush1.msra.mxu0 %v1958
    %2080 = vmatprep.subr.mxu0 0.0
    %2081 = vmatpush1.msra.mxu0 0.0
    %2082 = vmatprep.subr.mxu0 0.0
    %2083 = vmatpush1.msra.mxu0 0.0
    %2084 = vmatprep.subr.mxu0 0.0
    %2085 = vmatpush1.msra.mxu0 0.0
    %2086 = vmatprep.subr.mxu0 0.0
    %2087 = vmatpush1.msra.mxu0 0.0
    %2088 = vmatprep.subr.mxu0 0.0
    %2089 = vmatpush1.msra.mxu0 0.0
    %2090 = vmatprep.subr.mxu0 0.0
    %2091 = vmatpush1.msra.mxu0 0.0
    %2092 = vmatprep.subr.mxu0 0.0
    %2093 = vmatpush1.msra.mxu0 0.0
    %2094 = vmatprep.subr.mxu0 0.0
    %2095 = vmatpush1.msra.mxu0 0.0
    %2096 = vmatprep.subr.mxu0 0.0
    %2097 = vmatpush1.msra.mxu0 0.0
    %2098 = vmatprep.subr.mxu0 0.0
    %2099 = vmatpush1.msra.mxu0 0.0
    %2100 = vmatprep.subr.mxu0 0.0
    %2101 = vmatpush1.msra.mxu0 0.0
    %2102 = vmatprep.subr.mxu0 0.0
    %2103 = vmatpush1.msra.mxu0 0.0
    %2104 = vmatprep.subr.mxu0 0.0
    %2105 = vmatpush1.msra.mxu0 0.0
    %2106 = vmatprep.subr.mxu0 0.0
    %2107 = vmatpush1.msra.mxu0 0.0
    %2108 = vmatprep.subr.mxu0 0.0
    %2109 = vmatpush1.msra.mxu0 0.0
    %2110 = vmatprep.subr.mxu0 0.0
    %2111 = vmatpush1.msra.mxu0 0.0
    %2112 = vmatprep.mubr.f32.mxu0 0.0
    %2113 = vmatmul.mubr.f32.gmra.mrb[0].mxu0 %v1906
    %v2114 = vpop.f32.mrb[0].mxu0
    %v2115 = vadd.f32 0.0, %v2114
    %v2116 = vpop.f32.mrb[0].mxu0
    %2117 = vmatprep.mubr.f32.mxu0 0.0
    %2118 = vmatmul.mubr.f32.gmra.mrb[0].mxu0 %v1907
    %v2119 = vpop.f32.mrb[0].mxu0
    %v2120 = vadd.f32 0.0, %v2119
    %v2121 = vpop.f32.mrb[0].mxu0
    %2122 = vmatprep.mubr.f32.mxu0 0.0
    %2123 = vmatmul.mubr.f32.gmra.mrb[0].mxu0 %v1908
    %v2124 = vpop.f32.mrb[0].mxu0
    %v2125 = vadd.f32 0.0, %v2124
    %v2126 = vpop.f32.mrb[0].mxu0
    %2127 = vmatprep.mubr.f32.mxu0 0.0
    %2128 = vmatmul.mubr.f32.gmra.mrb[0].mxu0 %v1909
    %v2129 = vpop.f32.mrb[0].mxu0
    %v2130 = vadd.f32 0.0, %v2129
    %v2131 = vpop.f32.mrb[0].mxu0
    %2132 = vdwg.mxu0
    %v2133 = vadd.f32 %v1894, %v2026
    %v2134 = vadd.f32 %v1895, %v2028
    %v2135 = vadd.f32 %v1896, %v2115
    %v2136 = vadd.f32 %v1897, %v2032
    %v2137 = vadd.f32 %v1898, %v2034
    %v2138 = vadd.f32 %v1899, %v2120
    %v2139 = vadd.f32 %v1900, %v2038
    %v2140 = vadd.f32 %v1901, %v2040
    %v2141 = vadd.f32 %v1902, %v2125
    %v2142 = vadd.f32 %v1903, %v2044
    %v2143 = vadd.f32 %v1904, %v2046
    %v2144 = vadd.f32 %v1905, %v2130
    %v2145 = vld [vmem:[#allocation2 + $0x7] sm:$0xff]
    %v2146 = vld [vmem:[#allocation2 + $0xf] sm:$0xff]
    %v2147 = vld [vmem:[#allocation2 + $0x17] sm:$0xff]
    %v2148 = vld [vmem:[#allocation2 + $0x1f] sm:$0xff]
    %s2149 = scalar_lea.vmem [#allocation7], 2688
    %v2150 = vld [vmem:[%s2149] sm:$0xff]
    %v2151 = vld [vmem:[%s2149 + $0x8] sm:$0xff]
    %v2152 = vld [vmem:[%s2149 + $0x10] sm:$0xff]
    %v2153 = vld [vmem:[%s2149 + $0x18] sm:$0xff]
    %v2154 = vld [vmem:[%s2149 + $0x20] sm:$0xff]
    %v2155 = vld [vmem:[%s2149 + $0x28] sm:$0xff]
    %v2156 = vld [vmem:[%s2149 + $0x30] sm:$0xff]
    %v2157 = vld [vmem:[%s2149 + $0x38] sm:$0xff]
    %v2158 = vld [vmem:[%s2149 + $0x40] sm:$0xff]
    %v2159 = vld [vmem:[%s2149 + $0x48] sm:$0xff]
    %v2160 = vld [vmem:[%s2149 + $0x50] sm:$0xff]
    %v2161 = vld [vmem:[%s2149 + $0x58] sm:$0xff]
    %v2162 = vld [vmem:[%s2149 + $0x60] sm:$0xff]
    %v2163 = vld [vmem:[%s2149 + $0x68] sm:$0xff]
    %v2164 = vld [vmem:[%s2149 + $0x70] sm:$0xff]
    %v2165 = vld [vmem:[%s2149 + $0x78] sm:$0xff]
    %v2166 = vld [vmem:[%s2149 + $0x80] sm:$0xff]
    %v2167 = vld [vmem:[%s2149 + $0x88] sm:$0xff]
    %v2168 = vld [vmem:[%s2149 + $0x90] sm:$0xff]
    %v2169 = vld [vmem:[%s2149 + $0x98] sm:$0xff]
    %v2170 = vld [vmem:[%s2149 + $0xa0] sm:$0xff]
    %v2171 = vld [vmem:[%s2149 + $0xa8] sm:$0xff]
    %v2172 = vld [vmem:[%s2149 + $0xb0] sm:$0xff]
    %v2173 = vld [vmem:[%s2149 + $0xb8] sm:$0xff]
    %v2174 = vld [vmem:[%s2149 + $0xc0] sm:$0xff]
    %v2175 = vld [vmem:[%s2149 + $0xc8] sm:$0xff]
    %v2176 = vld [vmem:[%s2149 + $0xd0] sm:$0xff]
    %v2177 = vld [vmem:[%s2149 + $0xd8] sm:$0xff]
    %v2178 = vld [vmem:[%s2149 + $0xe0] sm:$0xff]
    %v2179 = vld [vmem:[%s2149 + $0xe8] sm:$0xff]
    %v2180 = vld [vmem:[%s2149 + $0xf0] sm:$0xff]
    %v2181 = vld [vmem:[%s2149 + $0xf8] sm:$0xff]
    %v2182 = vld [vmem:[%s2149 + $0x100] sm:$0xff]
    %v2183 = vld [vmem:[%s2149 + $0x108] sm:$0xff]
    %v2184 = vld [vmem:[%s2149 + $0x110] sm:$0xff]
    %v2185 = vld [vmem:[%s2149 + $0x118] sm:$0xff]
    %v2186 = vld [vmem:[%s2149 + $0x120] sm:$0xff]
    %v2187 = vld [vmem:[%s2149 + $0x128] sm:$0xff]
    %v2188 = vld [vmem:[%s2149 + $0x130] sm:$0xff]
    %v2189 = vld [vmem:[%s2149 + $0x138] sm:$0xff]
    %v2190 = vld [vmem:[%s2149 + $0x140] sm:$0xff]
    %v2191 = vld [vmem:[%s2149 + $0x148] sm:$0xff]
    %v2192 = vld [vmem:[%s2149 + $0x150] sm:$0xff]
    %v2193 = vld [vmem:[%s2149 + $0x158] sm:$0xff]
    %v2194 = vld [vmem:[%s2149 + $0x160] sm:$0xff]
    %v2195 = vld [vmem:[%s2149 + $0x168] sm:$0xff]
    %v2196 = vld [vmem:[%s2149 + $0x170] sm:$0xff]
    %v2197 = vld [vmem:[%s2149 + $0x178] sm:$0xff]
    %2198 = vmatprep.subr.mxu0 %v2151
    %2199 = vmatpush1.msra.mxu0 %v2150
    %2200 = vmatprep.subr.mxu0 %v2154
    %2201 = vmatpush1.msra.mxu0 %v2153
    %2202 = vmatprep.subr.mxu0 %v2157
    %2203 = vmatpush1.msra.mxu0 %v2156
    %2204 = vmatprep.subr.mxu0 %v2160
    %2205 = vmatpush1.msra.mxu0 %v2159
    %2206 = vmatprep.subr.mxu0 %v2163
    %2207 = vmatpush1.msra.mxu0 %v2162
    %2208 = vmatprep.subr.mxu0 %v2166
    %2209 = vmatpush1.msra.mxu0 %v2165
    %2210 = vmatprep.subr.mxu0 %v2169
    %2211 = vmatpush1.msra.mxu0 %v2168
    %2212 = vmatprep.subr.mxu0 %v2172
    %2213 = vmatpush1.msra.mxu0 %v2171
    %2214 = vmatprep.subr.mxu0 %v2175
    %2215 = vmatpush1.msra.mxu0 %v2174
    %2216 = vmatprep.subr.mxu0 %v2178
    %2217 = vmatpush1.msra.mxu0 %v2177
    %2218 = vmatprep.subr.mxu0 %v2181
    %2219 = vmatpush1.msra.mxu0 %v2180
    %2220 = vmatprep.subr.mxu0 %v2184
    %2221 = vmatpush1.msra.mxu0 %v2183
    %2222 = vmatprep.subr.mxu0 %v2187
    %2223 = vmatpush1.msra.mxu0 %v2186
    %2224 = vmatprep.subr.mxu0 %v2190
    %2225 = vmatpush1.msra.mxu0 %v2189
    %2226 = vmatprep.subr.mxu0 %v2193
    %2227 = vmatpush1.msra.mxu0 %v2192
    %2228 = vmatprep.subr.mxu0 %v2196
    %2229 = vmatpush1.msra.mxu0 %v2195
    %2230 = vmatprep.subr.mxu0 0.0
    %2231 = vmatpush1.msra.mxu0 0.0
    %2232 = vmatprep.subr.mxu0 0.0
    %2233 = vmatpush1.msra.mxu0 0.0
    %2234 = vmatprep.subr.mxu0 0.0
    %2235 = vmatpush1.msra.mxu0 0.0
    %2236 = vmatprep.subr.mxu0 0.0
    %2237 = vmatpush1.msra.mxu0 0.0
    %2238 = vmatprep.subr.mxu0 0.0
    %2239 = vmatpush1.msra.mxu0 0.0
    %2240 = vmatprep.subr.mxu0 0.0
    %2241 = vmatpush1.msra.mxu0 0.0
    %2242 = vmatprep.subr.mxu0 0.0
    %2243 = vmatpush1.msra.mxu0 0.0
    %2244 = vmatprep.subr.mxu0 0.0
    %2245 = vmatpush1.msra.mxu0 0.0
    %2246 = vmatprep.subr.mxu0 0.0
    %2247 = vmatpush1.msra.mxu0 0.0
    %2248 = vmatprep.subr.mxu0 0.0
    %2249 = vmatpush1.msra.mxu0 0.0
    %2250 = vmatprep.subr.mxu0 0.0
    %2251 = vmatpush1.msra.mxu0 0.0
    %2252 = vmatprep.subr.mxu0 0.0
    %2253 = vmatpush1.msra.mxu0 0.0
    %2254 = vmatprep.subr.mxu0 0.0
    %2255 = vmatpush1.msra.mxu0 0.0
    %2256 = vmatprep.subr.mxu0 0.0
    %2257 = vmatpush1.msra.mxu0 0.0
    %2258 = vmatprep.subr.mxu0 0.0
    %2259 = vmatpush1.msra.mxu0 0.0
    %2260 = vmatprep.subr.mxu0 0.0
    %2261 = vmatpush1.msra.mxu0 0.0
    %2262 = vmatprep.mubr.f32.mxu0 0.0
    %2263 = vmatmul.mubr.f32.gmra.mrb[0].mxu0 %v2145
    %v2264 = vpop.f32.mrb[0].mxu0
    %v2265 = vadd.f32 0.0, %v2264
    %v2266 = vpop.f32.mrb[0].mxu0
    %v2267 = vadd.f32 0.0, %v2266
    %2268 = vmatprep.mubr.f32.mxu0 0.0
    %2269 = vmatmul.mubr.f32.gmra.mrb[0].mxu0 %v2146
    %v2270 = vpop.f32.mrb[0].mxu0
    %v2271 = vadd.f32 0.0, %v2270
    %v2272 = vpop.f32.mrb[0].mxu0
    %v2273 = vadd.f32 0.0, %v2272
    %2274 = vmatprep.mubr.f32.mxu0 0.0
    %2275 = vmatmul.mubr.f32.gmra.mrb[0].mxu0 %v2147
    %v2276 = vpop.f32.mrb[0].mxu0
    %v2277 = vadd.f32 0.0, %v2276
    %v2278 = vpop.f32.mrb[0].mxu0
    %v2279 = vadd.f32 0.0, %v2278
    %2280 = vmatprep.mubr.f32.mxu0 0.0
    %2281 = vmatmul.mubr.f32.gmra.mrb[0].mxu0 %v2148
    %v2282 = vpop.f32.mrb[0].mxu0
    %v2283 = vadd.f32 0.0, %v2282
    %v2284 = vpop.f32.mrb[0].mxu0
    %v2285 = vadd.f32 0.0, %v2284
    %2286 = vdwg.mxu0
    %2287 = vmatprep.subr.mxu0 0.0
    %2288 = vmatpush1.msra.mxu0 %v2152
    %2289 = vmatprep.subr.mxu0 0.0
    %2290 = vmatpush1.msra.mxu0 %v2155
    %2291 = vmatprep.subr.mxu0 0.0
    %2292 = vmatpush1.msra.mxu0 %v2158
    %2293 = vmatprep.subr.mxu0 0.0
    %2294 = vmatpush1.msra.mxu0 %v2161
    %2295 = vmatprep.subr.mxu0 0.0
    %2296 = vmatpush1.msra.mxu0 %v2164
    %2297 = vmatprep.subr.mxu0 0.0
    %2298 = vmatpush1.msra.mxu0 %v2167
    %2299 = vmatprep.subr.mxu0 0.0
    %2300 = vmatpush1.msra.mxu0 %v2170
    %2301 = vmatprep.subr.mxu0 0.0
    %2302 = vmatpush1.msra.mxu0 %v2173
    %2303 = vmatprep.subr.mxu0 0.0
    %2304 = vmatpush1.msra.mxu0 %v2176
    %2305 = vmatprep.subr.mxu0 0.0
    %2306 = vmatpush1.msra.mxu0 %v2179
    %2307 = vmatprep.subr.mxu0 0.0
    %2308 = vmatpush1.msra.mxu0 %v2182
    %2309 = vmatprep.subr.mxu0 0.0
    %2310 = vmatpush1.msra.mxu0 %v2185
    %2311 = vmatprep.subr.mxu0 0.0
    %2312 = vmatpush1.msra.mxu0 %v2188
    %2313 = vmatprep.subr.mxu0 0.0
    %2314 = vmatpush1.msra.mxu0 %v2191
    %2315 = vmatprep.subr.mxu0 0.0
    %2316 = vmatpush1.msra.mxu0 %v2194
    %2317 = vmatprep.subr.mxu0 0.0
    %2318 = vmatpush1.msra.mxu0 %v2197
    %2319 = vmatprep.subr.mxu0 0.0
    %2320 = vmatpush1.msra.mxu0 0.0
    %2321 = vmatprep.subr.mxu0 0.0
    %2322 = vmatpush1.msra.mxu0 0.0
    %2323 = vmatprep.subr.mxu0 0.0
    %2324 = vmatpush1.msra.mxu0 0.0
    %2325 = vmatprep.subr.mxu0 0.0
    %2326 = vmatpush1.msra.mxu0 0.0
    %2327 = vmatprep.subr.mxu0 0.0
    %2328 = vmatpush1.msra.mxu0 0.0
    %2329 = vmatprep.subr.mxu0 0.0
    %2330 = vmatpush1.msra.mxu0 0.0
    %2331 = vmatprep.subr.mxu0 0.0
    %2332 = vmatpush1.msra.mxu0 0.0
    %2333 = vmatprep.subr.mxu0 0.0
    %2334 = vmatpush1.msra.mxu0 0.0
    %2335 = vmatprep.subr.mxu0 0.0
    %2336 = vmatpush1.msra.mxu0 0.0
    %2337 = vmatprep.subr.mxu0 0.0
    %2338 = vmatpush1.msra.mxu0 0.0
    %2339 = vmatprep.subr.mxu0 0.0
    %2340 = vmatpush1.msra.mxu0 0.0
    %2341 = vmatprep.subr.mxu0 0.0
    %2342 = vmatpush1.msra.mxu0 0.0
    %2343 = vmatprep.subr.mxu0 0.0
    %2344 = vmatpush1.msra.mxu0 0.0
    %2345 = vmatprep.subr.mxu0 0.0
    %2346 = vmatpush1.msra.mxu0 0.0
    %2347 = vmatprep.subr.mxu0 0.0
    %2348 = vmatpush1.msra.mxu0 0.0
    %2349 = vmatprep.subr.mxu0 0.0
    %2350 = vmatpush1.msra.mxu0 0.0
    %2351 = vmatprep.mubr.f32.mxu0 0.0
    %2352 = vmatmul.mubr.f32.gmra.mrb[0].mxu0 %v2145
    %v2353 = vpop.f32.mrb[0].mxu0
    %v2354 = vadd.f32 0.0, %v2353
    %v2355 = vpop.f32.mrb[0].mxu0
    %2356 = vmatprep.mubr.f32.mxu0 0.0
    %2357 = vmatmul.mubr.f32.gmra.mrb[0].mxu0 %v2146
    %v2358 = vpop.f32.mrb[0].mxu0
    %v2359 = vadd.f32 0.0, %v2358
    %v2360 = vpop.f32.mrb[0].mxu0
    %2361 = vmatprep.mubr.f32.mxu0 0.0
    %2362 = vmatmul.mubr.f32.gmra.mrb[0].mxu0 %v2147
    %v2363 = vpop.f32.mrb[0].mxu0
    %v2364 = vadd.f32 0.0, %v2363
    %v2365 = vpop.f32.mrb[0].mxu0
    %2366 = vmatprep.mubr.f32.mxu0 0.0
    %2367 = vmatmul.mubr.f32.gmra.mrb[0].mxu0 %v2148
    %v2368 = vpop.f32.mrb[0].mxu0
    %v2369 = vadd.f32 0.0, %v2368
    %v2370 = vpop.f32.mrb[0].mxu0
    %2371 = vdwg.mxu0
    %v2372 = vadd.f32 %v2133, %v2265
    %v2373 = vadd.f32 %v2134, %v2267
    %v2374 = vadd.f32 %v2135, %v2354
    %v2375 = vadd.f32 %v2136, %v2271
    %v2376 = vadd.f32 %v2137, %v2273
    %v2377 = vadd.f32 %v2138, %v2359
    %v2378 = vadd.f32 %v2139, %v2277
    %v2379 = vadd.f32 %v2140, %v2279
    %v2380 = vadd.f32 %v2141, %v2364
    %v2381 = vadd.f32 %v2142, %v2283
    %v2382 = vadd.f32 %v2143, %v2285
    %v2383 = vadd.f32 %v2144, %v2369
    %v2384 = vld [vmem:[#allocation2 + $0x8] sm:$0xff]
    %v2385 = vld [vmem:[#allocation2 + $0x10] sm:$0xff]
    %v2386 = vld [vmem:[#allocation2 + $0x18] sm:$0xff]
    %v2387 = vld [vmem:[#allocation2 + $0x20] sm:$0xff]
    %s2388 = scalar_lea.vmem [#allocation7], 3072
    %v2389 = vld [vmem:[%s2388] sm:$0xff]
    %v2390 = vld [vmem:[%s2388 + $0x8] sm:$0xff]
    %v2391 = vld [vmem:[%s2388 + $0x10] sm:$0xff]
    %v2392 = vld [vmem:[%s2388 + $0x18] sm:$0xff]
    %v2393 = vld [vmem:[%s2388 + $0x20] sm:$0xff]
    %v2394 = vld [vmem:[%s2388 + $0x28] sm:$0xff]
    %v2395 = vld [vmem:[%s2388 + $0x30] sm:$0xff]
    %v2396 = vld [vmem:[%s2388 + $0x38] sm:$0xff]
    %v2397 = vld [vmem:[%s2388 + $0x40] sm:$0xff]
    %v2398 = vld [vmem:[%s2388 + $0x48] sm:$0xff]
    %v2399 = vld [vmem:[%s2388 + $0x50] sm:$0xff]
    %v2400 = vld [vmem:[%s2388 + $0x58] sm:$0xff]
    %v2401 = vld [vmem:[%s2388 + $0x60] sm:$0xff]
    %v2402 = vld [vmem:[%s2388 + $0x68] sm:$0xff]
    %v2403 = vld [vmem:[%s2388 + $0x70] sm:$0xff]
    %v2404 = vld [vmem:[%s2388 + $0x78] sm:$0xff]
    %v2405 = vld [vmem:[%s2388 + $0x80] sm:$0xff]
    %v2406 = vld [vmem:[%s2388 + $0x88] sm:$0xff]
    %v2407 = vld [vmem:[%s2388 + $0x90] sm:$0xff]
    %v2408 = vld [vmem:[%s2388 + $0x98] sm:$0xff]
    %v2409 = vld [vmem:[%s2388 + $0xa0] sm:$0xff]
    %v2410 = vld [vmem:[%s2388 + $0xa8] sm:$0xff]
    %v2411 = vld [vmem:[%s2388 + $0xb0] sm:$0xff]
    %v2412 = vld [vmem:[%s2388 + $0xb8] sm:$0xff]
    %v2413 = vld [vmem:[%s2388 + $0xc0] sm:$0xff]
    %v2414 = vld [vmem:[%s2388 + $0xc8] sm:$0xff]
    %v2415 = vld [vmem:[%s2388 + $0xd0] sm:$0xff]
    %v2416 = vld [vmem:[%s2388 + $0xd8] sm:$0xff]
    %v2417 = vld [vmem:[%s2388 + $0xe0] sm:$0xff]
    %v2418 = vld [vmem:[%s2388 + $0xe8] sm:$0xff]
    %v2419 = vld [vmem:[%s2388 + $0xf0] sm:$0xff]
    %v2420 = vld [vmem:[%s2388 + $0xf8] sm:$0xff]
    %v2421 = vld [vmem:[%s2388 + $0x100] sm:$0xff]
    %v2422 = vld [vmem:[%s2388 + $0x108] sm:$0xff]
    %v2423 = vld [vmem:[%s2388 + $0x110] sm:$0xff]
    %v2424 = vld [vmem:[%s2388 + $0x118] sm:$0xff]
    %v2425 = vld [vmem:[%s2388 + $0x120] sm:$0xff]
    %v2426 = vld [vmem:[%s2388 + $0x128] sm:$0xff]
    %v2427 = vld [vmem:[%s2388 + $0x130] sm:$0xff]
    %v2428 = vld [vmem:[%s2388 + $0x138] sm:$0xff]
    %v2429 = vld [vmem:[%s2388 + $0x140] sm:$0xff]
    %v2430 = vld [vmem:[%s2388 + $0x148] sm:$0xff]
    %v2431 = vld [vmem:[%s2388 + $0x150] sm:$0xff]
    %v2432 = vld [vmem:[%s2388 + $0x158] sm:$0xff]
    %v2433 = vld [vmem:[%s2388 + $0x160] sm:$0xff]
    %v2434 = vld [vmem:[%s2388 + $0x168] sm:$0xff]
    %v2435 = vld [vmem:[%s2388 + $0x170] sm:$0xff]
    %v2436 = vld [vmem:[%s2388 + $0x178] sm:$0xff]
    %2437 = vmatprep.subr.mxu0 %v2390
    %2438 = vmatpush1.msra.mxu0 %v2389
    %2439 = vmatprep.subr.mxu0 %v2393
    %2440 = vmatpush1.msra.mxu0 %v2392
    %2441 = vmatprep.subr.mxu0 %v2396
    %2442 = vmatpush1.msra.mxu0 %v2395
    %2443 = vmatprep.subr.mxu0 %v2399
    %2444 = vmatpush1.msra.mxu0 %v2398
    %2445 = vmatprep.subr.mxu0 %v2402
    %2446 = vmatpush1.msra.mxu0 %v2401
    %2447 = vmatprep.subr.mxu0 %v2405
    %2448 = vmatpush1.msra.mxu0 %v2404
    %2449 = vmatprep.subr.mxu0 %v2408
    %2450 = vmatpush1.msra.mxu0 %v2407
    %2451 = vmatprep.subr.mxu0 %v2411
    %2452 = vmatpush1.msra.mxu0 %v2410
    %2453 = vmatprep.subr.mxu0 %v2414
    %2454 = vmatpush1.msra.mxu0 %v2413
    %2455 = vmatprep.subr.mxu0 %v2417
    %2456 = vmatpush1.msra.mxu0 %v2416
    %2457 = vmatprep.subr.mxu0 %v2420
    %2458 = vmatpush1.msra.mxu0 %v2419
    %2459 = vmatprep.subr.mxu0 %v2423
    %2460 = vmatpush1.msra.mxu0 %v2422
    %2461 = vmatprep.subr.mxu0 %v2426
    %2462 = vmatpush1.msra.mxu0 %v2425
    %2463 = vmatprep.subr.mxu0 %v2429
    %2464 = vmatpush1.msra.mxu0 %v2428
    %2465 = vmatprep.subr.mxu0 %v2432
    %2466 = vmatpush1.msra.mxu0 %v2431
    %2467 = vmatprep.subr.mxu0 %v2435
    %2468 = vmatpush1.msra.mxu0 %v2434
    %2469 = vmatprep.subr.mxu0 0.0
    %2470 = vmatpush1.msra.mxu0 0.0
    %2471 = vmatprep.subr.mxu0 0.0
    %2472 = vmatpush1.msra.mxu0 0.0
    %2473 = vmatprep.subr.mxu0 0.0
    %2474 = vmatpush1.msra.mxu0 0.0
    %2475 = vmatprep.subr.mxu0 0.0
    %2476 = vmatpush1.msra.mxu0 0.0
    %2477 = vmatprep.subr.mxu0 0.0
    %2478 = vmatpush1.msra.mxu0 0.0
    %2479 = vmatprep.subr.mxu0 0.0
    %2480 = vmatpush1.msra.mxu0 0.0
    %2481 = vmatprep.subr.mxu0 0.0
    %2482 = vmatpush1.msra.mxu0 0.0
    %2483 = vmatprep.subr.mxu0 0.0
    %2484 = vmatpush1.msra.mxu0 0.0
    %2485 = vmatprep.subr.mxu0 0.0
    %2486 = vmatpush1.msra.mxu0 0.0
    %2487 = vmatprep.subr.mxu0 0.0
    %2488 = vmatpush1.msra.mxu0 0.0
    %2489 = vmatprep.subr.mxu0 0.0
    %2490 = vmatpush1.msra.mxu0 0.0
    %2491 = vmatprep.subr.mxu0 0.0
    %2492 = vmatpush1.msra.mxu0 0.0
    %2493 = vmatprep.subr.mxu0 0.0
    %2494 = vmatpush1.msra.mxu0 0.0
    %2495 = vmatprep.subr.mxu0 0.0
    %2496 = vmatpush1.msra.mxu0 0.0
    %2497 = vmatprep.subr.mxu0 0.0
    %2498 = vmatpush1.msra.mxu0 0.0
    %2499 = vmatprep.subr.mxu0 0.0
    %2500 = vmatpush1.msra.mxu0 0.0
    %2501 = vmatprep.mubr.f32.mxu0 0.0
    %2502 = vmatmul.mubr.f32.gmra.mrb[0].mxu0 %v2384
    %v2503 = vpop.f32.mrb[0].mxu0
    %v2504 = vadd.f32 0.0, %v2503
    %v2505 = vpop.f32.mrb[0].mxu0
    %v2506 = vadd.f32 0.0, %v2505
    %2507 = vmatprep.mubr.f32.mxu0 0.0
    %2508 = vmatmul.mubr.f32.gmra.mrb[0].mxu0 %v2385
    %v2509 = vpop.f32.mrb[0].mxu0
    %v2510 = vadd.f32 0.0, %v2509
    %v2511 = vpop.f32.mrb[0].mxu0
    %v2512 = vadd.f32 0.0, %v2511
    %2513 = vmatprep.mubr.f32.mxu0 0.0
    %2514 = vmatmul.mubr.f32.gmra.mrb[0].mxu0 %v2386
    %v2515 = vpop.f32.mrb[0].mxu0
    %v2516 = vadd.f32 0.0, %v2515
    %v2517 = vpop.f32.mrb[0].mxu0
    %v2518 = vadd.f32 0.0, %v2517
    %2519 = vmatprep.mubr.f32.mxu0 0.0
    %2520 = vmatmul.mubr.f32.gmra.mrb[0].mxu0 %v2387
    %v2521 = vpop.f32.mrb[0].mxu0
    %v2522 = vadd.f32 0.0, %v2521
    %v2523 = vpop.f32.mrb[0].mxu0
    %v2524 = vadd.f32 0.0, %v2523
    %2525 = vdwg.mxu0
    %2526 = vmatprep.subr.mxu0 0.0
    %2527 = vmatpush1.msra.mxu0 %v2391
    %2528 = vmatprep.subr.mxu0 0.0
    %2529 = vmatpush1.msra.mxu0 %v2394
    %2530 = vmatprep.subr.mxu0 0.0
    %2531 = vmatpush1.msra.mxu0 %v2397
    %2532 = vmatprep.subr.mxu0 0.0
    %2533 = vmatpush1.msra.mxu0 %v2400
    %2534 = vmatprep.subr.mxu0 0.0
    %2535 = vmatpush1.msra.mxu0 %v2403
    %2536 = vmatprep.subr.mxu0 0.0
    %2537 = vmatpush1.msra.mxu0 %v2406
    %2538 = vmatprep.subr.mxu0 0.0
    %2539 = vmatpush1.msra.mxu0 %v2409
    %2540 = vmatprep.subr.mxu0 0.0
    %2541 = vmatpush1.msra.mxu0 %v2412
    %2542 = vmatprep.subr.mxu0 0.0
    %2543 = vmatpush1.msra.mxu0 %v2415
    %2544 = vmatprep.subr.mxu0 0.0
    %2545 = vmatpush1.msra.mxu0 %v2418
    %2546 = vmatprep.subr.mxu0 0.0
    %2547 = vmatpush1.msra.mxu0 %v2421
    %2548 = vmatprep.subr.mxu0 0.0
    %2549 = vmatpush1.msra.mxu0 %v2424
    %2550 = vmatprep.subr.mxu0 0.0
    %2551 = vmatpush1.msra.mxu0 %v2427
    %2552 = vmatprep.subr.mxu0 0.0
    %2553 = vmatpush1.msra.mxu0 %v2430
    %2554 = vmatprep.subr.mxu0 0.0
    %2555 = vmatpush1.msra.mxu0 %v2433
    %2556 = vmatprep.subr.mxu0 0.0
    %2557 = vmatpush1.msra.mxu0 %v2436
    %2558 = vmatprep.subr.mxu0 0.0
    %2559 = vmatpush1.msra.mxu0 0.0
    %2560 = vmatprep.subr.mxu0 0.0
    %2561 = vmatpush1.msra.mxu0 0.0
    %2562 = vmatprep.subr.mxu0 0.0
    %2563 = vmatpush1.msra.mxu0 0.0
    %2564 = vmatprep.subr.mxu0 0.0
    %2565 = vmatpush1.msra.mxu0 0.0
    %2566 = vmatprep.subr.mxu0 0.0
    %2567 = vmatpush1.msra.mxu0 0.0
    %2568 = vmatprep.subr.mxu0 0.0
    %2569 = vmatpush1.msra.mxu0 0.0
    %2570 = vmatprep.subr.mxu0 0.0
    %2571 = vmatpush1.msra.mxu0 0.0
    %2572 = vmatprep.subr.mxu0 0.0
    %2573 = vmatpush1.msra.mxu0 0.0
    %2574 = vmatprep.subr.mxu0 0.0
    %2575 = vmatpush1.msra.mxu0 0.0
    %2576 = vmatprep.subr.mxu0 0.0
    %2577 = vmatpush1.msra.mxu0 0.0
    %2578 = vmatprep.subr.mxu0 0.0
    %2579 = vmatpush1.msra.mxu0 0.0
    %2580 = vmatprep.subr.mxu0 0.0
    %2581 = vmatpush1.msra.mxu0 0.0
    %2582 = vmatprep.subr.mxu0 0.0
    %2583 = vmatpush1.msra.mxu0 0.0
    %2584 = vmatprep.subr.mxu0 0.0
    %2585 = vmatpush1.msra.mxu0 0.0
    %2586 = vmatprep.subr.mxu0 0.0
    %2587 = vmatpush1.msra.mxu0 0.0
    %2588 = vmatprep.subr.mxu0 0.0
    %2589 = vmatpush1.msra.mxu0 0.0
    %2590 = vmatprep.mubr.f32.mxu0 0.0
    %2591 = vmatmul.mubr.f32.gmra.mrb[0].mxu0 %v2384
    %v2592 = vpop.f32.mrb[0].mxu0
    %v2593 = vadd.f32 0.0, %v2592
    %v2594 = vpop.f32.mrb[0].mxu0
    %2595 = vmatprep.mubr.f32.mxu0 0.0
    %2596 = vmatmul.mubr.f32.gmra.mrb[0].mxu0 %v2385
    %v2597 = vpop.f32.mrb[0].mxu0
    %v2598 = vadd.f32 0.0, %v2597
    %v2599 = vpop.f32.mrb[0].mxu0
    %2600 = vmatprep.mubr.f32.mxu0 0.0
    %2601 = vmatmul.mubr.f32.gmra.mrb[0].mxu0 %v2386
    %v2602 = vpop.f32.mrb[0].mxu0
    %v2603 = vadd.f32 0.0, %v2602
    %v2604 = vpop.f32.mrb[0].mxu0
    %2605 = vmatprep.mubr.f32.mxu0 0.0
    %2606 = vmatmul.mubr.f32.gmra.mrb[0].mxu0 %v2387
    %v2607 = vpop.f32.mrb[0].mxu0
    %v2608 = vadd.f32 0.0, %v2607
    %v2609 = vpop.f32.mrb[0].mxu0
    %2610 = vdwg.mxu0
    %v2611 = vadd.f32 %v2372, %v2504
    %v2612 = vadd.f32 %v2373, %v2506
    %v2613 = vadd.f32 %v2374, %v2593
    %v2614 = vadd.f32 %v2375, %v2510
    %v2615 = vadd.f32 %v2376, %v2512
    %v2616 = vadd.f32 %v2377, %v2598
    %v2617 = vadd.f32 %v2378, %v2516
    %v2618 = vadd.f32 %v2379, %v2518
    %v2619 = vadd.f32 %v2380, %v2603
    %v2620 = vadd.f32 %v2381, %v2522
    %v2621 = vadd.f32 %v2382, %v2524
    %v2622 = vadd.f32 %v2383, %v2608
    %v2623 = vld [vmem:[#allocation2 + $0x9] sm:$0xff]
    %v2624 = vld [vmem:[#allocation2 + $0x11] sm:$0xff]
    %v2625 = vld [vmem:[#allocation2 + $0x19] sm:$0xff]
    %v2626 = vld [vmem:[#allocation2 + $0x21] sm:$0xff]
    %s2627 = scalar_lea.vmem [#allocation7], 3456
    %v2628 = vld [vmem:[%s2627] sm:$0xff]
    %v2629 = vld [vmem:[%s2627 + $0x8] sm:$0xff]
    %v2630 = vld [vmem:[%s2627 + $0x10] sm:$0xff]
    %v2631 = vld [vmem:[%s2627 + $0x18] sm:$0xff]
    %v2632 = vld [vmem:[%s2627 + $0x20] sm:$0xff]
    %v2633 = vld [vmem:[%s2627 + $0x28] sm:$0xff]
    %v2634 = vld [vmem:[%s2627 + $0x30] sm:$0xff]
    %v2635 = vld [vmem:[%s2627 + $0x38] sm:$0xff]
    %v2636 = vld [vmem:[%s2627 + $0x40] sm:$0xff]
    %v2637 = vld [vmem:[%s2627 + $0x48] sm:$0xff]
    %v2638 = vld [vmem:[%s2627 + $0x50] sm:$0xff]
    %v2639 = vld [vmem:[%s2627 + $0x58] sm:$0xff]
    %v2640 = vld [vmem:[%s2627 + $0x60] sm:$0xff]
    %v2641 = vld [vmem:[%s2627 + $0x68] sm:$0xff]
    %v2642 = vld [vmem:[%s2627 + $0x70] sm:$0xff]
    %v2643 = vld [vmem:[%s2627 + $0x78] sm:$0xff]
    %v2644 = vld [vmem:[%s2627 + $0x80] sm:$0xff]
    %v2645 = vld [vmem:[%s2627 + $0x88] sm:$0xff]
    %v2646 = vld [vmem:[%s2627 + $0x90] sm:$0xff]
    %v2647 = vld [vmem:[%s2627 + $0x98] sm:$0xff]
    %v2648 = vld [vmem:[%s2627 + $0xa0] sm:$0xff]
    %v2649 = vld [vmem:[%s2627 + $0xa8] sm:$0xff]
    %v2650 = vld [vmem:[%s2627 + $0xb0] sm:$0xff]
    %v2651 = vld [vmem:[%s2627 + $0xb8] sm:$0xff]
    %v2652 = vld [vmem:[%s2627 + $0xc0] sm:$0xff]
    %v2653 = vld [vmem:[%s2627 + $0xc8] sm:$0xff]
    %v2654 = vld [vmem:[%s2627 + $0xd0] sm:$0xff]
    %v2655 = vld [vmem:[%s2627 + $0xd8] sm:$0xff]
    %v2656 = vld [vmem:[%s2627 + $0xe0] sm:$0xff]
    %v2657 = vld [vmem:[%s2627 + $0xe8] sm:$0xff]
    %v2658 = vld [vmem:[%s2627 + $0xf0] sm:$0xff]
    %v2659 = vld [vmem:[%s2627 + $0xf8] sm:$0xff]
    %v2660 = vld [vmem:[%s2627 + $0x100] sm:$0xff]
    %v2661 = vld [vmem:[%s2627 + $0x108] sm:$0xff]
    %v2662 = vld [vmem:[%s2627 + $0x110] sm:$0xff]
    %v2663 = vld [vmem:[%s2627 + $0x118] sm:$0xff]
    %v2664 = vld [vmem:[%s2627 + $0x120] sm:$0xff]
    %v2665 = vld [vmem:[%s2627 + $0x128] sm:$0xff]
    %v2666 = vld [vmem:[%s2627 + $0x130] sm:$0xff]
    %v2667 = vld [vmem:[%s2627 + $0x138] sm:$0xff]
    %v2668 = vld [vmem:[%s2627 + $0x140] sm:$0xff]
    %v2669 = vld [vmem:[%s2627 + $0x148] sm:$0xff]
    %v2670 = vld [vmem:[%s2627 + $0x150] sm:$0xff]
    %v2671 = vld [vmem:[%s2627 + $0x158] sm:$0xff]
    %v2672 = vld [vmem:[%s2627 + $0x160] sm:$0xff]
    %v2673 = vld [vmem:[%s2627 + $0x168] sm:$0xff]
    %v2674 = vld [vmem:[%s2627 + $0x170] sm:$0xff]
    %v2675 = vld [vmem:[%s2627 + $0x178] sm:$0xff]
    %2676 = vmatprep.subr.mxu0 %v2629
    %2677 = vmatpush1.msra.mxu0 %v2628
    %2678 = vmatprep.subr.mxu0 %v2632
    %2679 = vmatpush1.msra.mxu0 %v2631
    %2680 = vmatprep.subr.mxu0 %v2635
    %2681 = vmatpush1.msra.mxu0 %v2634
    %2682 = vmatprep.subr.mxu0 %v2638
    %2683 = vmatpush1.msra.mxu0 %v2637
    %2684 = vmatprep.subr.mxu0 %v2641
    %2685 = vmatpush1.msra.mxu0 %v2640
    %2686 = vmatprep.subr.mxu0 %v2644
    %2687 = vmatpush1.msra.mxu0 %v2643
    %2688 = vmatprep.subr.mxu0 %v2647
    %2689 = vmatpush1.msra.mxu0 %v2646
    %2690 = vmatprep.subr.mxu0 %v2650
    %2691 = vmatpush1.msra.mxu0 %v2649
    %2692 = vmatprep.subr.mxu0 %v2653
    %2693 = vmatpush1.msra.mxu0 %v2652
    %2694 = vmatprep.subr.mxu0 %v2656
    %2695 = vmatpush1.msra.mxu0 %v2655
    %2696 = vmatprep.subr.mxu0 %v2659
    %2697 = vmatpush1.msra.mxu0 %v2658
    %2698 = vmatprep.subr.mxu0 %v2662
    %2699 = vmatpush1.msra.mxu0 %v2661
    %2700 = vmatprep.subr.mxu0 %v2665
    %2701 = vmatpush1.msra.mxu0 %v2664
    %2702 = vmatprep.subr.mxu0 %v2668
    %2703 = vmatpush1.msra.mxu0 %v2667
    %2704 = vmatprep.subr.mxu0 %v2671
    %2705 = vmatpush1.msra.mxu0 %v2670
    %2706 = vmatprep.subr.mxu0 %v2674
    %2707 = vmatpush1.msra.mxu0 %v2673
    %2708 = vmatprep.subr.mxu0 0.0
    %2709 = vmatpush1.msra.mxu0 0.0
    %2710 = vmatprep.subr.mxu0 0.0
    %2711 = vmatpush1.msra.mxu0 0.0
    %2712 = vmatprep.subr.mxu0 0.0
    %2713 = vmatpush1.msra.mxu0 0.0
    %2714 = vmatprep.subr.mxu0 0.0
    %2715 = vmatpush1.msra.mxu0 0.0
    %2716 = vmatprep.subr.mxu0 0.0
    %2717 = vmatpush1.msra.mxu0 0.0
    %2718 = vmatprep.subr.mxu0 0.0
    %2719 = vmatpush1.msra.mxu0 0.0
    %2720 = vmatprep.subr.mxu0 0.0
    %2721 = vmatpush1.msra.mxu0 0.0
    %2722 = vmatprep.subr.mxu0 0.0
    %2723 = vmatpush1.msra.mxu0 0.0
    %2724 = vmatprep.subr.mxu0 0.0
    %2725 = vmatpush1.msra.mxu0 0.0
    %2726 = vmatprep.subr.mxu0 0.0
    %2727 = vmatpush1.msra.mxu0 0.0
    %2728 = vmatprep.subr.mxu0 0.0
    %2729 = vmatpush1.msra.mxu0 0.0
    %2730 = vmatprep.subr.mxu0 0.0
    %2731 = vmatpush1.msra.mxu0 0.0
    %2732 = vmatprep.subr.mxu0 0.0
    %2733 = vmatpush1.msra.mxu0 0.0
    %2734 = vmatprep.subr.mxu0 0.0
    %2735 = vmatpush1.msra.mxu0 0.0
    %2736 = vmatprep.subr.mxu0 0.0
    %2737 = vmatpush1.msra.mxu0 0.0
    %2738 = vmatprep.subr.mxu0 0.0
    %2739 = vmatpush1.msra.mxu0 0.0
    %2740 = vmatprep.mubr.f32.mxu0 0.0
    %2741 = vmatmul.mubr.f32.gmra.mrb[0].mxu0 %v2623
    %v2742 = vpop.f32.mrb[0].mxu0
    %v2743 = vadd.f32 0.0, %v2742
    %v2744 = vpop.f32.mrb[0].mxu0
    %v2745 = vadd.f32 0.0, %v2744
    %2746 = vmatprep.mubr.f32.mxu0 0.0
    %2747 = vmatmul.mubr.f32.gmra.mrb[0].mxu0 %v2624
    %v2748 = vpop.f32.mrb[0].mxu0
    %v2749 = vadd.f32 0.0, %v2748
    %v2750 = vpop.f32.mrb[0].mxu0
    %v2751 = vadd.f32 0.0, %v2750
    %2752 = vmatprep.mubr.f32.mxu0 0.0
    %2753 = vmatmul.mubr.f32.gmra.mrb[0].mxu0 %v2625
    %v2754 = vpop.f32.mrb[0].mxu0
    %v2755 = vadd.f32 0.0, %v2754
    %v2756 = vpop.f32.mrb[0].mxu0
    %v2757 = vadd.f32 0.0, %v2756
    %2758 = vmatprep.mubr.f32.mxu0 0.0
    %2759 = vmatmul.mubr.f32.gmra.mrb[0].mxu0 %v2626
    %v2760 = vpop.f32.mrb[0].mxu0
    %v2761 = vadd.f32 0.0, %v2760
    %v2762 = vpop.f32.mrb[0].mxu0
    %v2763 = vadd.f32 0.0, %v2762
    %2764 = vdwg.mxu0
    %2765 = vmatprep.subr.mxu0 0.0
    %2766 = vmatpush1.msra.mxu0 %v2630
    %2767 = vmatprep.subr.mxu0 0.0
    %2768 = vmatpush1.msra.mxu0 %v2633
    %2769 = vmatprep.subr.mxu0 0.0
    %2770 = vmatpush1.msra.mxu0 %v2636
    %2771 = vmatprep.subr.mxu0 0.0
    %2772 = vmatpush1.msra.mxu0 %v2639
    %2773 = vmatprep.subr.mxu0 0.0
    %2774 = vmatpush1.msra.mxu0 %v2642
    %2775 = vmatprep.subr.mxu0 0.0
    %2776 = vmatpush1.msra.mxu0 %v2645
    %2777 = vmatprep.subr.mxu0 0.0
    %2778 = vmatpush1.msra.mxu0 %v2648
    %2779 = vmatprep.subr.mxu0 0.0
    %2780 = vmatpush1.msra.mxu0 %v2651
    %2781 = vmatprep.subr.mxu0 0.0
    %2782 = vmatpush1.msra.mxu0 %v2654
    %2783 = vmatprep.subr.mxu0 0.0
    %2784 = vmatpush1.msra.mxu0 %v2657
    %2785 = vmatprep.subr.mxu0 0.0
    %2786 = vmatpush1.msra.mxu0 %v2660
    %2787 = vmatprep.subr.mxu0 0.0
    %2788 = vmatpush1.msra.mxu0 %v2663
    %2789 = vmatprep.subr.mxu0 0.0
    %2790 = vmatpush1.msra.mxu0 %v2666
    %2791 = vmatprep.subr.mxu0 0.0
    %2792 = vmatpush1.msra.mxu0 %v2669
    %2793 = vmatprep.subr.mxu0 0.0
    %2794 = vmatpush1.msra.mxu0 %v2672
    %2795 = vmatprep.subr.mxu0 0.0
    %2796 = vmatpush1.msra.mxu0 %v2675
    %2797 = vmatprep.subr.mxu0 0.0
    %2798 = vmatpush1.msra.mxu0 0.0
    %2799 = vmatprep.subr.mxu0 0.0
    %2800 = vmatpush1.msra.mxu0 0.0
    %2801 = vmatprep.subr.mxu0 0.0
    %2802 = vmatpush1.msra.mxu0 0.0
    %2803 = vmatprep.subr.mxu0 0.0
    %2804 = vmatpush1.msra.mxu0 0.0
    %2805 = vmatprep.subr.mxu0 0.0
    %2806 = vmatpush1.msra.mxu0 0.0
    %2807 = vmatprep.subr.mxu0 0.0
    %2808 = vmatpush1.msra.mxu0 0.0
    %2809 = vmatprep.subr.mxu0 0.0
    %2810 = vmatpush1.msra.mxu0 0.0
    %2811 = vmatprep.subr.mxu0 0.0
    %2812 = vmatpush1.msra.mxu0 0.0
    %2813 = vmatprep.subr.mxu0 0.0
    %2814 = vmatpush1.msra.mxu0 0.0
    %2815 = vmatprep.subr.mxu0 0.0
    %2816 = vmatpush1.msra.mxu0 0.0
    %2817 = vmatprep.subr.mxu0 0.0
    %2818 = vmatpush1.msra.mxu0 0.0
    %2819 = vmatprep.subr.mxu0 0.0
    %2820 = vmatpush1.msra.mxu0 0.0
    %2821 = vmatprep.subr.mxu0 0.0
    %2822 = vmatpush1.msra.mxu0 0.0
    %2823 = vmatprep.subr.mxu0 0.0
    %2824 = vmatpush1.msra.mxu0 0.0
    %2825 = vmatprep.subr.mxu0 0.0
    %2826 = vmatpush1.msra.mxu0 0.0
    %2827 = vmatprep.subr.mxu0 0.0
    %2828 = vmatpush1.msra.mxu0 0.0
    %2829 = vmatprep.mubr.f32.mxu0 0.0
    %2830 = vmatmul.mubr.f32.gmra.mrb[0].mxu0 %v2623
    %v2831 = vpop.f32.mrb[0].mxu0
    %v2832 = vadd.f32 0.0, %v2831
    %v2833 = vpop.f32.mrb[0].mxu0
    %2834 = vmatprep.mubr.f32.mxu0 0.0
    %2835 = vmatmul.mubr.f32.gmra.mrb[0].mxu0 %v2624
    %v2836 = vpop.f32.mrb[0].mxu0
    %v2837 = vadd.f32 0.0, %v2836
    %v2838 = vpop.f32.mrb[0].mxu0
    %2839 = vmatprep.mubr.f32.mxu0 0.0
    %2840 = vmatmul.mubr.f32.gmra.mrb[0].mxu0 %v2625
    %v2841 = vpop.f32.mrb[0].mxu0
    %v2842 = vadd.f32 0.0, %v2841
    %v2843 = vpop.f32.mrb[0].mxu0
    %2844 = vmatprep.mubr.f32.mxu0 0.0
    %2845 = vmatmul.mubr.f32.gmra.mrb[0].mxu0 %v2626
    %v2846 = vpop.f32.mrb[0].mxu0
    %v2847 = vadd.f32 0.0, %v2846
    %v2848 = vpop.f32.mrb[0].mxu0
    %2849 = vdwg.mxu0
    %v2850 = vadd.f32 %v2611, %v2743
    %v2851 = vadd.f32 %v2612, %v2745
    %v2852 = vadd.f32 %v2613, %v2832
    %v2853 = vadd.f32 %v2614, %v2749
    %v2854 = vadd.f32 %v2615, %v2751
    %v2855 = vadd.f32 %v2616, %v2837
    %v2856 = vadd.f32 %v2617, %v2755
    %v2857 = vadd.f32 %v2618, %v2757
    %v2858 = vadd.f32 %v2619, %v2842
    %v2859 = vadd.f32 %v2620, %v2761
    %v2860 = vadd.f32 %v2621, %v2763
    %v2861 = vadd.f32 %v2622, %v2847
    %v2862 = vld [vmem:[#allocation9] sm:$0xff]
    %v2863 = vld [vmem:[#allocation9 + $0x8] sm:$0xff]
    %v2864 = vld [vmem:[#allocation9 + $0x10] sm:$0xff]
    %v2865 = vld [vmem:[#allocation9 + $0x18] sm:$0xff]
    %v2866 = vld [vmem:[#allocation9 + $0x20] sm:$0xff]
    %v2867 = vld [vmem:[#allocation9 + $0x28] sm:$0xff]
    %v2868 = vadd.f32 %v2850, %v2862
    %v2869 = vadd.f32 %v2851, %v2863
    %v2870 = vadd.f32 %v2852, %v2864
    %v2871 = vadd.f32 %v2853, %v2865
    %v2872 = vadd.f32 %v2854, %v2866
    %v2873 = vadd.f32 %v2855, %v2867
    %v2874 = vmax.f32 %v2868, %v2871
    %v2875 = vrot.slane %v2874, 4
    %v2876 = vmax.f32 %v2874, %v2875
    %v2877 = vrot.slane %v2876, 2
    %v2878 = vmax.f32 %v2876, %v2877
    %v2879 = vrot.slane %v2878, 1
    %v2880 = vmax.f32 %v2878, %v2879
    %v2881 = vmax.f32 %v2869, %v2872
    %v2882 = vrot.slane %v2881, 4
    %v2883 = vmax.f32 %v2881, %v2882
    %v2884 = vrot.slane %v2883, 2
    %v2885 = vmax.f32 %v2883, %v2884
    %v2886 = vrot.slane %v2885, 1
    %v2887 = vmax.f32 %v2885, %v2886
    %v2888 = vmax.f32 %v2870, %v2873
    %v2889 = vrot.slane %v2888, 4
    %v2890 = vmax.f32 %v2888, %v2889
    %v2891 = vrot.slane %v2890, 2
    %v2892 = vmax.f32 %v2890, %v2891
    %v2893 = vrot.slane %v2892, 1
    %v2894 = vmax.f32 %v2892, %v2893
    %v2898 = vcombine.low %v2880, %v2887
    %v2900 = vunpack.c.l.s4 1966171168
    %v2901 = vunpack.c.0.s8 %v2900
    %v2902 = vlaneseq
    %v2903 = vshrl.u32 %v2902, 7
    %v2904 = vsub.s32 %v2901, %v2903
    %v2905 = vrot.slane %v2898, %v2904
    %v2907 = vunpack.c.l.s4 1966171168
    %v2908 = vunpack.c.0.s8 %v2907
    %v2909 = vlaneseq
    %v2910 = vshrl.u32 %v2909, 7
    %v2911 = vsub.s32 %v2908, %v2910
    %v2912 = vrot.slane %v2894, %v2911
    %v2913 = vcombine.low %v2905, %v2912
    %v2915 = vunpack.c.l.s4 1966171168
    %v2916 = vunpack.c.0.s8 %v2915
    %v2917 = vlaneseq
    %v2918 = vshrl.u32 %v2917, 7
    %v2919 = vsub.s32 %v2916, %v2918
    %v2920 = vrot.slane %v2913, %v2919
    %v2922 = vlaneseq
    %vm2923 = vcmp.ge.s32.totalorder %v2922, 0
    %vm2924 = vcmp.lt.s32.totalorder %v2922, 384
    %vm2925 = vmand %vm2923, %vm2924
    %2926 = vst.msk [vmem:[#allocation3] ss:$2 sm:$0x7] %vm2925, %v2920
    %v2927 = vld [vmem:[#allocation9] sm:$0xff]
    %v2928 = vld [vmem:[#allocation9 + $0x8] sm:$0xff]
    %v2929 = vld [vmem:[#allocation9 + $0x10] sm:$0xff]
    %v2930 = vld [vmem:[#allocation9 + $0x18] sm:$0xff]
    %v2931 = vld [vmem:[#allocation9 + $0x20] sm:$0xff]
    %v2932 = vld [vmem:[#allocation9 + $0x28] sm:$0xff]
    %v2933 = vadd.f32 %v2856, %v2927
    %v2934 = vadd.f32 %v2857, %v2928
    %v2935 = vadd.f32 %v2858, %v2929
    %v2936 = vadd.f32 %v2859, %v2930
    %v2937 = vadd.f32 %v2860, %v2931
    %v2938 = vadd.f32 %v2861, %v2932
    %v2939 = vmax.f32 %v2933, %v2936
    %v2940 = vrot.slane %v2939, 4
    %v2941 = vmax.f32 %v2939, %v2940
    %v2942 = vrot.slane %v2941, 2
    %v2943 = vmax.f32 %v2941, %v2942
    %v2944 = vrot.slane %v2943, 1
    %v2945 = vmax.f32 %v2943, %v2944
    %v2946 = vmax.f32 %v2934, %v2937
    %v2947 = vrot.slane %v2946, 4
    %v2948 = vmax.f32 %v2946, %v2947
    %v2949 = vrot.slane %v2948, 2
    %v2950 = vmax.f32 %v2948, %v2949
    %v2951 = vrot.slane %v2950, 1
    %v2952 = vmax.f32 %v2950, %v2951
    %v2953 = vmax.f32 %v2935, %v2938
    %v2954 = vrot.slane %v2953, 4
    %v2955 = vmax.f32 %v2953, %v2954
    %v2956 = vrot.slane %v2955, 2
    %v2957 = vmax.f32 %v2955, %v2956
    %v2958 = vrot.slane %v2957, 1
    %v2959 = vmax.f32 %v2957, %v2958
    %v2963 = vcombine.low %v2945, %v2952
    %v2965 = vunpack.c.l.s4 1966171168
    %v2966 = vunpack.c.0.s8 %v2965
    %v2967 = vlaneseq
    %v2968 = vshrl.u32 %v2967, 7
    %v2969 = vsub.s32 %v2966, %v2968
    %v2970 = vrot.slane %v2963, %v2969
    %v2972 = vunpack.c.l.s4 1966171168
    %v2973 = vunpack.c.0.s8 %v2972
    %v2974 = vlaneseq
    %v2975 = vshrl.u32 %v2974, 7
    %v2976 = vsub.s32 %v2973, %v2975
    %v2977 = vrot.slane %v2959, %v2976
    %v2978 = vcombine.low %v2970, %v2977
    %v2980 = vunpack.c.l.s4 1966171168
    %v2981 = vunpack.c.0.s8 %v2980
    %v2982 = vlaneseq
    %v2983 = vshrl.u32 %v2982, 7
    %v2984 = vsub.s32 %v2981, %v2983
    %v2985 = vrot.slane %v2978, %v2984
    %s2987 = scalar_lea.vmem [#allocation3], 1
    %2988 = vst.msk [vmem:[%s2987] ss:$2 sm:$0x7] %vm2925, %v2985
    %v2989 = vld [vmem:[#allocation3] sm:$0x3f]
    %v2990 = vld [vmem:[#allocation10] sm:$0xff]
    %v2991 = vld [vmem:[#allocation10 + $0x8] sm:$0xff]
    %v2992 = vld [vmem:[#allocation10 + $0x10] sm:$0xff]
    %v2993 = vld [vmem:[#allocation10 + $0x18] sm:$0xff]
    %v2994 = vld [vmem:[#allocation10 + $0x20] sm:$0xff]
    %v2995 = vld [vmem:[#allocation10 + $0x28] sm:$0xff]
    %v2996 = vld [vmem:[#allocation10 + $0x30] sm:$0xff]
    %v2997 = vld [vmem:[#allocation10 + $0x38] sm:$0xff]
    %v2998 = vld [vmem:[#allocation10 + $0x40] sm:$0xff]
    %v2999 = vld [vmem:[#allocation10 + $0x48] sm:$0xff]
    %v3000 = vld [vmem:[#allocation10 + $0x50] sm:$0xff]
    %v3001 = vld [vmem:[#allocation10 + $0x58] sm:$0xff]
    %v3002 = vld [vmem:[#allocation10 + $0x60] sm:$0xff]
    %v3003 = vld [vmem:[#allocation10 + $0x68] sm:$0xff]
    %v3004 = vld [vmem:[#allocation10 + $0x70] sm:$0xff]
    %v3005 = vld [vmem:[#allocation10 + $0x78] sm:$0xff]
    %v3006 = vld [vmem:[#allocation10 + $0x80] sm:$0xff]
    %v3007 = vld [vmem:[#allocation10 + $0x88] sm:$0xff]
    %v3008 = vld [vmem:[#allocation10 + $0x90] sm:$0xff]
    %v3009 = vld [vmem:[#allocation10 + $0x98] sm:$0xff]
    %v3010 = vld [vmem:[#allocation10 + $0xa0] sm:$0xff]
    %v3011 = vld [vmem:[#allocation10 + $0xa8] sm:$0xff]
    %v3012 = vld [vmem:[#allocation10 + $0xb0] sm:$0xff]
    %v3013 = vld [vmem:[#allocation10 + $0xb8] sm:$0xff]
    %v3014 = vld [vmem:[#allocation10 + $0xc0] sm:$0xff]
    %v3015 = vld [vmem:[#allocation10 + $0xc8] sm:$0xff]
    %v3016 = vld [vmem:[#allocation10 + $0xd0] sm:$0xff]
    %v3017 = vld [vmem:[#allocation10 + $0xd8] sm:$0xff]
    %v3018 = vld [vmem:[#allocation10 + $0xe0] sm:$0xff]
    %v3019 = vld [vmem:[#allocation10 + $0xe8] sm:$0xff]
    %v3020 = vld [vmem:[#allocation10 + $0xf0] sm:$0xff]
    %v3021 = vld [vmem:[#allocation10 + $0xf8] sm:$0xff]
    %v3022 = vld [vmem:[#allocation10 + $0x100] sm:$0xff]
    %v3023 = vld [vmem:[#allocation10 + $0x108] sm:$0xff]
    %v3024 = vld [vmem:[#allocation10 + $0x110] sm:$0xff]
    %v3025 = vld [vmem:[#allocation10 + $0x118] sm:$0xff]
    %v3026 = vld [vmem:[#allocation10 + $0x120] sm:$0xff]
    %v3027 = vld [vmem:[#allocation10 + $0x128] sm:$0xff]
    %v3028 = vld [vmem:[#allocation10 + $0x130] sm:$0xff]
    %v3029 = vld [vmem:[#allocation10 + $0x138] sm:$0xff]
    %v3030 = vld [vmem:[#allocation10 + $0x140] sm:$0xff]
    %v3031 = vld [vmem:[#allocation10 + $0x148] sm:$0xff]
    %v3032 = vld [vmem:[#allocation10 + $0x150] sm:$0xff]
    %v3033 = vld [vmem:[#allocation10 + $0x158] sm:$0xff]
    %v3034 = vld [vmem:[#allocation10 + $0x160] sm:$0xff]
    %v3035 = vld [vmem:[#allocation10 + $0x168] sm:$0xff]
    %v3036 = vld [vmem:[#allocation10 + $0x170] sm:$0xff]
    %v3037 = vld [vmem:[#allocation10 + $0x178] sm:$0xff]
    %v3038 = vld [vmem:[#allocation10 + $0x180] sm:$0xff]
    %v3039 = vld [vmem:[#allocation10 + $0x188] sm:$0xff]
    %v3040 = vld [vmem:[#allocation10 + $0x190] sm:$0xff]
    %v3041 = vld [vmem:[#allocation10 + $0x198] sm:$0xff]
    %v3042 = vld [vmem:[#allocation10 + $0x1a0] sm:$0xff]
    %v3043 = vld [vmem:[#allocation10 + $0x1a8] sm:$0xff]
    %v3044 = vld [vmem:[#allocation10 + $0x1b0] sm:$0xff]
    %v3045 = vld [vmem:[#allocation10 + $0x1b8] sm:$0xff]
    %v3046 = vld [vmem:[#allocation10 + $0x1c0] sm:$0xff]
    %v3047 = vld [vmem:[#allocation10 + $0x1c8] sm:$0xff]
    %v3048 = vld [vmem:[#allocation10 + $0x1d0] sm:$0xff]
    %v3049 = vld [vmem:[#allocation10 + $0x1d8] sm:$0xff]
    %v3050 = vld [vmem:[#allocation10 + $0x1e0] sm:$0xff]
    %v3051 = vld [vmem:[#allocation10 + $0x1e8] sm:$0xff]
    %v3052 = vld [vmem:[#allocation10 + $0x1f0] sm:$0xff]
    %v3053 = vld [vmem:[#allocation10 + $0x1f8] sm:$0xff]
    %v3054 = vld [vmem:[#allocation10 + $0x200] sm:$0xff]
    %v3055 = vld [vmem:[#allocation10 + $0x208] sm:$0xff]
    %v3056 = vld [vmem:[#allocation10 + $0x210] sm:$0xff]
    %v3057 = vld [vmem:[#allocation10 + $0x218] sm:$0xff]
    %v3058 = vld [vmem:[#allocation10 + $0x220] sm:$0xff]
    %v3059 = vld [vmem:[#allocation10 + $0x228] sm:$0xff]
    %v3060 = vld [vmem:[#allocation10 + $0x230] sm:$0xff]
    %v3061 = vld [vmem:[#allocation10 + $0x238] sm:$0xff]
    %v3062 = vld [vmem:[#allocation10 + $0x240] sm:$0xff]
    %v3063 = vld [vmem:[#allocation10 + $0x248] sm:$0xff]
    %v3064 = vld [vmem:[#allocation10 + $0x250] sm:$0xff]
    %v3065 = vld [vmem:[#allocation10 + $0x258] sm:$0xff]
    %v3066 = vld [vmem:[#allocation10 + $0x260] sm:$0xff]
    %v3067 = vld [vmem:[#allocation10 + $0x268] sm:$0xff]
    %v3068 = vld [vmem:[#allocation10 + $0x270] sm:$0xff]
    %v3069 = vld [vmem:[#allocation10 + $0x278] sm:$0xff]
    %v3070 = vld [vmem:[#allocation10 + $0x280] sm:$0xff]
    %v3071 = vld [vmem:[#allocation10 + $0x288] sm:$0xff]
    %v3072 = vld [vmem:[#allocation10 + $0x290] sm:$0xff]
    %v3073 = vld [vmem:[#allocation10 + $0x298] sm:$0xff]
    %v3074 = vld [vmem:[#allocation10 + $0x2a0] sm:$0xff]
    %v3075 = vld [vmem:[#allocation10 + $0x2a8] sm:$0xff]
    %v3076 = vld [vmem:[#allocation10 + $0x2b0] sm:$0xff]
    %v3077 = vld [vmem:[#allocation10 + $0x2b8] sm:$0xff]
    %v3078 = vld [vmem:[#allocation10 + $0x2c0] sm:$0xff]
    %v3079 = vld [vmem:[#allocation10 + $0x2c8] sm:$0xff]
    %v3080 = vld [vmem:[#allocation10 + $0x2d0] sm:$0xff]
    %v3081 = vld [vmem:[#allocation10 + $0x2d8] sm:$0xff]
    %v3082 = vld [vmem:[#allocation10 + $0x2e0] sm:$0xff]
    %v3083 = vld [vmem:[#allocation10 + $0x2e8] sm:$0xff]
    %v3084 = vld [vmem:[#allocation10 + $0x2f0] sm:$0xff]
    %v3085 = vld [vmem:[#allocation10 + $0x2f8] sm:$0xff]
    %v3086 = vld [vmem:[#allocation10 + $0x300] sm:$0xff]
    %v3087 = vld [vmem:[#allocation10 + $0x308] sm:$0xff]
    %v3088 = vld [vmem:[#allocation10 + $0x310] sm:$0xff]
    %v3089 = vld [vmem:[#allocation10 + $0x318] sm:$0xff]
    %v3090 = vld [vmem:[#allocation10 + $0x320] sm:$0xff]
    %v3091 = vld [vmem:[#allocation10 + $0x328] sm:$0xff]
    %v3092 = vld [vmem:[#allocation10 + $0x330] sm:$0xff]
    %v3093 = vld [vmem:[#allocation10 + $0x338] sm:$0xff]
    %v3094 = vld [vmem:[#allocation10 + $0x340] sm:$0xff]
    %v3095 = vld [vmem:[#allocation10 + $0x348] sm:$0xff]
    %v3096 = vld [vmem:[#allocation10 + $0x350] sm:$0xff]
    %v3097 = vld [vmem:[#allocation10 + $0x358] sm:$0xff]
    %v3098 = vld [vmem:[#allocation10 + $0x360] sm:$0xff]
    %v3099 = vld [vmem:[#allocation10 + $0x368] sm:$0xff]
    %v3100 = vld [vmem:[#allocation10 + $0x370] sm:$0xff]
    %v3101 = vld [vmem:[#allocation10 + $0x378] sm:$0xff]
    %v3102 = vld [vmem:[#allocation10 + $0x380] sm:$0xff]
    %v3103 = vld [vmem:[#allocation10 + $0x388] sm:$0xff]
    %v3104 = vld [vmem:[#allocation10 + $0x390] sm:$0xff]
    %v3105 = vld [vmem:[#allocation10 + $0x398] sm:$0xff]
    %v3106 = vld [vmem:[#allocation10 + $0x3a0] sm:$0xff]
    %v3107 = vld [vmem:[#allocation10 + $0x3a8] sm:$0xff]
    %v3108 = vld [vmem:[#allocation10 + $0x3b0] sm:$0xff]
    %v3109 = vld [vmem:[#allocation10 + $0x3b8] sm:$0xff]
    %v3110 = vld [vmem:[#allocation10 + $0x3c0] sm:$0xff]
    %v3111 = vld [vmem:[#allocation10 + $0x3c8] sm:$0xff]
    %v3112 = vld [vmem:[#allocation10 + $0x3d0] sm:$0xff]
    %v3113 = vld [vmem:[#allocation10 + $0x3d8] sm:$0xff]
    %v3114 = vld [vmem:[#allocation10 + $0x3e0] sm:$0xff]
    %v3115 = vld [vmem:[#allocation10 + $0x3e8] sm:$0xff]
    %v3116 = vld [vmem:[#allocation10 + $0x3f0] sm:$0xff]
    %v3117 = vld [vmem:[#allocation10 + $0x3f8] sm:$0xff]
    %v3118 = vld [vmem:[#allocation10 + $0x400] sm:$0xff]
    %v3119 = vld [vmem:[#allocation10 + $0x408] sm:$0xff]
    %v3120 = vld [vmem:[#allocation10 + $0x410] sm:$0xff]
    %v3121 = vld [vmem:[#allocation10 + $0x418] sm:$0xff]
    %v3122 = vld [vmem:[#allocation10 + $0x420] sm:$0xff]
    %v3123 = vld [vmem:[#allocation10 + $0x428] sm:$0xff]
    %v3124 = vld [vmem:[#allocation10 + $0x430] sm:$0xff]
    %v3125 = vld [vmem:[#allocation10 + $0x438] sm:$0xff]
    %v3126 = vld [vmem:[#allocation10 + $0x440] sm:$0xff]
    %v3127 = vld [vmem:[#allocation10 + $0x448] sm:$0xff]
    %v3128 = vld [vmem:[#allocation10 + $0x450] sm:$0xff]
    %v3129 = vld [vmem:[#allocation10 + $0x458] sm:$0xff]
    %v3130 = vld [vmem:[#allocation10 + $0x460] sm:$0xff]
    %v3131 = vld [vmem:[#allocation10 + $0x468] sm:$0xff]
    %v3132 = vld [vmem:[#allocation10 + $0x470] sm:$0xff]
    %v3133 = vld [vmem:[#allocation10 + $0x478] sm:$0xff]
    %v3134 = vld [vmem:[#allocation12] sm:$0x7]
    %v3136 = vlaneseq
    %v3137 = vshrl.u32 %v3136, 7
    %v3138 = vsub.s32 0, %v3137
    %v3139 = vrot.slane %v3134, %v3138
    %v3140 = vlaneseq
    %v3141 = vshrl.u32 %v3140, 7
    %v3142 = vsub.s32 1, %v3141
    %v3143 = vrot.slane %v3134, %v3142
    %v3144 = vlaneseq
    %v3145 = vshrl.u32 %v3144, 7
    %v3146 = vsub.s32 2, %v3145
    %v3147 = vrot.slane %v3134, %v3146
    %v3152 = vcombine.high %v2989, %v2989
    %v3154 = vunpack.c.l.s4 1983009808
    %v3155 = vunpack.c.0.s8 %v3154
    %v3156 = vlaneseq
    %v3157 = vshrl.u32 %v3156, 7
    %v3158 = vsub.s32 %v3155, %v3157
    %v3159 = vrot.slane %v2989, %v3158
    %v3161 = vunpack.c.l.s4 1983009808
    %v3162 = vunpack.c.0.s8 %v3161
    %v3163 = vlaneseq
    %v3164 = vshrl.u32 %v3163, 7
    %v3165 = vsub.s32 %v3162, %v3164
    %v3166 = vrot.slane %v3152, %v3165
    %v3167 = vcombine.high %v3159, %v3159
    %3171 = vmatprep.subr.mxu0 %v2991
    %3172 = vmatpush1.msra.mxu0 %v2990
    %3173 = vmatprep.subr.mxu0 %v2994
    %3174 = vmatpush1.msra.mxu0 %v2993
    %3175 = vmatprep.subr.mxu0 %v2997
    %3176 = vmatpush1.msra.mxu0 %v2996
    %3177 = vmatprep.subr.mxu0 %v3000
    %3178 = vmatpush1.msra.mxu0 %v2999
    %3179 = vmatprep.subr.mxu0 %v3003
    %3180 = vmatpush1.msra.mxu0 %v3002
    %3181 = vmatprep.subr.mxu0 %v3006
    %3182 = vmatpush1.msra.mxu0 %v3005
    %3183 = vmatprep.subr.mxu0 %v3009
    %3184 = vmatpush1.msra.mxu0 %v3008
    %3185 = vmatprep.subr.mxu0 %v3012
    %3186 = vmatpush1.msra.mxu0 %v3011
    %3187 = vmatprep.subr.mxu0 %v3015
    %3188 = vmatpush1.msra.mxu0 %v3014
    %3189 = vmatprep.subr.mxu0 %v3018
    %3190 = vmatpush1.msra.mxu0 %v3017
    %3191 = vmatprep.subr.mxu0 %v3021
    %3192 = vmatpush1.msra.mxu0 %v3020
    %3193 = vmatprep.subr.mxu0 %v3024
    %3194 = vmatpush1.msra.mxu0 %v3023
    %3195 = vmatprep.subr.mxu0 %v3027
    %3196 = vmatpush1.msra.mxu0 %v3026
    %3197 = vmatprep.subr.mxu0 %v3030
    %3198 = vmatpush1.msra.mxu0 %v3029
    %3199 = vmatprep.subr.mxu0 %v3033
    %3200 = vmatpush1.msra.mxu0 %v3032
    %3201 = vmatprep.subr.mxu0 %v3036
    %3202 = vmatpush1.msra.mxu0 %v3035
    %3203 = vmatprep.subr.mxu0 %v3039
    %3204 = vmatpush1.msra.mxu0 %v3038
    %3205 = vmatprep.subr.mxu0 %v3042
    %3206 = vmatpush1.msra.mxu0 %v3041
    %3207 = vmatprep.subr.mxu0 %v3045
    %3208 = vmatpush1.msra.mxu0 %v3044
    %3209 = vmatprep.subr.mxu0 %v3048
    %3210 = vmatpush1.msra.mxu0 %v3047
    %3211 = vmatprep.subr.mxu0 %v3051
    %3212 = vmatpush1.msra.mxu0 %v3050
    %3213 = vmatprep.subr.mxu0 %v3054
    %3214 = vmatpush1.msra.mxu0 %v3053
    %3215 = vmatprep.subr.mxu0 %v3057
    %3216 = vmatpush1.msra.mxu0 %v3056
    %3217 = vmatprep.subr.mxu0 %v3060
    %3218 = vmatpush1.msra.mxu0 %v3059
    %3219 = vmatprep.subr.mxu0 %v3063
    %3220 = vmatpush1.msra.mxu0 %v3062
    %3221 = vmatprep.subr.mxu0 %v3066
    %3222 = vmatpush1.msra.mxu0 %v3065
    %3223 = vmatprep.subr.mxu0 %v3069
    %3224 = vmatpush1.msra.mxu0 %v3068
    %3225 = vmatprep.subr.mxu0 %v3072
    %3226 = vmatpush1.msra.mxu0 %v3071
    %3227 = vmatprep.subr.mxu0 %v3075
    %3228 = vmatpush1.msra.mxu0 %v3074
    %3229 = vmatprep.subr.mxu0 %v3078
    %3230 = vmatpush1.msra.mxu0 %v3077
    %3231 = vmatprep.subr.mxu0 %v3081
    %3232 = vmatpush1.msra.mxu0 %v3080
    %3233 = vmatprep.subr.mxu0 %v3084
    %3234 = vmatpush1.msra.mxu0 %v3083
    %3235 = vmatprep.mubr.f32.mxu0 %v3167
    %3236 = vmatmul.mubr.f32.gmra.mrb[0].mxu0 %v3159
    %v3237 = vpop.f32.mrb[0].mxu0
    %v3238 = vadd.f32 %v3139, %v3237
    %v3239 = vpop.f32.mrb[0].mxu0
    %v3240 = vadd.f32 %v3143, %v3239
    %3241 = vdwg.mxu0
    %3242 = vmatprep.subr.mxu0 %v3087
    %3243 = vmatpush1.msra.mxu0 %v3086
    %3244 = vmatprep.subr.mxu0 %v3090
    %3245 = vmatpush1.msra.mxu0 %v3089
    %3246 = vmatprep.subr.mxu0 %v3093
    %3247 = vmatpush1.msra.mxu0 %v3092
    %3248 = vmatprep.subr.mxu0 %v3096
    %3249 = vmatpush1.msra.mxu0 %v3095
    %3250 = vmatprep.subr.mxu0 %v3099
    %3251 = vmatpush1.msra.mxu0 %v3098
    %3252 = vmatprep.subr.mxu0 %v3102
    %3253 = vmatpush1.msra.mxu0 %v3101
    %3254 = vmatprep.subr.mxu0 %v3105
    %3255 = vmatpush1.msra.mxu0 %v3104
    %3256 = vmatprep.subr.mxu0 %v3108
    %3257 = vmatpush1.msra.mxu0 %v3107
    %3258 = vmatprep.subr.mxu0 %v3111
    %3259 = vmatpush1.msra.mxu0 %v3110
    %3260 = vmatprep.subr.mxu0 %v3114
    %3261 = vmatpush1.msra.mxu0 %v3113
    %3262 = vmatprep.subr.mxu0 %v3117
    %3263 = vmatpush1.msra.mxu0 %v3116
    %3264 = vmatprep.subr.mxu0 %v3120
    %3265 = vmatpush1.msra.mxu0 %v3119
    %3266 = vmatprep.subr.mxu0 %v3123
    %3267 = vmatpush1.msra.mxu0 %v3122
    %3268 = vmatprep.subr.mxu0 %v3126
    %3269 = vmatpush1.msra.mxu0 %v3125
    %3270 = vmatprep.subr.mxu0 %v3129
    %3271 = vmatpush1.msra.mxu0 %v3128
    %3272 = vmatprep.subr.mxu0 %v3132
    %3273 = vmatpush1.msra.mxu0 %v3131
    %3274 = vmatprep.subr.mxu0 0.0
    %3275 = vmatpush1.msra.mxu0 0.0
    %3276 = vmatprep.subr.mxu0 0.0
    %3277 = vmatpush1.msra.mxu0 0.0
    %3278 = vmatprep.subr.mxu0 0.0
    %3279 = vmatpush1.msra.mxu0 0.0
    %3280 = vmatprep.subr.mxu0 0.0
    %3281 = vmatpush1.msra.mxu0 0.0
    %3282 = vmatprep.subr.mxu0 0.0
    %3283 = vmatpush1.msra.mxu0 0.0
    %3284 = vmatprep.subr.mxu0 0.0
    %3285 = vmatpush1.msra.mxu0 0.0
    %3286 = vmatprep.subr.mxu0 0.0
    %3287 = vmatpush1.msra.mxu0 0.0
    %3288 = vmatprep.subr.mxu0 0.0
    %3289 = vmatpush1.msra.mxu0 0.0
    %3290 = vmatprep.subr.mxu0 0.0
    %3291 = vmatpush1.msra.mxu0 0.0
    %3292 = vmatprep.subr.mxu0 0.0
    %3293 = vmatpush1.msra.mxu0 0.0
    %3294 = vmatprep.subr.mxu0 0.0
    %3295 = vmatpush1.msra.mxu0 0.0
    %3296 = vmatprep.subr.mxu0 0.0
    %3297 = vmatpush1.msra.mxu0 0.0
    %3298 = vmatprep.subr.mxu0 0.0
    %3299 = vmatpush1.msra.mxu0 0.0
    %3300 = vmatprep.subr.mxu0 0.0
    %3301 = vmatpush1.msra.mxu0 0.0
    %3302 = vmatprep.subr.mxu0 0.0
    %3303 = vmatpush1.msra.mxu0 0.0
    %3304 = vmatprep.subr.mxu0 0.0
    %3305 = vmatpush1.msra.mxu0 0.0
    %3306 = vmatprep.mubr.f32.mxu0 0.0
    %3307 = vmatmul.mubr.f32.gmra.mrb[0].mxu0 %v3166
    %v3308 = vpop.f32.mrb[0].mxu0
    %v3309 = vadd.f32 %v3238, %v3308
    %v3310 = vpop.f32.mrb[0].mxu0
    %v3311 = vadd.f32 %v3240, %v3310
    %3312 = vdwg.mxu0
    %3313 = vmatprep.subr.mxu0 0.0
    %3314 = vmatpush1.msra.mxu0 %v2992
    %3315 = vmatprep.subr.mxu0 0.0
    %3316 = vmatpush1.msra.mxu0 %v2995
    %3317 = vmatprep.subr.mxu0 0.0
    %3318 = vmatpush1.msra.mxu0 %v2998
    %3319 = vmatprep.subr.mxu0 0.0
    %3320 = vmatpush1.msra.mxu0 %v3001
    %3321 = vmatprep.subr.mxu0 0.0
    %3322 = vmatpush1.msra.mxu0 %v3004
    %3323 = vmatprep.subr.mxu0 0.0
    %3324 = vmatpush1.msra.mxu0 %v3007
    %3325 = vmatprep.subr.mxu0 0.0
    %3326 = vmatpush1.msra.mxu0 %v3010
    %3327 = vmatprep.subr.mxu0 0.0
    %3328 = vmatpush1.msra.mxu0 %v3013
    %3329 = vmatprep.subr.mxu0 0.0
    %3330 = vmatpush1.msra.mxu0 %v3016
    %3331 = vmatprep.subr.mxu0 0.0
    %3332 = vmatpush1.msra.mxu0 %v3019
    %3333 = vmatprep.subr.mxu0 0.0
    %3334 = vmatpush1.msra.mxu0 %v3022
    %3335 = vmatprep.subr.mxu0 0.0
    %3336 = vmatpush1.msra.mxu0 %v3025
    %3337 = vmatprep.subr.mxu0 0.0
    %3338 = vmatpush1.msra.mxu0 %v3028
    %3339 = vmatprep.subr.mxu0 0.0
    %3340 = vmatpush1.msra.mxu0 %v3031
    %3341 = vmatprep.subr.mxu0 0.0
    %3342 = vmatpush1.msra.mxu0 %v3034
    %3343 = vmatprep.subr.mxu0 0.0
    %3344 = vmatpush1.msra.mxu0 %v3037
    %3345 = vmatprep.subr.mxu0 0.0
    %3346 = vmatpush1.msra.mxu0 %v3040
    %3347 = vmatprep.subr.mxu0 0.0
    %3348 = vmatpush1.msra.mxu0 %v3043
    %3349 = vmatprep.subr.mxu0 0.0
    %3350 = vmatpush1.msra.mxu0 %v3046
    %3351 = vmatprep.subr.mxu0 0.0
    %3352 = vmatpush1.msra.mxu0 %v3049
    %3353 = vmatprep.subr.mxu0 0.0
    %3354 = vmatpush1.msra.mxu0 %v3052
    %3355 = vmatprep.subr.mxu0 0.0
    %3356 = vmatpush1.msra.mxu0 %v3055
    %3357 = vmatprep.subr.mxu0 0.0
    %3358 = vmatpush1.msra.mxu0 %v3058
    %3359 = vmatprep.subr.mxu0 0.0
    %3360 = vmatpush1.msra.mxu0 %v3061
    %3361 = vmatprep.subr.mxu0 0.0
    %3362 = vmatpush1.msra.mxu0 %v3064
    %3363 = vmatprep.subr.mxu0 0.0
    %3364 = vmatpush1.msra.mxu0 %v3067
    %3365 = vmatprep.subr.mxu0 0.0
    %3366 = vmatpush1.msra.mxu0 %v3070
    %3367 = vmatprep.subr.mxu0 0.0
    %3368 = vmatpush1.msra.mxu0 %v3073
    %3369 = vmatprep.subr.mxu0 0.0
    %3370 = vmatpush1.msra.mxu0 %v3076
    %3371 = vmatprep.subr.mxu0 0.0
    %3372 = vmatpush1.msra.mxu0 %v3079
    %3373 = vmatprep.subr.mxu0 0.0
    %3374 = vmatpush1.msra.mxu0 %v3082
    %3375 = vmatprep.subr.mxu0 0.0
    %3376 = vmatpush1.msra.mxu0 %v3085
    %3377 = vmatprep.mubr.f32.mxu0 %v3167
    %3378 = vmatmul.mubr.f32.gmra.mrb[0].mxu0 %v3159
    %v3379 = vpop.f32.mrb[0].mxu0
    %v3380 = vadd.f32 %v3147, %v3379
    %v3381 = vpop.f32.mrb[0].mxu0
    %3382 = vdwg.mxu0
    %3383 = vmatprep.subr.mxu0 0.0
    %3384 = vmatpush1.msra.mxu0 %v3088
    %3385 = vmatprep.subr.mxu0 0.0
    %3386 = vmatpush1.msra.mxu0 %v3091
    %3387 = vmatprep.subr.mxu0 0.0
    %3388 = vmatpush1.msra.mxu0 %v3094
    %3389 = vmatprep.subr.mxu0 0.0
    %3390 = vmatpush1.msra.mxu0 %v3097
    %3391 = vmatprep.subr.mxu0 0.0
    %3392 = vmatpush1.msra.mxu0 %v3100
    %3393 = vmatprep.subr.mxu0 0.0
    %3394 = vmatpush1.msra.mxu0 %v3103
    %3395 = vmatprep.subr.mxu0 0.0
    %3396 = vmatpush1.msra.mxu0 %v3106
    %3397 = vmatprep.subr.mxu0 0.0
    %3398 = vmatpush1.msra.mxu0 %v3109
    %3399 = vmatprep.subr.mxu0 0.0
    %3400 = vmatpush1.msra.mxu0 %v3112
    %3401 = vmatprep.subr.mxu0 0.0
    %3402 = vmatpush1.msra.mxu0 %v3115
    %3403 = vmatprep.subr.mxu0 0.0
    %3404 = vmatpush1.msra.mxu0 %v3118
    %3405 = vmatprep.subr.mxu0 0.0
    %3406 = vmatpush1.msra.mxu0 %v3121
    %3407 = vmatprep.subr.mxu0 0.0
    %3408 = vmatpush1.msra.mxu0 %v3124
    %3409 = vmatprep.subr.mxu0 0.0
    %3410 = vmatpush1.msra.mxu0 %v3127
    %3411 = vmatprep.subr.mxu0 0.0
    %3412 = vmatpush1.msra.mxu0 %v3130
    %3413 = vmatprep.subr.mxu0 0.0
    %3414 = vmatpush1.msra.mxu0 %v3133
    %3415 = vmatprep.subr.mxu0 0.0
    %3416 = vmatpush1.msra.mxu0 0.0
    %3417 = vmatprep.subr.mxu0 0.0
    %3418 = vmatpush1.msra.mxu0 0.0
    %3419 = vmatprep.subr.mxu0 0.0
    %3420 = vmatpush1.msra.mxu0 0.0
    %3421 = vmatprep.subr.mxu0 0.0
    %3422 = vmatpush1.msra.mxu0 0.0
    %3423 = vmatprep.subr.mxu0 0.0
    %3424 = vmatpush1.msra.mxu0 0.0
    %3425 = vmatprep.subr.mxu0 0.0
    %3426 = vmatpush1.msra.mxu0 0.0
    %3427 = vmatprep.subr.mxu0 0.0
    %3428 = vmatpush1.msra.mxu0 0.0
    %3429 = vmatprep.subr.mxu0 0.0
    %3430 = vmatpush1.msra.mxu0 0.0
    %3431 = vmatprep.subr.mxu0 0.0
    %3432 = vmatpush1.msra.mxu0 0.0
    %3433 = vmatprep.subr.mxu0 0.0
    %3434 = vmatpush1.msra.mxu0 0.0
    %3435 = vmatprep.subr.mxu0 0.0
    %3436 = vmatpush1.msra.mxu0 0.0
    %3437 = vmatprep.subr.mxu0 0.0
    %3438 = vmatpush1.msra.mxu0 0.0
    %3439 = vmatprep.subr.mxu0 0.0
    %3440 = vmatpush1.msra.mxu0 0.0
    %3441 = vmatprep.subr.mxu0 0.0
    %3442 = vmatpush1.msra.mxu0 0.0
    %3443 = vmatprep.subr.mxu0 0.0
    %3444 = vmatpush1.msra.mxu0 0.0
    %3445 = vmatprep.subr.mxu0 0.0
    %3446 = vmatpush1.msra.mxu0 0.0
    %3447 = vmatprep.mubr.f32.mxu0 0.0
    %3448 = vmatmul.mubr.f32.gmra.mrb[0].mxu0 %v3166
    %v3449 = vpop.f32.mrb[0].mxu0
    %v3450 = vadd.f32 %v3380, %v3449
    %v3451 = vpop.f32.mrb[0].mxu0
    %3452 = vdwg.mxu0
    %v3453 = vmax.f32 %v3309, 0.0
    %v3454 = vmax.f32 %v3311, 0.0
    %v3455 = vmax.f32 %v3450, 0.0
    %v3456 = vld [vmem:[%s6] sm:$0xff]
    %v3457 = vld [vmem:[%s6 + $0x8] sm:$0xff]
    %v3458 = vld [vmem:[%s6 + $0x10] sm:$0xff]
    %v3459 = vld [vmem:[%s6 + $0x18] sm:$0xff]
    %v3460 = vld [vmem:[%s6 + $0x20] sm:$0xff]
    %v3461 = vld [vmem:[%s6 + $0x28] sm:$0xff]
    %v3462 = vld [vmem:[%s6 + $0x30] sm:$0xff]
    %v3463 = vld [vmem:[%s6 + $0x38] sm:$0xff]
    %v3464 = vld [vmem:[%s6 + $0x40] sm:$0xff]
    %v3465 = vld [vmem:[%s6 + $0x48] sm:$0xff]
    %v3466 = vld [vmem:[%s6 + $0x50] sm:$0xff]
    %v3467 = vld [vmem:[%s6 + $0x58] sm:$0xff]
    %v3468 = vld [vmem:[%s6 + $0x60] sm:$0xff]
    %v3469 = vld [vmem:[%s6 + $0x68] sm:$0xff]
    %v3470 = vld [vmem:[%s6 + $0x70] sm:$0xff]
    %v3471 = vld [vmem:[%s6 + $0x78] sm:$0xff]
    %v3472 = vld [vmem:[%s6 + $0x80] sm:$0xff]
    %v3473 = vld [vmem:[%s6 + $0x88] sm:$0xff]
    %v3474 = vld [vmem:[%s6 + $0x90] sm:$0xff]
    %v3475 = vld [vmem:[%s6 + $0x98] sm:$0xff]
    %v3476 = vld [vmem:[%s6 + $0xa0] sm:$0xff]
    %v3477 = vld [vmem:[%s6 + $0xa8] sm:$0xff]
    %v3478 = vld [vmem:[%s6 + $0xb0] sm:$0xff]
    %v3479 = vld [vmem:[%s6 + $0xb8] sm:$0xff]
    %v3480 = vld [vmem:[%s6 + $0xc0] sm:$0xff]
    %v3481 = vld [vmem:[%s6 + $0xc8] sm:$0xff]
    %v3482 = vld [vmem:[%s6 + $0xd0] sm:$0xff]
    %v3483 = vld [vmem:[%s6 + $0xd8] sm:$0xff]
    %v3484 = vld [vmem:[%s6 + $0xe0] sm:$0xff]
    %v3485 = vld [vmem:[%s6 + $0xe8] sm:$0xff]
    %v3486 = vld [vmem:[%s6 + $0xf0] sm:$0xff]
    %v3487 = vld [vmem:[%s6 + $0xf8] sm:$0xff]
    %v3488 = vld [vmem:[%s6 + $0x100] sm:$0xff]
    %v3489 = vld [vmem:[%s6 + $0x108] sm:$0xff]
    %v3490 = vld [vmem:[%s6 + $0x110] sm:$0xff]
    %v3491 = vld [vmem:[%s6 + $0x118] sm:$0xff]
    %v3492 = vld [vmem:[%s6 + $0x120] sm:$0xff]
    %v3493 = vld [vmem:[%s6 + $0x128] sm:$0xff]
    %v3494 = vld [vmem:[%s6 + $0x130] sm:$0xff]
    %v3495 = vld [vmem:[%s6 + $0x138] sm:$0xff]
    %v3496 = vld [vmem:[%s6 + $0x140] sm:$0xff]
    %v3497 = vld [vmem:[%s6 + $0x148] sm:$0xff]
    %v3498 = vld [vmem:[%s6 + $0x150] sm:$0xff]
    %v3499 = vld [vmem:[%s6 + $0x158] sm:$0xff]
    %v3500 = vld [vmem:[%s6 + $0x160] sm:$0xff]
    %v3501 = vld [vmem:[%s6 + $0x168] sm:$0xff]
    %v3502 = vld [vmem:[%s6 + $0x170] sm:$0xff]
    %v3503 = vld [vmem:[%s6 + $0x178] sm:$0xff]
    %v3504 = vld [vmem:[#allocation13] sm:$0x1]
    %v3506 = vlaneseq
    %v3507 = vshrl.u32 %v3506, 7
    %v3508 = vsub.s32 0, %v3507
    %v3509 = vrot.slane %v3504, %v3508
    %3511 = vmatprep.subr.mxu0 0.0
    %3512 = vmatpush1.msra.mxu0 %v3456
    %3513 = vmatprep.subr.mxu0 0.0
    %3514 = vmatpush1.msra.mxu0 %v3457
    %3515 = vmatprep.subr.mxu0 0.0
    %3516 = vmatpush1.msra.mxu0 %v3458
    %3517 = vmatprep.subr.mxu0 0.0
    %3518 = vmatpush1.msra.mxu0 %v3459
    %3519 = vmatprep.subr.mxu0 0.0
    %3520 = vmatpush1.msra.mxu0 %v3460
    %3521 = vmatprep.subr.mxu0 0.0
    %3522 = vmatpush1.msra.mxu0 %v3461
    %3523 = vmatprep.subr.mxu0 0.0
    %3524 = vmatpush1.msra.mxu0 %v3462
    %3525 = vmatprep.subr.mxu0 0.0
    %3526 = vmatpush1.msra.mxu0 %v3463
    %3527 = vmatprep.subr.mxu0 0.0
    %3528 = vmatpush1.msra.mxu0 %v3464
    %3529 = vmatprep.subr.mxu0 0.0
    %3530 = vmatpush1.msra.mxu0 %v3465
    %3531 = vmatprep.subr.mxu0 0.0
    %3532 = vmatpush1.msra.mxu0 %v3466
    %3533 = vmatprep.subr.mxu0 0.0
    %3534 = vmatpush1.msra.mxu0 %v3467
    %3535 = vmatprep.subr.mxu0 0.0
    %3536 = vmatpush1.msra.mxu0 %v3468
    %3537 = vmatprep.subr.mxu0 0.0
    %3538 = vmatpush1.msra.mxu0 %v3469
    %3539 = vmatprep.subr.mxu0 0.0
    %3540 = vmatpush1.msra.mxu0 %v3470
    %3541 = vmatprep.subr.mxu0 0.0
    %3542 = vmatpush1.msra.mxu0 %v3471
    %3543 = vmatprep.subr.mxu0 0.0
    %3544 = vmatpush1.msra.mxu0 %v3472
    %3545 = vmatprep.subr.mxu0 0.0
    %3546 = vmatpush1.msra.mxu0 %v3473
    %3547 = vmatprep.subr.mxu0 0.0
    %3548 = vmatpush1.msra.mxu0 %v3474
    %3549 = vmatprep.subr.mxu0 0.0
    %3550 = vmatpush1.msra.mxu0 %v3475
    %3551 = vmatprep.subr.mxu0 0.0
    %3552 = vmatpush1.msra.mxu0 %v3476
    %3553 = vmatprep.subr.mxu0 0.0
    %3554 = vmatpush1.msra.mxu0 %v3477
    %3555 = vmatprep.subr.mxu0 0.0
    %3556 = vmatpush1.msra.mxu0 %v3478
    %3557 = vmatprep.subr.mxu0 0.0
    %3558 = vmatpush1.msra.mxu0 %v3479
    %3559 = vmatprep.subr.mxu0 0.0
    %3560 = vmatpush1.msra.mxu0 %v3480
    %3561 = vmatprep.subr.mxu0 0.0
    %3562 = vmatpush1.msra.mxu0 %v3481
    %3563 = vmatprep.subr.mxu0 0.0
    %3564 = vmatpush1.msra.mxu0 %v3482
    %3565 = vmatprep.subr.mxu0 0.0
    %3566 = vmatpush1.msra.mxu0 %v3483
    %3567 = vmatprep.subr.mxu0 0.0
    %3568 = vmatpush1.msra.mxu0 %v3484
    %3569 = vmatprep.subr.mxu0 0.0
    %3570 = vmatpush1.msra.mxu0 %v3485
    %3571 = vmatprep.subr.mxu0 0.0
    %3572 = vmatpush1.msra.mxu0 %v3486
    %3573 = vmatprep.subr.mxu0 0.0
    %3574 = vmatpush1.msra.mxu0 %v3487
    %3575 = vmatprep.mubr.f32.mxu0 %v3454
    %3576 = vmatmul.mubr.f32.gmra.mrb[0].mxu0 %v3453
    %v3577 = vpop.f32.mrb[0].mxu0
    %v3578 = vadd.f32 %v3509, %v3577
    %v3579 = vpop.f32.mrb[0].mxu0
    %3580 = vdwg.mxu0
    %3581 = vmatprep.subr.mxu0 0.0
    %3582 = vmatpush1.msra.mxu0 %v3488
    %3583 = vmatprep.subr.mxu0 0.0
    %3584 = vmatpush1.msra.mxu0 %v3489
    %3585 = vmatprep.subr.mxu0 0.0
    %3586 = vmatpush1.msra.mxu0 %v3490
    %3587 = vmatprep.subr.mxu0 0.0
    %3588 = vmatpush1.msra.mxu0 %v3491
    %3589 = vmatprep.subr.mxu0 0.0
    %3590 = vmatpush1.msra.mxu0 %v3492
    %3591 = vmatprep.subr.mxu0 0.0
    %3592 = vmatpush1.msra.mxu0 %v3493
    %3593 = vmatprep.subr.mxu0 0.0
    %3594 = vmatpush1.msra.mxu0 %v3494
    %3595 = vmatprep.subr.mxu0 0.0
    %3596 = vmatpush1.msra.mxu0 %v3495
    %3597 = vmatprep.subr.mxu0 0.0
    %3598 = vmatpush1.msra.mxu0 %v3496
    %3599 = vmatprep.subr.mxu0 0.0
    %3600 = vmatpush1.msra.mxu0 %v3497
    %3601 = vmatprep.subr.mxu0 0.0
    %3602 = vmatpush1.msra.mxu0 %v3498
    %3603 = vmatprep.subr.mxu0 0.0
    %3604 = vmatpush1.msra.mxu0 %v3499
    %3605 = vmatprep.subr.mxu0 0.0
    %3606 = vmatpush1.msra.mxu0 %v3500
    %3607 = vmatprep.subr.mxu0 0.0
    %3608 = vmatpush1.msra.mxu0 %v3501
    %3609 = vmatprep.subr.mxu0 0.0
    %3610 = vmatpush1.msra.mxu0 %v3502
    %3611 = vmatprep.subr.mxu0 0.0
    %3612 = vmatpush1.msra.mxu0 %v3503
    %3613 = vmatprep.subr.mxu0 0.0
    %3614 = vmatpush1.msra.mxu0 0.0
    %3615 = vmatprep.subr.mxu0 0.0
    %3616 = vmatpush1.msra.mxu0 0.0
    %3617 = vmatprep.subr.mxu0 0.0
    %3618 = vmatpush1.msra.mxu0 0.0
    %3619 = vmatprep.subr.mxu0 0.0
    %3620 = vmatpush1.msra.mxu0 0.0
    %3621 = vmatprep.subr.mxu0 0.0
    %3622 = vmatpush1.msra.mxu0 0.0
    %3623 = vmatprep.subr.mxu0 0.0
    %3624 = vmatpush1.msra.mxu0 0.0
    %3625 = vmatprep.subr.mxu0 0.0
    %3626 = vmatpush1.msra.mxu0 0.0
    %3627 = vmatprep.subr.mxu0 0.0
    %3628 = vmatpush1.msra.mxu0 0.0
    %3629 = vmatprep.subr.mxu0 0.0
    %3630 = vmatpush1.msra.mxu0 0.0
    %3631 = vmatprep.subr.mxu0 0.0
    %3632 = vmatpush1.msra.mxu0 0.0
    %3633 = vmatprep.subr.mxu0 0.0
    %3634 = vmatpush1.msra.mxu0 0.0
    %3635 = vmatprep.subr.mxu0 0.0
    %3636 = vmatpush1.msra.mxu0 0.0
    %3637 = vmatprep.subr.mxu0 0.0
    %3638 = vmatpush1.msra.mxu0 0.0
    %3639 = vmatprep.subr.mxu0 0.0
    %3640 = vmatpush1.msra.mxu0 0.0
    %3641 = vmatprep.subr.mxu0 0.0
    %3642 = vmatpush1.msra.mxu0 0.0
    %3643 = vmatprep.subr.mxu0 0.0
    %3644 = vmatpush1.msra.mxu0 0.0
    %3645 = vmatprep.mubr.f32.mxu0 0.0
    %3646 = vmatmul.mubr.f32.gmra.mrb[0].mxu0 %v3455
    %v3647 = vpop.f32.mrb[0].mxu0
    %v3648 = vadd.f32 %v3578, %v3647
    %v3649 = vpop.f32.mrb[0].mxu0
    %3650 = vdwg.mxu0
    %vm3651 = vcmask 9216
    %3652 = vst.msk [vmem:[#allocation15] sm:$0x3] %vm3651, %v3648
    // Predicated region
    $region58: #{net_forward.1} parent=1 // pred_check
      _
    $region59: #{net_forward.1} parent=1 // pred_check_branch
      %3654 = sbr.rel (0) target = $region61
    $region60: #{net_forward.1} parent=1 // pred_region
      %s3656 = ssub.s32 32, 32
      %3657 = vsyncadd [#allocation6], %s3656
      %s3659 = sshll.u32 [#allocation15], 4
      %s3660 = int_to_ptr.vmem [resolvable:$true] %s3659
      %3662 = dma.vmem_to_hbm [thread:$0]  %s3660, 32, %s8, [#allocation6]
    $region61: #{net_forward.1} parent=1 // pred_fallthru
      _
    // Predicated region
    $region62: #{net_forward.1} parent=1 // pred_check
      _
    $region63: #{net_forward.1} parent=1 // pred_check_branch
      %3664 = sbr.rel (0) target = $region65
    $region64: #{net_forward.1} parent=1 // pred_region
      %3665 = dma.done [#allocation6], 32
    $region65: #{net_forward.1} parent=1 // pred_fallthru
      _
    %3666 = vsyncpa [#allocation5], 1
    %3667 = vsyncpa [#allocation8], 1
    %3668 = vsyncpa [#allocation11], 1
    %3669 = vsyncpa [#allocation14], 1
    %3670 = vsyncpa [#allocation6], 1

</llo_original>
